<compile_context>
chip_gen: v5e
topology: v5e:2x2
jax: 0.10.0
libtpu: 0.0.40
codegen_flags: <defaults>
</compile_context>

<pallas_src>
import jax
import jax.numpy as jnp
from jax.experimental import pallas as pl
from jax.experimental.pallas import tpu as pltpu


def _dense_block_kernel(x_ref, g1_ref, be1_ref, w1_ref, bc1_ref,
                        g2_ref, be2_ref, w2_ref, bc2_ref,
                        out_ref,
                        h2_ref, cs_ref):
    N, H, W, Cin = x_ref.shape
    Cmid = w1_ref.shape[1]
    Cout2 = bc2_ref.shape[1]
    Gpad = cs_ref.shape[-1]          # per-ky im2col group width (multiple of 128)
    Cout_pad = out_ref.shape[-1]     # padded output channel count (multiple of 128)
    Hp, Wp = H // 2, W // 2
    M = N * H * W
    eps = 1e-5
    inv_m = 1.0 / float(M)

    # ---- BN statistics: single pass, exact-f32 VPU/XLU reduction -------------
    # (Moved off the MXU: default MXU matmul precision may bf16-round operands,
    #  which compounds the E[x^2]-mean^2 cancellation.  Tiny cost either way.)
    def bn_scale_shift(v, g, b):
        s = jnp.sum(v, axis=0, keepdims=True)          # (1, C)
        ss = jnp.sum(v * v, axis=0, keepdims=True)     # (1, C)
        mean = s * inv_m
        var = ss * inv_m - mean * mean
        scale = g * jax.lax.rsqrt(var + eps)
        shift = b - mean * scale
        return scale, shift

    xf = x_ref[...].reshape(M, Cin)                    # channels stay on lanes

    # ---- bn1 + relu1 ----------------------------------------------------------
    sc1, sh1 = bn_scale_shift(xf, g1_ref[...], be1_ref[...])
    h1 = jnp.maximum(xf * sc1 + sh1, 0.0)

    # ---- conv1: 1x1 conv == pure channel matmul on the MXU ---------------------
    z = jnp.dot(h1, w1_ref[...], preferred_element_type=jnp.float32) + bc1_ref[...]

    # ---- bn2 + relu2 ------------------------------------------------------------
    sc2, sh2 = bn_scale_shift(z, g2_ref[...], be2_ref[...])
    h2_ref[...] = jnp.maximum(z * sc2 + sh2, 0.0).reshape(N, H, W, Cmid)

    # ---- conv2 (3x3, pad 1) fused with AvgPool2d(2,2) --------------------------
    # Column-pair sums for the three kx phases, lane-concatenated once into a
    # single 128-lane-dense scratch: lanes [kx0 | kx1 | kx2 | zeros].
    E = h2_ref[:, :, pl.ds(0, Wp, stride=2), :]        # cols 0,2,...,W-2
    O = h2_ref[:, :, pl.ds(1, Wp, stride=2), :]        # cols 1,3,...,W-1
    zc = jnp.zeros((N, H, 1, Cmid), jnp.float32)
    k0 = E + jnp.concatenate([zc, O[:, :, :Wp - 1, :]], axis=2)   # kx=0
    k1 = E + O                                                    # kx=1
    k2 = O + jnp.concatenate([E[:, :, 1:, :], zc], axis=2)        # kx=2
    cs_parts = [k0, k1, k2]
    if Gpad > 3 * Cmid:
        cs_parts.append(jnp.zeros((N, H, Wp, Gpad - 3 * Cmid), jnp.float32))
    cs_ref[...] = jnp.concatenate(cs_parts, axis=-1)   # full 128-lane dense store

    # Row-pair sums for the three ky phases, all kx phases at once; im2col is
    # the concat of the 3 slabs at 128-lane offsets (no cross-lane shuffles).
    RE = cs_ref[:, pl.ds(0, Hp, stride=2), :, :]       # rows 0,2,...
    RO = cs_ref[:, pl.ds(1, Hp, stride=2), :, :]       # rows 1,3,...
    zr = jnp.zeros((N, 1, Wp, Gpad), jnp.float32)
    slab0 = RE + jnp.concatenate([zr, RO[:, :Hp - 1]], axis=1)    # ky=0
    slab1 = RE + RO                                               # ky=1
    slab2 = RO + jnp.concatenate([RE[:, 1:], zr], axis=1)         # ky=2
    im2col = jnp.concatenate([slab0, slab1, slab2],
                             axis=-1).reshape(N * Hp * Wp, 3 * Gpad)

    conv2p = (0.25 * jnp.dot(im2col, w2_ref[...], preferred_element_type=jnp.float32)
              + bc2_ref[...]).reshape(N, Hp, Wp, Cout2)

    # ---- AvgPool2d(2,2) of the identity branch: straight from x_ref ------------
    idp = 0.25 * (x_ref[:, pl.ds(0, Hp, stride=2), pl.ds(0, Wp, stride=2), :]
                  + x_ref[:, pl.ds(0, Hp, stride=2), pl.ds(1, Wp, stride=2), :]
                  + x_ref[:, pl.ds(1, Hp, stride=2), pl.ds(0, Wp, stride=2), :]
                  + x_ref[:, pl.ds(1, Hp, stride=2), pl.ds(1, Wp, stride=2), :])

    # ---- torch.cat((out, identity), channel), padded to a dense 128-lane store -
    pieces = [conv2p, idp]
    pad = Cout_pad - (Cout2 + Cin)
    if pad:
        pieces.append(jnp.zeros((N, Hp, Wp, pad), jnp.float32))
    out_ref[...] = jnp.concatenate(pieces, axis=-1)


def dense_block_forward_nhwc(x_nhwc, params):
    """NHWC in / NHWC out (no relayouts); use this when chaining blocks."""
    x = x_nhwc.astype(jnp.float32)
    N, H, W, Cin = x.shape
    assert H % 2 == 0 and W % 2 == 0, "AvgPool2d(2,2) fold assumes even H, W"
    Cmid = params["w1"].shape[1]
    Cout2 = params["w2"].shape[3]
    Cout = Cout2 + Cin
    Hp, Wp = H // 2, W // 2

    # conv2 weights flattened to (ky, kx, c) order with each ky group padded to
    # a multiple of 128 rows of zeros (matches the lane-dense im2col slabs).
    gpad = ((3 * Cmid + 127) // 128) * 128
    w2_flat = params["w2"].reshape(3, 3 * Cmid, Cout2)
    w2_flat = jnp.pad(w2_flat, ((0, 0), (0, gpad - 3 * Cmid), (0, 0)))
    w2_flat = w2_flat.reshape(3 * gpad, Cout2)

    # Output channels padded to a multiple of 128 for a dense writeback.
    cpad_out = ((Cout + 127) // 128) * 128

    vmem = pl.BlockSpec(memory_space=pltpu.MemorySpace.VMEM)
    out_padded = pl.pallas_call(
        _dense_block_kernel,
        out_shape=jax.ShapeDtypeStruct((N, Hp, Wp, cpad_out), jnp.float32),
        in_specs=[vmem] * 9,
        out_specs=vmem,
        scratch_shapes=[
            pltpu.VMEM((N, H, W, Cmid), jnp.float32),   # h2 (strided E/O reads)
            pltpu.VMEM((N, H, Wp, gpad), jnp.float32),  # merged column-pair sums
        ],
        compiler_params=pltpu.CompilerParams(vmem_limit_bytes=8 << 20),
    )(x, params["g1"], params["be1"], params["w1"], params["bc1"],
      params["g2"], params["be2"], w2_flat, params["bc2"])
    return out_padded[..., :Cout]


def dense_block_forward(x_nchw, params):
    """Wrapper: NCHW in / NCHW out (PyTorch API parity)."""
    x = jnp.transpose(x_nchw, (0, 2, 3, 1))
    out_nhwc = dense_block_forward_nhwc(x, params)
    # Channel-pad slice folds into this transpose on the XLA side.
    return jnp.transpose(out_nhwc, (0, 3, 1, 2))


def _reference_forward(x_nchw, params):
    """Pure-JAX/XLA reference with identical semantics (validation only)."""
    x = jnp.transpose(x_nchw, (0, 2, 3, 1)).astype(jnp.float32)
    eps = 1e-5

    def bn(v, g, b):
        mean = jnp.mean(v, axis=(0, 1, 2), keepdims=True)
        var = jnp.mean((v - mean) ** 2, axis=(0, 1, 2), keepdims=True)
        return ((v - mean) * jax.lax.rsqrt(var + eps) * g.reshape(1, 1, 1, -1)
                + b.reshape(1, 1, 1, -1))

    h1 = jax.nn.relu(bn(x, params["g1"], params["be1"]))
    z = jnp.einsum("nhwc,cd->nhwd", h1, params["w1"]) + params["bc1"].reshape(1, 1, 1, -1)
    h2 = jax.nn.relu(bn(z, params["g2"], params["be2"]))
    conv2 = jax.lax.conv_general_dilated(
        h2, params["w2"], window_strides=(1, 1), padding=((1, 1), (1, 1)),
        dimension_numbers=("NHWC", "HWIO", "NHWC")) + params["bc2"].reshape(1, 1, 1, -1)
    cat = jnp.concatenate([conv2, x], axis=-1)
    pooled = 0.25 * (cat[:, 0::2, 0::2] + cat[:, 0::2, 1::2]
                     + cat[:, 1::2, 0::2] + cat[:, 1::2, 1::2])
    return jnp.transpose(pooled, (0, 3, 1, 2))


def init_params(key, n=1):
    """Deterministic synthetic parameters with the shapes DenseBlock(n) implies."""
    inplanes = (n * 3 + 2) * 13          # bn1 / conv1 in-channels
    cmid = (n + 1) * 13                  # conv1 out / bn2 / conv2 in-channels
    ks = jax.random.split(key, 8)
    params = {
        "g1": 1.0 + 0.1 * jax.random.normal(ks[0], (1, inplanes), jnp.float32),
        "be1": 0.1 * jax.random.normal(ks[1], (1, inplanes), jnp.float32),
        "w1": jax.random.normal(ks[2], (inplanes, cmid), jnp.float32) / jnp.sqrt(inplanes),
        "bc1": 0.1 * jax.random.normal(ks[3], (1, cmid), jnp.float32),
        "g2": 1.0 + 0.1 * jax.random.normal(ks[4], (1, cmid), jnp.float32),
        "be2": 0.1 * jax.random.normal(ks[5], (1, cmid), jnp.float32),
        "w2": jax.random.normal(ks[6], (3, 3, cmid, 39), jnp.float32) / jnp.sqrt(9.0 * cmid),
        "bc2": 0.1 * jax.random.normal(ks[7], (1, 39), jnp.float32),
    }
    return params, inplanes


if __name__ == "__main__":
    n = 1
    key = jax.random.PRNGKey(0)
    kp, kx = jax.random.split(key)
    params, inplanes = init_params(kp, n)            # inplanes = 65, cmid = 26

    # PyTorch-style NCHW input: (batch=2, channels=65, H=16, W=16)
    x = jax.random.normal(kx, (2, inplanes, 16, 16), jnp.float32)

    out = jax.jit(dense_block_forward)(x, params)
    out = jax.block_until_ready(out)

    assert out.shape == (2, 39 + inplanes, 8, 8), out.shape
    assert bool(jnp.all(jnp.isfinite(out)))

    ref = _reference_forward(x, params)
    max_err = float(jnp.max(jnp.abs(out - ref)))
    assert max_err < 2e-3, f"mismatch vs pure-JAX reference: {max_err}"

    print("KERNEL_OK")
</pallas_src>

<mosaic_0001>
module attributes {stable_mosaic.version = 11 : i64} {
  func.func @_dense_block_kernel(%arg0: memref<2x16x16x65xf32, #tpu.memory_space<vmem>>, %arg1: memref<1x65xf32, #tpu.memory_space<vmem>>, %arg2: memref<1x65xf32, #tpu.memory_space<vmem>>, %arg3: memref<65x26xf32, #tpu.memory_space<vmem>>, %arg4: memref<1x26xf32, #tpu.memory_space<vmem>>, %arg5: memref<1x26xf32, #tpu.memory_space<vmem>>, %arg6: memref<1x26xf32, #tpu.memory_space<vmem>>, %arg7: memref<384x39xf32, #tpu.memory_space<vmem>>, %arg8: memref<1x39xf32, #tpu.memory_space<vmem>>, %arg9: memref<2x8x8x128xf32, #tpu.memory_space<vmem>>, %arg10: memref<2x16x16x26xf32, #tpu.memory_space<vmem>>, %arg11: memref<2x16x8x128xf32, #tpu.memory_space<vmem>>) attributes {dimension_semantics = [], scalar_prefetch = 0 : i64, scratch_operands = 2 : i64, tpu.core_type = #tpu.core_type<tc>} {
    %c0 = arith.constant 0 : index
    %c0_0 = arith.constant 0 : index
    %c0_1 = arith.constant 0 : index
    %c0_2 = arith.constant 0 : index
    %0 = vector.load %arg0[%c0, %c0_0, %c0_1, %c0_2] : memref<2x16x16x65xf32, #tpu.memory_space<vmem>>, vector<2x16x16x65xf32>
    %1 = vector.shape_cast %0 : vector<2x16x16x65xf32> to vector<512x65xf32>
    %c0_3 = arith.constant 0 : index
    %c0_4 = arith.constant 0 : index
    %2 = vector.load %arg1[%c0_3, %c0_4] : memref<1x65xf32, #tpu.memory_space<vmem>>, vector<1x65xf32>
    %c0_5 = arith.constant 0 : index
    %c0_6 = arith.constant 0 : index
    %3 = vector.load %arg2[%c0_5, %c0_6] : memref<1x65xf32, #tpu.memory_space<vmem>>, vector<1x65xf32>
    %cst = arith.constant dense<0.000000e+00> : vector<65xf32>
    %4 = vector.multi_reduction <add>, %1, %cst [0] : vector<512x65xf32> to vector<65xf32>
    %5 = vector.shape_cast %4 : vector<65xf32> to vector<1x65xf32>
    %6 = arith.mulf %1, %1 : vector<512x65xf32>
    %cst_7 = arith.constant dense<0.000000e+00> : vector<65xf32>
    %7 = vector.multi_reduction <add>, %6, %cst_7 [0] : vector<512x65xf32> to vector<65xf32>
    %8 = vector.shape_cast %7 : vector<65xf32> to vector<1x65xf32>
    %cst_8 = arith.constant 0.001953125 : f32
    %9 = vector.broadcast %cst_8 : f32 to vector<1x65xf32>
    %10 = arith.mulf %5, %9 : vector<1x65xf32>
    %cst_9 = arith.constant 0.001953125 : f32
    %11 = vector.broadcast %cst_9 : f32 to vector<1x65xf32>
    %12 = arith.mulf %8, %11 : vector<1x65xf32>
    %13 = arith.mulf %10, %10 : vector<1x65xf32>
    %14 = arith.subf %12, %13 : vector<1x65xf32>
    %cst_10 = arith.constant 9.99999974E-6 : f32
    %15 = vector.broadcast %cst_10 : f32 to vector<1x65xf32>
    %16 = arith.addf %14, %15 : vector<1x65xf32>
    %17 = math.rsqrt %16 : vector<1x65xf32>
    %18 = arith.mulf %2, %17 : vector<1x65xf32>
    %19 = arith.mulf %10, %18 : vector<1x65xf32>
    %20 = arith.subf %3, %19 : vector<1x65xf32>
    %21 = vector.broadcast %18 : vector<1x65xf32> to vector<512x65xf32>
    %22 = arith.mulf %1, %21 : vector<512x65xf32>
    %23 = vector.broadcast %20 : vector<1x65xf32> to vector<512x65xf32>
    %24 = arith.addf %22, %23 : vector<512x65xf32>
    %cst_11 = arith.constant 0.000000e+00 : f32
    %25 = vector.broadcast %cst_11 : f32 to vector<512x65xf32>
    %26 = arith.maximumf %24, %25 : vector<512x65xf32>
    %c0_12 = arith.constant 0 : index
    %c0_13 = arith.constant 0 : index
    %27 = vector.load %arg3[%c0_12, %c0_13] : memref<65x26xf32, #tpu.memory_space<vmem>>, vector<65x26xf32>
    %cst_14 = arith.constant dense<0.000000e+00> : vector<512x26xf32>
    %28 = tpu.matmul %26, %27, %cst_14 {dimension_numbers = #tpu.dot_dimension_numbers<[1], [0], [0], [1], [0, 0, 1, 1], [], []>} : vector<512x65xf32>, vector<65x26xf32>, vector<512x26xf32> -> vector<512x26xf32>
    %c0_15 = arith.constant 0 : index
    %c0_16 = arith.constant 0 : index
    %29 = vector.load %arg4[%c0_15, %c0_16] : memref<1x26xf32, #tpu.memory_space<vmem>>, vector<1x26xf32>
    %30 = vector.broadcast %29 : vector<1x26xf32> to vector<512x26xf32>
    %31 = arith.addf %28, %30 : vector<512x26xf32>
    %c0_17 = arith.constant 0 : index
    %c0_18 = arith.constant 0 : index
    %32 = vector.load %arg5[%c0_17, %c0_18] : memref<1x26xf32, #tpu.memory_space<vmem>>, vector<1x26xf32>
    %c0_19 = arith.constant 0 : index
    %c0_20 = arith.constant 0 : index
    %33 = vector.load %arg6[%c0_19, %c0_20] : memref<1x26xf32, #tpu.memory_space<vmem>>, vector<1x26xf32>
    %cst_21 = arith.constant dense<0.000000e+00> : vector<26xf32>
    %34 = vector.multi_reduction <add>, %31, %cst_21 [0] : vector<512x26xf32> to vector<26xf32>
    %35 = vector.shape_cast %34 : vector<26xf32> to vector<1x26xf32>
    %36 = arith.mulf %31, %31 : vector<512x26xf32>
    %cst_22 = arith.constant dense<0.000000e+00> : vector<26xf32>
    %37 = vector.multi_reduction <add>, %36, %cst_22 [0] : vector<512x26xf32> to vector<26xf32>
    %38 = vector.shape_cast %37 : vector<26xf32> to vector<1x26xf32>
    %cst_23 = arith.constant 0.001953125 : f32
    %39 = vector.broadcast %cst_23 : f32 to vector<1x26xf32>
    %40 = arith.mulf %35, %39 : vector<1x26xf32>
    %cst_24 = arith.constant 0.001953125 : f32
    %41 = vector.broadcast %cst_24 : f32 to vector<1x26xf32>
    %42 = arith.mulf %38, %41 : vector<1x26xf32>
    %43 = arith.mulf %40, %40 : vector<1x26xf32>
    %44 = arith.subf %42, %43 : vector<1x26xf32>
    %cst_25 = arith.constant 9.99999974E-6 : f32
    %45 = vector.broadcast %cst_25 : f32 to vector<1x26xf32>
    %46 = arith.addf %44, %45 : vector<1x26xf32>
    %47 = math.rsqrt %46 : vector<1x26xf32>
    %48 = arith.mulf %32, %47 : vector<1x26xf32>
    %49 = arith.mulf %40, %48 : vector<1x26xf32>
    %50 = arith.subf %33, %49 : vector<1x26xf32>
    %51 = vector.broadcast %48 : vector<1x26xf32> to vector<512x26xf32>
    %52 = arith.mulf %31, %51 : vector<512x26xf32>
    %53 = vector.broadcast %50 : vector<1x26xf32> to vector<512x26xf32>
    %54 = arith.addf %52, %53 : vector<512x26xf32>
    %cst_26 = arith.constant 0.000000e+00 : f32
    %55 = vector.broadcast %cst_26 : f32 to vector<512x26xf32>
    %56 = arith.maximumf %54, %55 : vector<512x26xf32>
    %57 = vector.shape_cast %56 : vector<512x26xf32> to vector<2x16x16x26xf32>
    %c0_27 = arith.constant 0 : index
    %c0_28 = arith.constant 0 : index
    %c0_29 = arith.constant 0 : index
    %c0_30 = arith.constant 0 : index
    %58 = vector.load %arg10[%c0_27, %c0_28, %c0_29, %c0_30] : memref<2x16x16x26xf32, #tpu.memory_space<vmem>>, vector<2x16x16x26xf32>
    tpu.vector_store %arg10[%c0_27, %c0_28, %c0_29, %c0_30], %57 {strides = array<i32>} : memref<2x16x16x26xf32, #tpu.memory_space<vmem>>, vector<2x16x16x26xf32>,
    %c0_31 = arith.constant 0 : index
    %c0_32 = arith.constant 0 : index
    %c0_33 = arith.constant 0 : index
    %c0_34 = arith.constant 0 : index
    %59 = tpu.strided_load %arg10[%c0_31, %c0_32, %c0_33, %c0_34] {strides = array<i32: 1, 1, 2, 1>} : memref<2x16x16x26xf32, #tpu.memory_space<vmem>>, vector<2x16x8x26xf32>
    %c0_35 = arith.constant 0 : index
    %c0_36 = arith.constant 0 : index
    %c1 = arith.constant 1 : index
    %c0_37 = arith.constant 0 : index
    %60 = tpu.strided_load %arg10[%c0_35, %c0_36, %c1, %c0_37] {strides = array<i32: 1, 1, 2, 1>} : memref<2x16x16x26xf32, #tpu.memory_space<vmem>>, vector<2x16x8x26xf32>
    %cst_38 = arith.constant 0.000000e+00 : f32
    %61 = vector.broadcast %cst_38 : f32 to vector<2x16x1x26xf32>
    %62 = vector.extract_strided_slice %60 {offsets = [0, 0, 0, 0], sizes = [2, 16, 7, 26], strides = [1, 1, 1, 1]} : vector<2x16x8x26xf32> to vector<2x16x7x26xf32>
    %63 = tpu.concatenate %61, %62 in 2 : vector<2x16x1x26xf32>, vector<2x16x7x26xf32> -> vector<2x16x8x26xf32>
    %64 = arith.addf %59, %63 : vector<2x16x8x26xf32>
    %65 = arith.addf %59, %60 : vector<2x16x8x26xf32>
    %66 = vector.extract_strided_slice %59 {offsets = [0, 0, 1, 0], sizes = [2, 16, 7, 26], strides = [1, 1, 1, 1]} : vector<2x16x8x26xf32> to vector<2x16x7x26xf32>
    %67 = tpu.concatenate %66, %61 in 2 : vector<2x16x7x26xf32>, vector<2x16x1x26xf32> -> vector<2x16x8x26xf32>
    %68 = arith.addf %60, %67 : vector<2x16x8x26xf32>
    %cst_39 = arith.constant 0.000000e+00 : f32
    %69 = vector.broadcast %cst_39 : f32 to vector<2x16x8x50xf32>
    %70 = tpu.concatenate %64, %65, %68, %69 in 3 : vector<2x16x8x26xf32>, vector<2x16x8x26xf32>, vector<2x16x8x26xf32>, vector<2x16x8x50xf32> -> vector<2x16x8x128xf32>
    %c0_40 = arith.constant 0 : index
    %c0_41 = arith.constant 0 : index
    %c0_42 = arith.constant 0 : index
    %c0_43 = arith.constant 0 : index
    %71 = vector.load %arg11[%c0_40, %c0_41, %c0_42, %c0_43] : memref<2x16x8x128xf32, #tpu.memory_space<vmem>>, vector<2x16x8x128xf32>
    tpu.vector_store %arg11[%c0_40, %c0_41, %c0_42, %c0_43], %70 {strides = array<i32>} : memref<2x16x8x128xf32, #tpu.memory_space<vmem>>, vector<2x16x8x128xf32>,
    %c0_44 = arith.constant 0 : index
    %c0_45 = arith.constant 0 : index
    %c0_46 = arith.constant 0 : index
    %c0_47 = arith.constant 0 : index
    %72 = tpu.strided_load %arg11[%c0_44, %c0_45, %c0_46, %c0_47] {strides = array<i32: 1, 2, 1, 1>} : memref<2x16x8x128xf32, #tpu.memory_space<vmem>>, vector<2x8x8x128xf32>
    %c0_48 = arith.constant 0 : index
    %c1_49 = arith.constant 1 : index
    %c0_50 = arith.constant 0 : index
    %c0_51 = arith.constant 0 : index
    %73 = tpu.strided_load %arg11[%c0_48, %c1_49, %c0_50, %c0_51] {strides = array<i32: 1, 2, 1, 1>} : memref<2x16x8x128xf32, #tpu.memory_space<vmem>>, vector<2x8x8x128xf32>
    %cst_52 = arith.constant 0.000000e+00 : f32
    %74 = vector.broadcast %cst_52 : f32 to vector<2x1x8x128xf32>
    %75 = vector.extract_strided_slice %73 {offsets = [0, 0, 0, 0], sizes = [2, 7, 8, 128], strides = [1, 1, 1, 1]} : vector<2x8x8x128xf32> to vector<2x7x8x128xf32>
    %76 = tpu.concatenate %74, %75 in 1 : vector<2x1x8x128xf32>, vector<2x7x8x128xf32> -> vector<2x8x8x128xf32>
    %77 = arith.addf %72, %76 : vector<2x8x8x128xf32>
    %78 = arith.addf %72, %73 : vector<2x8x8x128xf32>
    %79 = vector.extract_strided_slice %72 {offsets = [0, 1, 0, 0], sizes = [2, 7, 8, 128], strides = [1, 1, 1, 1]} : vector<2x8x8x128xf32> to vector<2x7x8x128xf32>
    %80 = tpu.concatenate %79, %74 in 1 : vector<2x7x8x128xf32>, vector<2x1x8x128xf32> -> vector<2x8x8x128xf32>
    %81 = arith.addf %73, %80 : vector<2x8x8x128xf32>
    %82 = tpu.concatenate %77, %78, %81 in 3 : vector<2x8x8x128xf32>, vector<2x8x8x128xf32>, vector<2x8x8x128xf32> -> vector<2x8x8x384xf32>
    %83 = vector.shape_cast %82 : vector<2x8x8x384xf32> to vector<128x384xf32>
    %c0_53 = arith.constant 0 : index
    %c0_54 = arith.constant 0 : index
    %84 = vector.load %arg7[%c0_53, %c0_54] : memref<384x39xf32, #tpu.memory_space<vmem>>, vector<384x39xf32>
    %cst_55 = arith.constant dense<0.000000e+00> : vector<128x39xf32>
    %85 = tpu.matmul %83, %84, %cst_55 {dimension_numbers = #tpu.dot_dimension_numbers<[1], [0], [0], [1], [0, 0, 1, 1], [], []>} : vector<128x384xf32>, vector<384x39xf32>, vector<128x39xf32> -> vector<128x39xf32>
    %cst_56 = arith.constant 2.500000e-01 : f32
    %86 = vector.broadcast %cst_56 : f32 to vector<128x39xf32>
    %87 = arith.mulf %86, %85 : vector<128x39xf32>
    %c0_57 = arith.constant 0 : index
    %c0_58 = arith.constant 0 : index
    %88 = vector.load %arg8[%c0_57, %c0_58] : memref<1x39xf32, #tpu.memory_space<vmem>>, vector<1x39xf32>
    %89 = vector.broadcast %88 : vector<1x39xf32> to vector<128x39xf32>
    %90 = arith.addf %87, %89 : vector<128x39xf32>
    %91 = vector.shape_cast %90 : vector<128x39xf32> to vector<2x8x8x39xf32>
    %c0_59 = arith.constant 0 : index
    %c0_60 = arith.constant 0 : index
    %c0_61 = arith.constant 0 : index
    %c0_62 = arith.constant 0 : index
    %92 = tpu.strided_load %arg0[%c0_59, %c0_60, %c0_61, %c0_62] {strides = array<i32: 1, 2, 2, 1>} : memref<2x16x16x65xf32, #tpu.memory_space<vmem>>, vector<2x8x8x65xf32>
    %c0_63 = arith.constant 0 : index
    %c0_64 = arith.constant 0 : index
    %c1_65 = arith.constant 1 : index
    %c0_66 = arith.constant 0 : index
    %93 = tpu.strided_load %arg0[%c0_63, %c0_64, %c1_65, %c0_66] {strides = array<i32: 1, 2, 2, 1>} : memref<2x16x16x65xf32, #tpu.memory_space<vmem>>, vector<2x8x8x65xf32>
    %94 = arith.addf %92, %93 : vector<2x8x8x65xf32>
    %c0_67 = arith.constant 0 : index
    %c1_68 = arith.constant 1 : index
    %c0_69 = arith.constant 0 : index
    %c0_70 = arith.constant 0 : index
    %95 = tpu.strided_load %arg0[%c0_67, %c1_68, %c0_69, %c0_70] {strides = array<i32: 1, 2, 2, 1>} : memref<2x16x16x65xf32, #tpu.memory_space<vmem>>, vector<2x8x8x65xf32>
    %96 = arith.addf %94, %95 : vector<2x8x8x65xf32>
    %c0_71 = arith.constant 0 : index
    %c1_72 = arith.constant 1 : index
    %c1_73 = arith.constant 1 : index
    %c0_74 = arith.constant 0 : index
    %97 = tpu.strided_load %arg0[%c0_71, %c1_72, %c1_73, %c0_74] {strides = array<i32: 1, 2, 2, 1>} : memref<2x16x16x65xf32, #tpu.memory_space<vmem>>, vector<2x8x8x65xf32>
    %98 = arith.addf %96, %97 : vector<2x8x8x65xf32>
    %cst_75 = arith.constant 2.500000e-01 : f32
    %99 = vector.broadcast %cst_75 : f32 to vector<2x8x8x65xf32>
    %100 = arith.mulf %99, %98 : vector<2x8x8x65xf32>
    %cst_76 = arith.constant 0.000000e+00 : f32
    %101 = vector.broadcast %cst_76 : f32 to vector<2x8x8x24xf32>
    %102 = tpu.concatenate %91, %100, %101 in 3 : vector<2x8x8x39xf32>, vector<2x8x8x65xf32>, vector<2x8x8x24xf32> -> vector<2x8x8x128xf32>
    %c0_77 = arith.constant 0 : index
    %c0_78 = arith.constant 0 : index
    %c0_79 = arith.constant 0 : index
    %c0_80 = arith.constant 0 : index
    %103 = vector.load %arg9[%c0_77, %c0_78, %c0_79, %c0_80] : memref<2x8x8x128xf32, #tpu.memory_space<vmem>>, vector<2x8x8x128xf32>
    tpu.vector_store %arg9[%c0_77, %c0_78, %c0_79, %c0_80], %102 {strides = array<i32>} : memref<2x8x8x128xf32, #tpu.memory_space<vmem>>, vector<2x8x8x128xf32>,
    return
  }
}

</mosaic_0001>

<llo_original>
// kernel: dense_block_forward.1
$region0: #{dense_block_forward.1}
  #allocation0 [shape = 'u32[]', space=smem, size = 0x4, offset = 0x4, fixed_abs, tag = 'smem constant byte address 0x4 - core index']
  #allocation1 [shape = 'u32[72,128]{1,0:T(1,128)}', space=vmem, size = 0x9000, scoped, tag = 'internal scratch']
  #allocation2 [shape = 'f32[2,16,16,26]{3,2,1,0:T(8,128)}', space=vmem, size = 0x40000, scoped, tag = 'scratch operand']
  #allocation3 [shape = 'f32[2,16,8,128]{3,2,1,0:T(8,128)}', space=vmem, size = 0x20000, scoped, tag = 'scratch operand']
  %s0 = inlined_call_operand.vmem [shape: f32[2,16,16,65], index: 0, kind: input, shape index: {}]
  %s1 = inlined_call_operand.vmem [shape: f32[1,65], index: 1, kind: input, shape index: {}]
  %s2 = inlined_call_operand.vmem [shape: f32[1,65], index: 2, kind: input, shape index: {}]
  %s3 = inlined_call_operand.vmem [shape: f32[65,26], index: 3, kind: input, shape index: {}]
  %s4 = inlined_call_operand.vmem [shape: f32[1,26], index: 4, kind: input, shape index: {}]
  %s5 = inlined_call_operand.vmem [shape: f32[1,26], index: 5, kind: input, shape index: {}]
  %s6 = inlined_call_operand.vmem [shape: f32[1,26], index: 6, kind: input, shape index: {}]
  %s7 = inlined_call_operand.vmem [shape: f32[384,39], index: 7, kind: input, shape index: {}]
  %s8 = inlined_call_operand.vmem [shape: f32[1,39], index: 8, kind: input, shape index: {}]
  %s9 = inlined_call_operand.vmem [shape: f32[2,8,8,128], index: 9, kind: output, shape index: {}]
  %s10 = sld [smem:[#allocation0]]
  $region46: #{dense_block_forward.1} parent=0
    _
  %s12 = ssub.s32 1, %s10
  %s13 = scalar_select 0, %s12, %s10
  // Predicated region
  $region2: #{dense_block_forward.1} parent=0 // pred_check
    _
  $region3: #{dense_block_forward.1} parent=0 // pred_check_branch
    %15 = sbr.rel (0) target = $region5
  $region4: #{dense_block_forward.1} parent=0 // pred_region
    _
  $region5: #{dense_block_forward.1} parent=0 // pred_fallthru
    _
  // Predicated region
  $region6: #{dense_block_forward.1} parent=0 // pred_check
    _
  $region7: #{dense_block_forward.1} parent=0 // pred_check_branch
    %17 = sbr.rel (0) target = $region9
  $region8: #{dense_block_forward.1} parent=0 // pred_region
    _
  $region9: #{dense_block_forward.1} parent=0 // pred_fallthru
    _
  // Predicated region
  $region10: #{dense_block_forward.1} parent=0 // pred_check
    _
  $region11: #{dense_block_forward.1} parent=0 // pred_check_branch
    %19 = sbr.rel (0) target = $region13
  $region12: #{dense_block_forward.1} parent=0 // pred_region
    _
  $region13: #{dense_block_forward.1} parent=0 // pred_fallthru
    _
  // Predicated region
  $region14: #{dense_block_forward.1} parent=0 // pred_check
    _
  $region15: #{dense_block_forward.1} parent=0 // pred_check_branch
    %21 = sbr.rel (0) target = $region17
  $region16: #{dense_block_forward.1} parent=0 // pred_region
    _
  $region17: #{dense_block_forward.1} parent=0 // pred_fallthru
    _
  // Predicated region
  $region18: #{dense_block_forward.1} parent=0 // pred_check
    _
  $region19: #{dense_block_forward.1} parent=0 // pred_check_branch
    %23 = sbr.rel (0) target = $region21
  $region20: #{dense_block_forward.1} parent=0 // pred_region
    _
  $region21: #{dense_block_forward.1} parent=0 // pred_fallthru
    _
  // Predicated region
  $region22: #{dense_block_forward.1} parent=0 // pred_check
    _
  $region23: #{dense_block_forward.1} parent=0 // pred_check_branch
    %25 = sbr.rel (0) target = $region25
  $region24: #{dense_block_forward.1} parent=0 // pred_region
    _
  $region25: #{dense_block_forward.1} parent=0 // pred_fallthru
    _
  // Predicated region
  $region26: #{dense_block_forward.1} parent=0 // pred_check
    _
  $region27: #{dense_block_forward.1} parent=0 // pred_check_branch
    %27 = sbr.rel (0) target = $region29
  $region28: #{dense_block_forward.1} parent=0 // pred_region
    _
  $region29: #{dense_block_forward.1} parent=0 // pred_fallthru
    _
  // Predicated region
  $region30: #{dense_block_forward.1} parent=0 // pred_check
    _
  $region31: #{dense_block_forward.1} parent=0 // pred_check_branch
    %29 = sbr.rel (0) target = $region33
  $region32: #{dense_block_forward.1} parent=0 // pred_region
    _
  $region33: #{dense_block_forward.1} parent=0 // pred_fallthru
    _
  // Predicated region
  $region34: #{dense_block_forward.1} parent=0 // pred_check
    _
  $region35: #{dense_block_forward.1} parent=0 // pred_check_branch
    %31 = sbr.rel (0) target = $region37
  $region36: #{dense_block_forward.1} parent=0 // pred_region
    _
  $region37: #{dense_block_forward.1} parent=0 // pred_fallthru
    _
  %v32 = vld [vmem:[%s0] sm:$0xff]
  %v33 = vld [vmem:[%s0 + $0x8] sm:$0xff]
  %v34 = vld [vmem:[%s0 + $0x10] sm:$0xff]
  %v35 = vld [vmem:[%s0 + $0x18] sm:$0xff]
  %v36 = vld [vmem:[%s0 + $0x20] sm:$0xff]
  %v37 = vld [vmem:[%s0 + $0x28] sm:$0xff]
  %v38 = vld [vmem:[%s0 + $0x30] sm:$0xff]
  %v39 = vld [vmem:[%s0 + $0x38] sm:$0xff]
  %v40 = vld [vmem:[%s0 + $0x40] sm:$0xff]
  %v41 = vld [vmem:[%s0 + $0x48] sm:$0xff]
  %v42 = vld [vmem:[%s0 + $0x50] sm:$0xff]
  %v43 = vld [vmem:[%s0 + $0x58] sm:$0xff]
  %v44 = vld [vmem:[%s0 + $0x60] sm:$0xff]
  %v45 = vld [vmem:[%s0 + $0x68] sm:$0xff]
  %v46 = vld [vmem:[%s0 + $0x70] sm:$0xff]
  %v47 = vld [vmem:[%s0 + $0x78] sm:$0xff]
  %v48 = vld [vmem:[%s0 + $0x80] sm:$0xff]
  %v49 = vld [vmem:[%s0 + $0x88] sm:$0xff]
  %v50 = vld [vmem:[%s0 + $0x90] sm:$0xff]
  %v51 = vld [vmem:[%s0 + $0x98] sm:$0xff]
  %v52 = vld [vmem:[%s0 + $0xa0] sm:$0xff]
  %v53 = vld [vmem:[%s0 + $0xa8] sm:$0xff]
  %v54 = vld [vmem:[%s0 + $0xb0] sm:$0xff]
  %v55 = vld [vmem:[%s0 + $0xb8] sm:$0xff]
  %v56 = vld [vmem:[%s0 + $0xc0] sm:$0xff]
  %v57 = vld [vmem:[%s0 + $0xc8] sm:$0xff]
  %v58 = vld [vmem:[%s0 + $0xd0] sm:$0xff]
  %v59 = vld [vmem:[%s0 + $0xd8] sm:$0xff]
  %v60 = vld [vmem:[%s0 + $0xe0] sm:$0xff]
  %v61 = vld [vmem:[%s0 + $0xe8] sm:$0xff]
  %v62 = vld [vmem:[%s0 + $0xf0] sm:$0xff]
  %v63 = vld [vmem:[%s0 + $0xf8] sm:$0xff]
  %v64 = vld [vmem:[%s0 + $0x100] sm:$0xff]
  %v65 = vld [vmem:[%s0 + $0x108] sm:$0xff]
  %v66 = vld [vmem:[%s0 + $0x110] sm:$0xff]
  %v67 = vld [vmem:[%s0 + $0x118] sm:$0xff]
  %v68 = vld [vmem:[%s0 + $0x120] sm:$0xff]
  %v69 = vld [vmem:[%s0 + $0x128] sm:$0xff]
  %v70 = vld [vmem:[%s0 + $0x130] sm:$0xff]
  %v71 = vld [vmem:[%s0 + $0x138] sm:$0xff]
  %v72 = vld [vmem:[%s0 + $0x140] sm:$0xff]
  %v73 = vld [vmem:[%s0 + $0x148] sm:$0xff]
  %v74 = vld [vmem:[%s0 + $0x150] sm:$0xff]
  %v75 = vld [vmem:[%s0 + $0x158] sm:$0xff]
  %v76 = vld [vmem:[%s0 + $0x160] sm:$0xff]
  %v77 = vld [vmem:[%s0 + $0x168] sm:$0xff]
  %v78 = vld [vmem:[%s0 + $0x170] sm:$0xff]
  %v79 = vld [vmem:[%s0 + $0x178] sm:$0xff]
  %v80 = vld [vmem:[%s0 + $0x180] sm:$0xff]
  %v81 = vld [vmem:[%s0 + $0x188] sm:$0xff]
  %v82 = vld [vmem:[%s0 + $0x190] sm:$0xff]
  %v83 = vld [vmem:[%s0 + $0x198] sm:$0xff]
  %v84 = vld [vmem:[%s0 + $0x1a0] sm:$0xff]
  %v85 = vld [vmem:[%s0 + $0x1a8] sm:$0xff]
  %v86 = vld [vmem:[%s0 + $0x1b0] sm:$0xff]
  %v87 = vld [vmem:[%s0 + $0x1b8] sm:$0xff]
  %v88 = vld [vmem:[%s0 + $0x1c0] sm:$0xff]
  %v89 = vld [vmem:[%s0 + $0x1c8] sm:$0xff]
  %v90 = vld [vmem:[%s0 + $0x1d0] sm:$0xff]
  %v91 = vld [vmem:[%s0 + $0x1d8] sm:$0xff]
  %v92 = vld [vmem:[%s0 + $0x1e0] sm:$0xff]
  %v93 = vld [vmem:[%s0 + $0x1e8] sm:$0xff]
  %v94 = vld [vmem:[%s0 + $0x1f0] sm:$0xff]
  %v95 = vld [vmem:[%s0 + $0x1f8] sm:$0xff]
  %v96 = vld [vmem:[%s1] sm:$0x1]
  %v97 = vld [vmem:[%s2] sm:$0x1]
  %vm98 = vcmask 531456
  %v99 = vsel %vm98, %v32, 0.0
  %v100 = vsel %vm98, %v33, 0.0
  %v101 = vadd.f32 %v99, %v100
  %v102 = vsel %vm98, %v34, 0.0
  %v103 = vadd.f32 %v101, %v102
  %v104 = vsel %vm98, %v35, 0.0
  %v105 = vadd.f32 %v103, %v104
  %v106 = vsel %vm98, %v36, 0.0
  %v107 = vadd.f32 %v105, %v106
  %v108 = vsel %vm98, %v37, 0.0
  %v109 = vadd.f32 %v107, %v108
  %v110 = vsel %vm98, %v38, 0.0
  %v111 = vadd.f32 %v109, %v110
  %v112 = vsel %vm98, %v39, 0.0
  %v113 = vadd.f32 %v111, %v112
  %v114 = vsel %vm98, %v40, 0.0
  %v115 = vadd.f32 %v113, %v114
  %v116 = vsel %vm98, %v41, 0.0
  %v117 = vadd.f32 %v115, %v116
  %v118 = vsel %vm98, %v42, 0.0
  %v119 = vadd.f32 %v117, %v118
  %v120 = vsel %vm98, %v43, 0.0
  %v121 = vadd.f32 %v119, %v120
  %v122 = vsel %vm98, %v44, 0.0
  %v123 = vadd.f32 %v121, %v122
  %v124 = vsel %vm98, %v45, 0.0
  %v125 = vadd.f32 %v123, %v124
  %v126 = vsel %vm98, %v46, 0.0
  %v127 = vadd.f32 %v125, %v126
  %v128 = vsel %vm98, %v47, 0.0
  %v129 = vadd.f32 %v127, %v128
  %v130 = vsel %vm98, %v48, 0.0
  %v131 = vadd.f32 %v129, %v130
  %v132 = vsel %vm98, %v49, 0.0
  %v133 = vadd.f32 %v131, %v132
  %v134 = vsel %vm98, %v50, 0.0
  %v135 = vadd.f32 %v133, %v134
  %v136 = vsel %vm98, %v51, 0.0
  %v137 = vadd.f32 %v135, %v136
  %v138 = vsel %vm98, %v52, 0.0
  %v139 = vadd.f32 %v137, %v138
  %v140 = vsel %vm98, %v53, 0.0
  %v141 = vadd.f32 %v139, %v140
  %v142 = vsel %vm98, %v54, 0.0
  %v143 = vadd.f32 %v141, %v142
  %v144 = vsel %vm98, %v55, 0.0
  %v145 = vadd.f32 %v143, %v144
  %v146 = vsel %vm98, %v56, 0.0
  %v147 = vadd.f32 %v145, %v146
  %v148 = vsel %vm98, %v57, 0.0
  %v149 = vadd.f32 %v147, %v148
  %v150 = vsel %vm98, %v58, 0.0
  %v151 = vadd.f32 %v149, %v150
  %v152 = vsel %vm98, %v59, 0.0
  %v153 = vadd.f32 %v151, %v152
  %v154 = vsel %vm98, %v60, 0.0
  %v155 = vadd.f32 %v153, %v154
  %v156 = vsel %vm98, %v61, 0.0
  %v157 = vadd.f32 %v155, %v156
  %v158 = vsel %vm98, %v62, 0.0
  %v159 = vadd.f32 %v157, %v158
  %v160 = vsel %vm98, %v63, 0.0
  %v161 = vadd.f32 %v159, %v160
  %v162 = vsel %vm98, %v64, 0.0
  %v163 = vadd.f32 %v161, %v162
  %v164 = vsel %vm98, %v65, 0.0
  %v165 = vadd.f32 %v163, %v164
  %v166 = vsel %vm98, %v66, 0.0
  %v167 = vadd.f32 %v165, %v166
  %v168 = vsel %vm98, %v67, 0.0
  %v169 = vadd.f32 %v167, %v168
  %v170 = vsel %vm98, %v68, 0.0
  %v171 = vadd.f32 %v169, %v170
  %v172 = vsel %vm98, %v69, 0.0
  %v173 = vadd.f32 %v171, %v172
  %v174 = vsel %vm98, %v70, 0.0
  %v175 = vadd.f32 %v173, %v174
  %v176 = vsel %vm98, %v71, 0.0
  %v177 = vadd.f32 %v175, %v176
  %v178 = vsel %vm98, %v72, 0.0
  %v179 = vadd.f32 %v177, %v178
  %v180 = vsel %vm98, %v73, 0.0
  %v181 = vadd.f32 %v179, %v180
  %v182 = vsel %vm98, %v74, 0.0
  %v183 = vadd.f32 %v181, %v182
  %v184 = vsel %vm98, %v75, 0.0
  %v185 = vadd.f32 %v183, %v184
  %v186 = vsel %vm98, %v76, 0.0
  %v187 = vadd.f32 %v185, %v186
  %v188 = vsel %vm98, %v77, 0.0
  %v189 = vadd.f32 %v187, %v188
  %v190 = vsel %vm98, %v78, 0.0
  %v191 = vadd.f32 %v189, %v190
  %v192 = vsel %vm98, %v79, 0.0
  %v193 = vadd.f32 %v191, %v192
  %v194 = vsel %vm98, %v80, 0.0
  %v195 = vadd.f32 %v193, %v194
  %v196 = vsel %vm98, %v81, 0.0
  %v197 = vadd.f32 %v195, %v196
  %v198 = vsel %vm98, %v82, 0.0
  %v199 = vadd.f32 %v197, %v198
  %v200 = vsel %vm98, %v83, 0.0
  %v201 = vadd.f32 %v199, %v200
  %v202 = vsel %vm98, %v84, 0.0
  %v203 = vadd.f32 %v201, %v202
  %v204 = vsel %vm98, %v85, 0.0
  %v205 = vadd.f32 %v203, %v204
  %v206 = vsel %vm98, %v86, 0.0
  %v207 = vadd.f32 %v205, %v206
  %v208 = vsel %vm98, %v87, 0.0
  %v209 = vadd.f32 %v207, %v208
  %v210 = vsel %vm98, %v88, 0.0
  %v211 = vadd.f32 %v209, %v210
  %v212 = vsel %vm98, %v89, 0.0
  %v213 = vadd.f32 %v211, %v212
  %v214 = vsel %vm98, %v90, 0.0
  %v215 = vadd.f32 %v213, %v214
  %v216 = vsel %vm98, %v91, 0.0
  %v217 = vadd.f32 %v215, %v216
  %v218 = vsel %vm98, %v92, 0.0
  %v219 = vadd.f32 %v217, %v218
  %v220 = vsel %vm98, %v93, 0.0
  %v221 = vadd.f32 %v219, %v220
  %v222 = vsel %vm98, %v94, 0.0
  %v223 = vadd.f32 %v221, %v222
  %v224 = vsel %vm98, %v95, 0.0
  %v225 = vadd.f32 %v223, %v224
  %v226 = vrot.slane %v225, 4
  %v227 = vadd.f32 %v225, %v226
  %v228 = vrot.slane %v227, 2
  %v229 = vadd.f32 %v227, %v228
  %v230 = vrot.slane %v229, 1
  %v231 = vadd.f32 %v229, %v230
  %v232 = vmul.f32 %v32, %v32
  %v233 = vmul.f32 %v33, %v33
  %v234 = vmul.f32 %v34, %v34
  %v235 = vmul.f32 %v35, %v35
  %v236 = vmul.f32 %v36, %v36
  %v237 = vmul.f32 %v37, %v37
  %v238 = vmul.f32 %v38, %v38
  %v239 = vmul.f32 %v39, %v39
  %v240 = vmul.f32 %v40, %v40
  %v241 = vmul.f32 %v41, %v41
  %v242 = vmul.f32 %v42, %v42
  %v243 = vmul.f32 %v43, %v43
  %v244 = vmul.f32 %v44, %v44
  %v245 = vmul.f32 %v45, %v45
  %v246 = vmul.f32 %v46, %v46
  %v247 = vmul.f32 %v47, %v47
  %v248 = vmul.f32 %v48, %v48
  %v249 = vmul.f32 %v49, %v49
  %v250 = vmul.f32 %v50, %v50
  %v251 = vmul.f32 %v51, %v51
  %v252 = vmul.f32 %v52, %v52
  %v253 = vmul.f32 %v53, %v53
  %v254 = vmul.f32 %v54, %v54
  %v255 = vmul.f32 %v55, %v55
  %v256 = vmul.f32 %v56, %v56
  %v257 = vmul.f32 %v57, %v57
  %v258 = vmul.f32 %v58, %v58
  %v259 = vmul.f32 %v59, %v59
  %v260 = vmul.f32 %v60, %v60
  %v261 = vmul.f32 %v61, %v61
  %v262 = vmul.f32 %v62, %v62
  %v263 = vmul.f32 %v63, %v63
  %v264 = vmul.f32 %v64, %v64
  %v265 = vmul.f32 %v65, %v65
  %v266 = vmul.f32 %v66, %v66
  %v267 = vmul.f32 %v67, %v67
  %v268 = vmul.f32 %v68, %v68
  %v269 = vmul.f32 %v69, %v69
  %v270 = vmul.f32 %v70, %v70
  %v271 = vmul.f32 %v71, %v71
  %v272 = vmul.f32 %v72, %v72
  %v273 = vmul.f32 %v73, %v73
  %v274 = vmul.f32 %v74, %v74
  %v275 = vmul.f32 %v75, %v75
  %v276 = vmul.f32 %v76, %v76
  %v277 = vmul.f32 %v77, %v77
  %v278 = vmul.f32 %v78, %v78
  %v279 = vmul.f32 %v79, %v79
  %v280 = vmul.f32 %v80, %v80
  %v281 = vmul.f32 %v81, %v81
  %v282 = vmul.f32 %v82, %v82
  %v283 = vmul.f32 %v83, %v83
  %v284 = vmul.f32 %v84, %v84
  %v285 = vmul.f32 %v85, %v85
  %v286 = vmul.f32 %v86, %v86
  %v287 = vmul.f32 %v87, %v87
  %v288 = vmul.f32 %v88, %v88
  %v289 = vmul.f32 %v89, %v89
  %v290 = vmul.f32 %v90, %v90
  %v291 = vmul.f32 %v91, %v91
  %v292 = vmul.f32 %v92, %v92
  %v293 = vmul.f32 %v93, %v93
  %v294 = vmul.f32 %v94, %v94
  %v295 = vmul.f32 %v95, %v95
  %v296 = vsel %vm98, %v232, 0.0
  %v297 = vsel %vm98, %v233, 0.0
  %v298 = vadd.f32 %v296, %v297
  %v299 = vsel %vm98, %v234, 0.0
  %v300 = vadd.f32 %v298, %v299
  %v301 = vsel %vm98, %v235, 0.0
  %v302 = vadd.f32 %v300, %v301
  %v303 = vsel %vm98, %v236, 0.0
  %v304 = vadd.f32 %v302, %v303
  %v305 = vsel %vm98, %v237, 0.0
  %v306 = vadd.f32 %v304, %v305
  %v307 = vsel %vm98, %v238, 0.0
  %v308 = vadd.f32 %v306, %v307
  %v309 = vsel %vm98, %v239, 0.0
  %v310 = vadd.f32 %v308, %v309
  %v311 = vsel %vm98, %v240, 0.0
  %v312 = vadd.f32 %v310, %v311
  %v313 = vsel %vm98, %v241, 0.0
  %v314 = vadd.f32 %v312, %v313
  %v315 = vsel %vm98, %v242, 0.0
  %v316 = vadd.f32 %v314, %v315
  %v317 = vsel %vm98, %v243, 0.0
  %v318 = vadd.f32 %v316, %v317
  %v319 = vsel %vm98, %v244, 0.0
  %v320 = vadd.f32 %v318, %v319
  %v321 = vsel %vm98, %v245, 0.0
  %v322 = vadd.f32 %v320, %v321
  %v323 = vsel %vm98, %v246, 0.0
  %v324 = vadd.f32 %v322, %v323
  %v325 = vsel %vm98, %v247, 0.0
  %v326 = vadd.f32 %v324, %v325
  %v327 = vsel %vm98, %v248, 0.0
  %v328 = vadd.f32 %v326, %v327
  %v329 = vsel %vm98, %v249, 0.0
  %v330 = vadd.f32 %v328, %v329
  %v331 = vsel %vm98, %v250, 0.0
  %v332 = vadd.f32 %v330, %v331
  %v333 = vsel %vm98, %v251, 0.0
  %v334 = vadd.f32 %v332, %v333
  %v335 = vsel %vm98, %v252, 0.0
  %v336 = vadd.f32 %v334, %v335
  %v337 = vsel %vm98, %v253, 0.0
  %v338 = vadd.f32 %v336, %v337
  %v339 = vsel %vm98, %v254, 0.0
  %v340 = vadd.f32 %v338, %v339
  %v341 = vsel %vm98, %v255, 0.0
  %v342 = vadd.f32 %v340, %v341
  %v343 = vsel %vm98, %v256, 0.0
  %v344 = vadd.f32 %v342, %v343
  %v345 = vsel %vm98, %v257, 0.0
  %v346 = vadd.f32 %v344, %v345
  %v347 = vsel %vm98, %v258, 0.0
  %v348 = vadd.f32 %v346, %v347
  %v349 = vsel %vm98, %v259, 0.0
  %v350 = vadd.f32 %v348, %v349
  %v351 = vsel %vm98, %v260, 0.0
  %v352 = vadd.f32 %v350, %v351
  %v353 = vsel %vm98, %v261, 0.0
  %v354 = vadd.f32 %v352, %v353
  %v355 = vsel %vm98, %v262, 0.0
  %v356 = vadd.f32 %v354, %v355
  %v357 = vsel %vm98, %v263, 0.0
  %v358 = vadd.f32 %v356, %v357
  %v359 = vsel %vm98, %v264, 0.0
  %v360 = vadd.f32 %v358, %v359
  %v361 = vsel %vm98, %v265, 0.0
  %v362 = vadd.f32 %v360, %v361
  %v363 = vsel %vm98, %v266, 0.0
  %v364 = vadd.f32 %v362, %v363
  %v365 = vsel %vm98, %v267, 0.0
  %v366 = vadd.f32 %v364, %v365
  %v367 = vsel %vm98, %v268, 0.0
  %v368 = vadd.f32 %v366, %v367
  %v369 = vsel %vm98, %v269, 0.0
  %v370 = vadd.f32 %v368, %v369
  %v371 = vsel %vm98, %v270, 0.0
  %v372 = vadd.f32 %v370, %v371
  %v373 = vsel %vm98, %v271, 0.0
  %v374 = vadd.f32 %v372, %v373
  %v375 = vsel %vm98, %v272, 0.0
  %v376 = vadd.f32 %v374, %v375
  %v377 = vsel %vm98, %v273, 0.0
  %v378 = vadd.f32 %v376, %v377
  %v379 = vsel %vm98, %v274, 0.0
  %v380 = vadd.f32 %v378, %v379
  %v381 = vsel %vm98, %v275, 0.0
  %v382 = vadd.f32 %v380, %v381
  %v383 = vsel %vm98, %v276, 0.0
  %v384 = vadd.f32 %v382, %v383
  %v385 = vsel %vm98, %v277, 0.0
  %v386 = vadd.f32 %v384, %v385
  %v387 = vsel %vm98, %v278, 0.0
  %v388 = vadd.f32 %v386, %v387
  %v389 = vsel %vm98, %v279, 0.0
  %v390 = vadd.f32 %v388, %v389
  %v391 = vsel %vm98, %v280, 0.0
  %v392 = vadd.f32 %v390, %v391
  %v393 = vsel %vm98, %v281, 0.0
  %v394 = vadd.f32 %v392, %v393
  %v395 = vsel %vm98, %v282, 0.0
  %v396 = vadd.f32 %v394, %v395
  %v397 = vsel %vm98, %v283, 0.0
  %v398 = vadd.f32 %v396, %v397
  %v399 = vsel %vm98, %v284, 0.0
  %v400 = vadd.f32 %v398, %v399
  %v401 = vsel %vm98, %v285, 0.0
  %v402 = vadd.f32 %v400, %v401
  %v403 = vsel %vm98, %v286, 0.0
  %v404 = vadd.f32 %v402, %v403
  %v405 = vsel %vm98, %v287, 0.0
  %v406 = vadd.f32 %v404, %v405
  %v407 = vsel %vm98, %v288, 0.0
  %v408 = vadd.f32 %v406, %v407
  %v409 = vsel %vm98, %v289, 0.0
  %v410 = vadd.f32 %v408, %v409
  %v411 = vsel %vm98, %v290, 0.0
  %v412 = vadd.f32 %v410, %v411
  %v413 = vsel %vm98, %v291, 0.0
  %v414 = vadd.f32 %v412, %v413
  %v415 = vsel %vm98, %v292, 0.0
  %v416 = vadd.f32 %v414, %v415
  %v417 = vsel %vm98, %v293, 0.0
  %v418 = vadd.f32 %v416, %v417
  %v419 = vsel %vm98, %v294, 0.0
  %v420 = vadd.f32 %v418, %v419
  %v421 = vsel %vm98, %v295, 0.0
  %v422 = vadd.f32 %v420, %v421
  %v423 = vrot.slane %v422, 4
  %v424 = vadd.f32 %v422, %v423
  %v425 = vrot.slane %v424, 2
  %v426 = vadd.f32 %v424, %v425
  %v427 = vrot.slane %v426, 1
  %v428 = vadd.f32 %v426, %v427
  %v429 = vmul.f32 %v231, 0.001953125
  %v430 = vmul.f32 %v428, 0.001953125
  %v431 = vmul.f32 %v429, %v429
  %v432 = vsub.f32 %v430, %v431
  %v433 = vadd.f32 %v432, 1e-05
  %v434 = vrsqrt.pop %v433
  %v435 = vmul.f32 %v434, %v433
  %v436 = vmul.f32 %v435, %v434
  %v437 = vmul.f32 0.5, %v436
  %v438 = vsub.f32 1.5, %v437
  %v439 = vmul.f32 %v434, %v438
  %vm440 = vweird.f32 %v433
  %vm441 = vweird.f32 %v434
  %vm442 = vmor %vm440, %vm441
  %v443 = vsel %vm442, %v434, %v439
  %v444 = vmul.f32 %v96, %v443
  %v445 = vmul.f32 %v429, %v444
  %v446 = vsub.f32 %v97, %v445
  %v448 = vperm.slane %v444, 0
  %v450 = vmul.f32 %v32, %v448
  %v451 = vmul.f32 %v33, %v448
  %v452 = vmul.f32 %v34, %v448
  %v453 = vmul.f32 %v35, %v448
  %v454 = vmul.f32 %v36, %v448
  %v455 = vmul.f32 %v37, %v448
  %v456 = vmul.f32 %v38, %v448
  %v457 = vmul.f32 %v39, %v448
  %v458 = vmul.f32 %v40, %v448
  %v459 = vmul.f32 %v41, %v448
  %v460 = vmul.f32 %v42, %v448
  %v461 = vmul.f32 %v43, %v448
  %v462 = vmul.f32 %v44, %v448
  %v463 = vmul.f32 %v45, %v448
  %v464 = vmul.f32 %v46, %v448
  %v465 = vmul.f32 %v47, %v448
  %v466 = vmul.f32 %v48, %v448
  %v467 = vmul.f32 %v49, %v448
  %v468 = vmul.f32 %v50, %v448
  %v469 = vmul.f32 %v51, %v448
  %v470 = vmul.f32 %v52, %v448
  %v471 = vmul.f32 %v53, %v448
  %v472 = vmul.f32 %v54, %v448
  %v473 = vmul.f32 %v55, %v448
  %v474 = vmul.f32 %v56, %v448
  %v475 = vmul.f32 %v57, %v448
  %v476 = vmul.f32 %v58, %v448
  %v477 = vmul.f32 %v59, %v448
  %v478 = vmul.f32 %v60, %v448
  %v479 = vmul.f32 %v61, %v448
  %v480 = vmul.f32 %v62, %v448
  %v481 = vmul.f32 %v63, %v448
  %v482 = vmul.f32 %v64, %v448
  %v483 = vmul.f32 %v65, %v448
  %v484 = vmul.f32 %v66, %v448
  %v485 = vmul.f32 %v67, %v448
  %v486 = vmul.f32 %v68, %v448
  %v487 = vmul.f32 %v69, %v448
  %v488 = vmul.f32 %v70, %v448
  %v489 = vmul.f32 %v71, %v448
  %v490 = vmul.f32 %v72, %v448
  %v491 = vmul.f32 %v73, %v448
  %v492 = vmul.f32 %v74, %v448
  %v493 = vmul.f32 %v75, %v448
  %v494 = vmul.f32 %v76, %v448
  %v495 = vmul.f32 %v77, %v448
  %v496 = vmul.f32 %v78, %v448
  %v497 = vmul.f32 %v79, %v448
  %v498 = vmul.f32 %v80, %v448
  %v499 = vmul.f32 %v81, %v448
  %v500 = vmul.f32 %v82, %v448
  %v501 = vmul.f32 %v83, %v448
  %v502 = vmul.f32 %v84, %v448
  %v503 = vmul.f32 %v85, %v448
  %v504 = vmul.f32 %v86, %v448
  %v505 = vmul.f32 %v87, %v448
  %v506 = vmul.f32 %v88, %v448
  %v507 = vmul.f32 %v89, %v448
  %v508 = vmul.f32 %v90, %v448
  %v509 = vmul.f32 %v91, %v448
  %v510 = vmul.f32 %v92, %v448
  %v511 = vmul.f32 %v93, %v448
  %v512 = vmul.f32 %v94, %v448
  %v513 = vmul.f32 %v95, %v448
  %v515 = vperm.slane %v446, 0
  %v517 = vadd.f32 %v450, %v515
  %v518 = vadd.f32 %v451, %v515
  %v519 = vadd.f32 %v452, %v515
  %v520 = vadd.f32 %v453, %v515
  %v521 = vadd.f32 %v454, %v515
  %v522 = vadd.f32 %v455, %v515
  %v523 = vadd.f32 %v456, %v515
  %v524 = vadd.f32 %v457, %v515
  %v525 = vadd.f32 %v458, %v515
  %v526 = vadd.f32 %v459, %v515
  %v527 = vadd.f32 %v460, %v515
  %v528 = vadd.f32 %v461, %v515
  %v529 = vadd.f32 %v462, %v515
  %v530 = vadd.f32 %v463, %v515
  %v531 = vadd.f32 %v464, %v515
  %v532 = vadd.f32 %v465, %v515
  %v533 = vadd.f32 %v466, %v515
  %v534 = vadd.f32 %v467, %v515
  %v535 = vadd.f32 %v468, %v515
  %v536 = vadd.f32 %v469, %v515
  %v537 = vadd.f32 %v470, %v515
  %v538 = vadd.f32 %v471, %v515
  %v539 = vadd.f32 %v472, %v515
  %v540 = vadd.f32 %v473, %v515
  %v541 = vadd.f32 %v474, %v515
  %v542 = vadd.f32 %v475, %v515
  %v543 = vadd.f32 %v476, %v515
  %v544 = vadd.f32 %v477, %v515
  %v545 = vadd.f32 %v478, %v515
  %v546 = vadd.f32 %v479, %v515
  %v547 = vadd.f32 %v480, %v515
  %v548 = vadd.f32 %v481, %v515
  %v549 = vadd.f32 %v482, %v515
  %v550 = vadd.f32 %v483, %v515
  %v551 = vadd.f32 %v484, %v515
  %v552 = vadd.f32 %v485, %v515
  %v553 = vadd.f32 %v486, %v515
  %v554 = vadd.f32 %v487, %v515
  %v555 = vadd.f32 %v488, %v515
  %v556 = vadd.f32 %v489, %v515
  %v557 = vadd.f32 %v490, %v515
  %v558 = vadd.f32 %v491, %v515
  %v559 = vadd.f32 %v492, %v515
  %v560 = vadd.f32 %v493, %v515
  %v561 = vadd.f32 %v494, %v515
  %v562 = vadd.f32 %v495, %v515
  %v563 = vadd.f32 %v496, %v515
  %v564 = vadd.f32 %v497, %v515
  %v565 = vadd.f32 %v498, %v515
  %v566 = vadd.f32 %v499, %v515
  %v567 = vadd.f32 %v500, %v515
  %v568 = vadd.f32 %v501, %v515
  %v569 = vadd.f32 %v502, %v515
  %v570 = vadd.f32 %v503, %v515
  %v571 = vadd.f32 %v504, %v515
  %v572 = vadd.f32 %v505, %v515
  %v573 = vadd.f32 %v506, %v515
  %v574 = vadd.f32 %v507, %v515
  %v575 = vadd.f32 %v508, %v515
  %v576 = vadd.f32 %v509, %v515
  %v577 = vadd.f32 %v510, %v515
  %v578 = vadd.f32 %v511, %v515
  %v579 = vadd.f32 %v512, %v515
  %v580 = vadd.f32 %v513, %v515
  %v581 = vmax.f32 %v517, 0.0
  %v582 = vmax.f32 %v518, 0.0
  %v583 = vmax.f32 %v519, 0.0
  %v584 = vmax.f32 %v520, 0.0
  %v585 = vmax.f32 %v521, 0.0
  %v586 = vmax.f32 %v522, 0.0
  %v587 = vmax.f32 %v523, 0.0
  %v588 = vmax.f32 %v524, 0.0
  %v589 = vmax.f32 %v525, 0.0
  %v590 = vmax.f32 %v526, 0.0
  %v591 = vmax.f32 %v527, 0.0
  %v592 = vmax.f32 %v528, 0.0
  %v593 = vmax.f32 %v529, 0.0
  %v594 = vmax.f32 %v530, 0.0
  %v595 = vmax.f32 %v531, 0.0
  %v596 = vmax.f32 %v532, 0.0
  %v597 = vmax.f32 %v533, 0.0
  %v598 = vmax.f32 %v534, 0.0
  %v599 = vmax.f32 %v535, 0.0
  %v600 = vmax.f32 %v536, 0.0
  %v601 = vmax.f32 %v537, 0.0
  %v602 = vmax.f32 %v538, 0.0
  %v603 = vmax.f32 %v539, 0.0
  %v604 = vmax.f32 %v540, 0.0
  %v605 = vmax.f32 %v541, 0.0
  %v606 = vmax.f32 %v542, 0.0
  %v607 = vmax.f32 %v543, 0.0
  %v608 = vmax.f32 %v544, 0.0
  %v609 = vmax.f32 %v545, 0.0
  %v610 = vmax.f32 %v546, 0.0
  %v611 = vmax.f32 %v547, 0.0
  %v612 = vmax.f32 %v548, 0.0
  %v613 = vmax.f32 %v549, 0.0
  %v614 = vmax.f32 %v550, 0.0
  %v615 = vmax.f32 %v551, 0.0
  %v616 = vmax.f32 %v552, 0.0
  %v617 = vmax.f32 %v553, 0.0
  %v618 = vmax.f32 %v554, 0.0
  %v619 = vmax.f32 %v555, 0.0
  %v620 = vmax.f32 %v556, 0.0
  %v621 = vmax.f32 %v557, 0.0
  %v622 = vmax.f32 %v558, 0.0
  %v623 = vmax.f32 %v559, 0.0
  %v624 = vmax.f32 %v560, 0.0
  %v625 = vmax.f32 %v561, 0.0
  %v626 = vmax.f32 %v562, 0.0
  %v627 = vmax.f32 %v563, 0.0
  %v628 = vmax.f32 %v564, 0.0
  %v629 = vmax.f32 %v565, 0.0
  %v630 = vmax.f32 %v566, 0.0
  %v631 = vmax.f32 %v567, 0.0
  %v632 = vmax.f32 %v568, 0.0
  %v633 = vmax.f32 %v569, 0.0
  %v634 = vmax.f32 %v570, 0.0
  %v635 = vmax.f32 %v571, 0.0
  %v636 = vmax.f32 %v572, 0.0
  %v637 = vmax.f32 %v573, 0.0
  %v638 = vmax.f32 %v574, 0.0
  %v639 = vmax.f32 %v575, 0.0
  %v640 = vmax.f32 %v576, 0.0
  %v641 = vmax.f32 %v577, 0.0
  %v642 = vmax.f32 %v578, 0.0
  %v643 = vmax.f32 %v579, 0.0
  %v644 = vmax.f32 %v580, 0.0
  %v645 = vld [vmem:[%s3] sm:$0xff]
  %v646 = vld [vmem:[%s3 + $0x8] sm:$0xff]
  %v647 = vld [vmem:[%s3 + $0x10] sm:$0xff]
  %v648 = vld [vmem:[%s3 + $0x18] sm:$0xff]
  %v649 = vld [vmem:[%s3 + $0x20] sm:$0xff]
  %v650 = vld [vmem:[%s3 + $0x28] sm:$0xff]
  %v651 = vld [vmem:[%s3 + $0x30] sm:$0xff]
  %v652 = vld [vmem:[%s3 + $0x38] sm:$0xff]
  %v653 = vld [vmem:[%s3 + $0x40] sm:$0x1]
  %v654 = vld [vmem:[%s4] sm:$0x1]
  %v656 = vperm.slane %v654, 0
  %v659 = vsel %vm98, %v581, 0
  %v662 = vsel %vm98, %v582, 0
  %v665 = vsel %vm98, %v583, 0
  %v668 = vsel %vm98, %v584, 0
  %v671 = vsel %vm98, %v585, 0
  %v674 = vsel %vm98, %v586, 0
  %v677 = vsel %vm98, %v587, 0
  %v680 = vsel %vm98, %v588, 0
  %v683 = vsel %vm98, %v589, 0
  %v686 = vsel %vm98, %v590, 0
  %v689 = vsel %vm98, %v591, 0
  %v692 = vsel %vm98, %v592, 0
  %v695 = vsel %vm98, %v593, 0
  %v698 = vsel %vm98, %v594, 0
  %v701 = vsel %vm98, %v595, 0
  %v704 = vsel %vm98, %v596, 0
  %v707 = vsel %vm98, %v597, 0
  %v710 = vsel %vm98, %v598, 0
  %v713 = vsel %vm98, %v599, 0
  %v716 = vsel %vm98, %v600, 0
  %v719 = vsel %vm98, %v601, 0
  %v722 = vsel %vm98, %v602, 0
  %v725 = vsel %vm98, %v603, 0
  %v728 = vsel %vm98, %v604, 0
  %v731 = vsel %vm98, %v605, 0
  %v734 = vsel %vm98, %v606, 0
  %v737 = vsel %vm98, %v607, 0
  %v740 = vsel %vm98, %v608, 0
  %v743 = vsel %vm98, %v609, 0
  %v746 = vsel %vm98, %v610, 0
  %v749 = vsel %vm98, %v611, 0
  %v752 = vsel %vm98, %v612, 0
  %v755 = vsel %vm98, %v613, 0
  %v758 = vsel %vm98, %v614, 0
  %v761 = vsel %vm98, %v615, 0
  %v764 = vsel %vm98, %v616, 0
  %v767 = vsel %vm98, %v617, 0
  %v770 = vsel %vm98, %v618, 0
  %v773 = vsel %vm98, %v619, 0
  %v776 = vsel %vm98, %v620, 0
  %v779 = vsel %vm98, %v621, 0
  %v782 = vsel %vm98, %v622, 0
  %v785 = vsel %vm98, %v623, 0
  %v788 = vsel %vm98, %v624, 0
  %v791 = vsel %vm98, %v625, 0
  %v794 = vsel %vm98, %v626, 0
  %v797 = vsel %vm98, %v627, 0
  %v800 = vsel %vm98, %v628, 0
  %v803 = vsel %vm98, %v629, 0
  %v806 = vsel %vm98, %v630, 0
  %v809 = vsel %vm98, %v631, 0
  %v812 = vsel %vm98, %v632, 0
  %v815 = vsel %vm98, %v633, 0
  %v818 = vsel %vm98, %v634, 0
  %v821 = vsel %vm98, %v635, 0
  %v824 = vsel %vm98, %v636, 0
  %v827 = vsel %vm98, %v637, 0
  %v830 = vsel %vm98, %v638, 0
  %v833 = vsel %vm98, %v639, 0
  %v836 = vsel %vm98, %v640, 0
  %v839 = vsel %vm98, %v641, 0
  %v842 = vsel %vm98, %v642, 0
  %v845 = vsel %vm98, %v643, 0
  %v848 = vsel %vm98, %v644, 0
  %vm850 = vcmask 1040384
  %v852 = vsel %vm850, %v653, 0
  %854 = vmatpush.msra.mxu0 0.0
  %855 = vmatpush.msra.mxu0 0.0
  %856 = vmatpush.msra.mxu0 0.0
  %857 = vmatpush.msra.mxu0 0.0
  %858 = vmatpush.msra.mxu0 0.0
  %859 = vmatpush.msra.mxu0 0.0
  %860 = vmatpush.msra.mxu0 0.0
  %861 = vmatpush.msra.mxu0 %v852
  %862 = vmatpush.msra.mxu0 %v652
  %863 = vmatpush.msra.mxu0 %v651
  %864 = vmatpush.msra.mxu0 %v650
  %865 = vmatpush.msra.mxu0 %v649
  %866 = vmatpush.msra.mxu0 %v648
  %867 = vmatpush.msra.mxu0 %v647
  %868 = vmatpush.msra.mxu0 %v646
  %869 = vmatpush.msra.mxu0 %v645
  %870 = vmatmul.f32.gmra.mxu0 %v659
  %v871 = vpop.f32.mrf.mxu0
  %v872 = vadd.f32 %v656, %v871
  %873 = vmatmul.f32.gmra.mxu0 %v662
  %v874 = vpop.f32.mrf.mxu0
  %v875 = vadd.f32 %v656, %v874
  %876 = vmatmul.f32.gmra.mxu0 %v665
  %v877 = vpop.f32.mrf.mxu0
  %v878 = vadd.f32 %v656, %v877
  %879 = vmatmul.f32.gmra.mxu0 %v668
  %v880 = vpop.f32.mrf.mxu0
  %v881 = vadd.f32 %v656, %v880
  %882 = vmatmul.f32.gmra.mxu0 %v671
  %v883 = vpop.f32.mrf.mxu0
  %v884 = vadd.f32 %v656, %v883
  %885 = vmatmul.f32.gmra.mxu0 %v674
  %v886 = vpop.f32.mrf.mxu0
  %v887 = vadd.f32 %v656, %v886
  %888 = vmatmul.f32.gmra.mxu0 %v677
  %v889 = vpop.f32.mrf.mxu0
  %v890 = vadd.f32 %v656, %v889
  %891 = vmatmul.f32.gmra.mxu0 %v680
  %v892 = vpop.f32.mrf.mxu0
  %v893 = vadd.f32 %v656, %v892
  %894 = vmatmul.f32.gmra.mxu0 %v683
  %v895 = vpop.f32.mrf.mxu0
  %v896 = vadd.f32 %v656, %v895
  %897 = vmatmul.f32.gmra.mxu0 %v686
  %v898 = vpop.f32.mrf.mxu0
  %v899 = vadd.f32 %v656, %v898
  %900 = vmatmul.f32.gmra.mxu0 %v689
  %v901 = vpop.f32.mrf.mxu0
  %v902 = vadd.f32 %v656, %v901
  %903 = vmatmul.f32.gmra.mxu0 %v692
  %v904 = vpop.f32.mrf.mxu0
  %v905 = vadd.f32 %v656, %v904
  %906 = vmatmul.f32.gmra.mxu0 %v695
  %v907 = vpop.f32.mrf.mxu0
  %v908 = vadd.f32 %v656, %v907
  %909 = vmatmul.f32.gmra.mxu0 %v698
  %v910 = vpop.f32.mrf.mxu0
  %v911 = vadd.f32 %v656, %v910
  %912 = vmatmul.f32.gmra.mxu0 %v701
  %v913 = vpop.f32.mrf.mxu0
  %v914 = vadd.f32 %v656, %v913
  %915 = vmatmul.f32.gmra.mxu0 %v704
  %v916 = vpop.f32.mrf.mxu0
  %v917 = vadd.f32 %v656, %v916
  %918 = vmatmul.f32.gmra.mxu0 %v707
  %v919 = vpop.f32.mrf.mxu0
  %v920 = vadd.f32 %v656, %v919
  %921 = vmatmul.f32.gmra.mxu0 %v710
  %v922 = vpop.f32.mrf.mxu0
  %v923 = vadd.f32 %v656, %v922
  %924 = vmatmul.f32.gmra.mxu0 %v713
  %v925 = vpop.f32.mrf.mxu0
  %v926 = vadd.f32 %v656, %v925
  %927 = vmatmul.f32.gmra.mxu0 %v716
  %v928 = vpop.f32.mrf.mxu0
  %v929 = vadd.f32 %v656, %v928
  %930 = vmatmul.f32.gmra.mxu0 %v719
  %v931 = vpop.f32.mrf.mxu0
  %v932 = vadd.f32 %v656, %v931
  %933 = vmatmul.f32.gmra.mxu0 %v722
  %v934 = vpop.f32.mrf.mxu0
  %v935 = vadd.f32 %v656, %v934
  %936 = vmatmul.f32.gmra.mxu0 %v725
  %v937 = vpop.f32.mrf.mxu0
  %v938 = vadd.f32 %v656, %v937
  %939 = vmatmul.f32.gmra.mxu0 %v728
  %v940 = vpop.f32.mrf.mxu0
  %v941 = vadd.f32 %v656, %v940
  %942 = vmatmul.f32.gmra.mxu0 %v731
  %v943 = vpop.f32.mrf.mxu0
  %v944 = vadd.f32 %v656, %v943
  %945 = vmatmul.f32.gmra.mxu0 %v734
  %v946 = vpop.f32.mrf.mxu0
  %v947 = vadd.f32 %v656, %v946
  %948 = vmatmul.f32.gmra.mxu0 %v737
  %v949 = vpop.f32.mrf.mxu0
  %v950 = vadd.f32 %v656, %v949
  %951 = vmatmul.f32.gmra.mxu0 %v740
  %v952 = vpop.f32.mrf.mxu0
  %v953 = vadd.f32 %v656, %v952
  %954 = vmatmul.f32.gmra.mxu0 %v743
  %v955 = vpop.f32.mrf.mxu0
  %v956 = vadd.f32 %v656, %v955
  %957 = vmatmul.f32.gmra.mxu0 %v746
  %v958 = vpop.f32.mrf.mxu0
  %v959 = vadd.f32 %v656, %v958
  %960 = vmatmul.f32.gmra.mxu0 %v749
  %v961 = vpop.f32.mrf.mxu0
  %v962 = vadd.f32 %v656, %v961
  %963 = vmatmul.f32.gmra.mxu0 %v752
  %v964 = vpop.f32.mrf.mxu0
  %v965 = vadd.f32 %v656, %v964
  %966 = vmatmul.f32.gmra.mxu0 %v755
  %v967 = vpop.f32.mrf.mxu0
  %v968 = vadd.f32 %v656, %v967
  %969 = vmatmul.f32.gmra.mxu0 %v758
  %v970 = vpop.f32.mrf.mxu0
  %v971 = vadd.f32 %v656, %v970
  %972 = vmatmul.f32.gmra.mxu0 %v761
  %v973 = vpop.f32.mrf.mxu0
  %v974 = vadd.f32 %v656, %v973
  %975 = vmatmul.f32.gmra.mxu0 %v764
  %v976 = vpop.f32.mrf.mxu0
  %v977 = vadd.f32 %v656, %v976
  %978 = vmatmul.f32.gmra.mxu0 %v767
  %v979 = vpop.f32.mrf.mxu0
  %v980 = vadd.f32 %v656, %v979
  %981 = vmatmul.f32.gmra.mxu0 %v770
  %v982 = vpop.f32.mrf.mxu0
  %v983 = vadd.f32 %v656, %v982
  %984 = vmatmul.f32.gmra.mxu0 %v773
  %v985 = vpop.f32.mrf.mxu0
  %v986 = vadd.f32 %v656, %v985
  %987 = vmatmul.f32.gmra.mxu0 %v776
  %v988 = vpop.f32.mrf.mxu0
  %v989 = vadd.f32 %v656, %v988
  %990 = vmatmul.f32.gmra.mxu0 %v779
  %v991 = vpop.f32.mrf.mxu0
  %v992 = vadd.f32 %v656, %v991
  %993 = vmatmul.f32.gmra.mxu0 %v782
  %v994 = vpop.f32.mrf.mxu0
  %v995 = vadd.f32 %v656, %v994
  %996 = vmatmul.f32.gmra.mxu0 %v785
  %v997 = vpop.f32.mrf.mxu0
  %v998 = vadd.f32 %v656, %v997
  %999 = vmatmul.f32.gmra.mxu0 %v788
  %v1000 = vpop.f32.mrf.mxu0
  %v1001 = vadd.f32 %v656, %v1000
  %1002 = vmatmul.f32.gmra.mxu0 %v791
  %v1003 = vpop.f32.mrf.mxu0
  %v1004 = vadd.f32 %v656, %v1003
  %1005 = vmatmul.f32.gmra.mxu0 %v794
  %v1006 = vpop.f32.mrf.mxu0
  %v1007 = vadd.f32 %v656, %v1006
  %1008 = vmatmul.f32.gmra.mxu0 %v797
  %v1009 = vpop.f32.mrf.mxu0
  %v1010 = vadd.f32 %v656, %v1009
  %1011 = vmatmul.f32.gmra.mxu0 %v800
  %v1012 = vpop.f32.mrf.mxu0
  %v1013 = vadd.f32 %v656, %v1012
  %1014 = vmatmul.f32.gmra.mxu0 %v803
  %v1015 = vpop.f32.mrf.mxu0
  %v1016 = vadd.f32 %v656, %v1015
  %1017 = vmatmul.f32.gmra.mxu0 %v806
  %v1018 = vpop.f32.mrf.mxu0
  %v1019 = vadd.f32 %v656, %v1018
  %1020 = vmatmul.f32.gmra.mxu0 %v809
  %v1021 = vpop.f32.mrf.mxu0
  %v1022 = vadd.f32 %v656, %v1021
  %1023 = vmatmul.f32.gmra.mxu0 %v812
  %v1024 = vpop.f32.mrf.mxu0
  %v1025 = vadd.f32 %v656, %v1024
  %1026 = vmatmul.f32.gmra.mxu0 %v815
  %v1027 = vpop.f32.mrf.mxu0
  %v1028 = vadd.f32 %v656, %v1027
  %1029 = vmatmul.f32.gmra.mxu0 %v818
  %v1030 = vpop.f32.mrf.mxu0
  %v1031 = vadd.f32 %v656, %v1030
  %1032 = vmatmul.f32.gmra.mxu0 %v821
  %v1033 = vpop.f32.mrf.mxu0
  %v1034 = vadd.f32 %v656, %v1033
  %1035 = vmatmul.f32.gmra.mxu0 %v824
  %v1036 = vpop.f32.mrf.mxu0
  %v1037 = vadd.f32 %v656, %v1036
  %1038 = vmatmul.f32.gmra.mxu0 %v827
  %v1039 = vpop.f32.mrf.mxu0
  %v1040 = vadd.f32 %v656, %v1039
  %1041 = vmatmul.f32.gmra.mxu0 %v830
  %v1042 = vpop.f32.mrf.mxu0
  %v1043 = vadd.f32 %v656, %v1042
  %1044 = vmatmul.f32.gmra.mxu0 %v833
  %v1045 = vpop.f32.mrf.mxu0
  %v1046 = vadd.f32 %v656, %v1045
  %1047 = vmatmul.f32.gmra.mxu0 %v836
  %v1048 = vpop.f32.mrf.mxu0
  %v1049 = vadd.f32 %v656, %v1048
  %1050 = vmatmul.f32.gmra.mxu0 %v839
  %v1051 = vpop.f32.mrf.mxu0
  %v1052 = vadd.f32 %v656, %v1051
  %1053 = vmatmul.f32.gmra.mxu0 %v842
  %v1054 = vpop.f32.mrf.mxu0
  %v1055 = vadd.f32 %v656, %v1054
  %1056 = vmatmul.f32.gmra.mxu0 %v845
  %v1057 = vpop.f32.mrf.mxu0
  %v1058 = vadd.f32 %v656, %v1057
  %1059 = vmatmul.f32.gmra.mxu0 %v848
  %v1060 = vpop.f32.mrf.mxu0
  %v1061 = vadd.f32 %v656, %v1060
  %1062 = vdwg.mxu0
  %v1063 = vld [vmem:[%s5] sm:$0x1]
  %v1064 = vld [vmem:[%s6] sm:$0x1]
  %vm1065 = vcmask 211968
  %v1066 = vsel %vm1065, %v872, 0.0
  %v1067 = vsel %vm1065, %v875, 0.0
  %v1068 = vadd.f32 %v1066, %v1067
  %v1069 = vsel %vm1065, %v878, 0.0
  %v1070 = vadd.f32 %v1068, %v1069
  %v1071 = vsel %vm1065, %v881, 0.0
  %v1072 = vadd.f32 %v1070, %v1071
  %v1073 = vsel %vm1065, %v884, 0.0
  %v1074 = vadd.f32 %v1072, %v1073
  %v1075 = vsel %vm1065, %v887, 0.0
  %v1076 = vadd.f32 %v1074, %v1075
  %v1077 = vsel %vm1065, %v890, 0.0
  %v1078 = vadd.f32 %v1076, %v1077
  %v1079 = vsel %vm1065, %v893, 0.0
  %v1080 = vadd.f32 %v1078, %v1079
  %v1081 = vsel %vm1065, %v896, 0.0
  %v1082 = vadd.f32 %v1080, %v1081
  %v1083 = vsel %vm1065, %v899, 0.0
  %v1084 = vadd.f32 %v1082, %v1083
  %v1085 = vsel %vm1065, %v902, 0.0
  %v1086 = vadd.f32 %v1084, %v1085
  %v1087 = vsel %vm1065, %v905, 0.0
  %v1088 = vadd.f32 %v1086, %v1087
  %v1089 = vsel %vm1065, %v908, 0.0
  %v1090 = vadd.f32 %v1088, %v1089
  %v1091 = vsel %vm1065, %v911, 0.0
  %v1092 = vadd.f32 %v1090, %v1091
  %v1093 = vsel %vm1065, %v914, 0.0
  %v1094 = vadd.f32 %v1092, %v1093
  %v1095 = vsel %vm1065, %v917, 0.0
  %v1096 = vadd.f32 %v1094, %v1095
  %v1097 = vsel %vm1065, %v920, 0.0
  %v1098 = vadd.f32 %v1096, %v1097
  %v1099 = vsel %vm1065, %v923, 0.0
  %v1100 = vadd.f32 %v1098, %v1099
  %v1101 = vsel %vm1065, %v926, 0.0
  %v1102 = vadd.f32 %v1100, %v1101
  %v1103 = vsel %vm1065, %v929, 0.0
  %v1104 = vadd.f32 %v1102, %v1103
  %v1105 = vsel %vm1065, %v932, 0.0
  %v1106 = vadd.f32 %v1104, %v1105
  %v1107 = vsel %vm1065, %v935, 0.0
  %v1108 = vadd.f32 %v1106, %v1107
  %v1109 = vsel %vm1065, %v938, 0.0
  %v1110 = vadd.f32 %v1108, %v1109
  %v1111 = vsel %vm1065, %v941, 0.0
  %v1112 = vadd.f32 %v1110, %v1111
  %v1113 = vsel %vm1065, %v944, 0.0
  %v1114 = vadd.f32 %v1112, %v1113
  %v1115 = vsel %vm1065, %v947, 0.0
  %v1116 = vadd.f32 %v1114, %v1115
  %v1117 = vsel %vm1065, %v950, 0.0
  %v1118 = vadd.f32 %v1116, %v1117
  %v1119 = vsel %vm1065, %v953, 0.0
  %v1120 = vadd.f32 %v1118, %v1119
  %v1121 = vsel %vm1065, %v956, 0.0
  %v1122 = vadd.f32 %v1120, %v1121
  %v1123 = vsel %vm1065, %v959, 0.0
  %v1124 = vadd.f32 %v1122, %v1123
  %v1125 = vsel %vm1065, %v962, 0.0
  %v1126 = vadd.f32 %v1124, %v1125
  %v1127 = vsel %vm1065, %v965, 0.0
  %v1128 = vadd.f32 %v1126, %v1127
  %v1129 = vsel %vm1065, %v968, 0.0
  %v1130 = vadd.f32 %v1128, %v1129
  %v1131 = vsel %vm1065, %v971, 0.0
  %v1132 = vadd.f32 %v1130, %v1131
  %v1133 = vsel %vm1065, %v974, 0.0
  %v1134 = vadd.f32 %v1132, %v1133
  %v1135 = vsel %vm1065, %v977, 0.0
  %v1136 = vadd.f32 %v1134, %v1135
  %v1137 = vsel %vm1065, %v980, 0.0
  %v1138 = vadd.f32 %v1136, %v1137
  %v1139 = vsel %vm1065, %v983, 0.0
  %v1140 = vadd.f32 %v1138, %v1139
  %v1141 = vsel %vm1065, %v986, 0.0
  %v1142 = vadd.f32 %v1140, %v1141
  %v1143 = vsel %vm1065, %v989, 0.0
  %v1144 = vadd.f32 %v1142, %v1143
  %v1145 = vsel %vm1065, %v992, 0.0
  %v1146 = vadd.f32 %v1144, %v1145
  %v1147 = vsel %vm1065, %v995, 0.0
  %v1148 = vadd.f32 %v1146, %v1147
  %v1149 = vsel %vm1065, %v998, 0.0
  %v1150 = vadd.f32 %v1148, %v1149
  %v1151 = vsel %vm1065, %v1001, 0.0
  %v1152 = vadd.f32 %v1150, %v1151
  %v1153 = vsel %vm1065, %v1004, 0.0
  %v1154 = vadd.f32 %v1152, %v1153
  %v1155 = vsel %vm1065, %v1007, 0.0
  %v1156 = vadd.f32 %v1154, %v1155
  %v1157 = vsel %vm1065, %v1010, 0.0
  %v1158 = vadd.f32 %v1156, %v1157
  %v1159 = vsel %vm1065, %v1013, 0.0
  %v1160 = vadd.f32 %v1158, %v1159
  %v1161 = vsel %vm1065, %v1016, 0.0
  %v1162 = vadd.f32 %v1160, %v1161
  %v1163 = vsel %vm1065, %v1019, 0.0
  %v1164 = vadd.f32 %v1162, %v1163
  %v1165 = vsel %vm1065, %v1022, 0.0
  %v1166 = vadd.f32 %v1164, %v1165
  %v1167 = vsel %vm1065, %v1025, 0.0
  %v1168 = vadd.f32 %v1166, %v1167
  %v1169 = vsel %vm1065, %v1028, 0.0
  %v1170 = vadd.f32 %v1168, %v1169
  %v1171 = vsel %vm1065, %v1031, 0.0
  %v1172 = vadd.f32 %v1170, %v1171
  %v1173 = vsel %vm1065, %v1034, 0.0
  %v1174 = vadd.f32 %v1172, %v1173
  %v1175 = vsel %vm1065, %v1037, 0.0
  %v1176 = vadd.f32 %v1174, %v1175
  %v1177 = vsel %vm1065, %v1040, 0.0
  %v1178 = vadd.f32 %v1176, %v1177
  %v1179 = vsel %vm1065, %v1043, 0.0
  %v1180 = vadd.f32 %v1178, %v1179
  %v1181 = vsel %vm1065, %v1046, 0.0
  %v1182 = vadd.f32 %v1180, %v1181
  %v1183 = vsel %vm1065, %v1049, 0.0
  %v1184 = vadd.f32 %v1182, %v1183
  %v1185 = vsel %vm1065, %v1052, 0.0
  %v1186 = vadd.f32 %v1184, %v1185
  %v1187 = vsel %vm1065, %v1055, 0.0
  %v1188 = vadd.f32 %v1186, %v1187
  %v1189 = vsel %vm1065, %v1058, 0.0
  %v1190 = vadd.f32 %v1188, %v1189
  %v1191 = vsel %vm1065, %v1061, 0.0
  %v1192 = vadd.f32 %v1190, %v1191
  %v1193 = vrot.slane %v1192, 4
  %v1194 = vadd.f32 %v1192, %v1193
  %v1195 = vrot.slane %v1194, 2
  %v1196 = vadd.f32 %v1194, %v1195
  %v1197 = vrot.slane %v1196, 1
  %v1198 = vadd.f32 %v1196, %v1197
  %v1199 = vmul.f32 %v872, %v872
  %v1200 = vmul.f32 %v875, %v875
  %v1201 = vmul.f32 %v878, %v878
  %v1202 = vmul.f32 %v881, %v881
  %v1203 = vmul.f32 %v884, %v884
  %v1204 = vmul.f32 %v887, %v887
  %v1205 = vmul.f32 %v890, %v890
  %v1206 = vmul.f32 %v893, %v893
  %v1207 = vmul.f32 %v896, %v896
  %v1208 = vmul.f32 %v899, %v899
  %v1209 = vmul.f32 %v902, %v902
  %v1210 = vmul.f32 %v905, %v905
  %v1211 = vmul.f32 %v908, %v908
  %v1212 = vmul.f32 %v911, %v911
  %v1213 = vmul.f32 %v914, %v914
  %v1214 = vmul.f32 %v917, %v917
  %v1215 = vmul.f32 %v920, %v920
  %v1216 = vmul.f32 %v923, %v923
  %v1217 = vmul.f32 %v926, %v926
  %v1218 = vmul.f32 %v929, %v929
  %v1219 = vmul.f32 %v932, %v932
  %v1220 = vmul.f32 %v935, %v935
  %v1221 = vmul.f32 %v938, %v938
  %v1222 = vmul.f32 %v941, %v941
  %v1223 = vmul.f32 %v944, %v944
  %v1224 = vmul.f32 %v947, %v947
  %v1225 = vmul.f32 %v950, %v950
  %v1226 = vmul.f32 %v953, %v953
  %v1227 = vmul.f32 %v956, %v956
  %v1228 = vmul.f32 %v959, %v959
  %v1229 = vmul.f32 %v962, %v962
  %v1230 = vmul.f32 %v965, %v965
  %v1231 = vmul.f32 %v968, %v968
  %v1232 = vmul.f32 %v971, %v971
  %v1233 = vmul.f32 %v974, %v974
  %v1234 = vmul.f32 %v977, %v977
  %v1235 = vmul.f32 %v980, %v980
  %v1236 = vmul.f32 %v983, %v983
  %v1237 = vmul.f32 %v986, %v986
  %v1238 = vmul.f32 %v989, %v989
  %v1239 = vmul.f32 %v992, %v992
  %v1240 = vmul.f32 %v995, %v995
  %v1241 = vmul.f32 %v998, %v998
  %v1242 = vmul.f32 %v1001, %v1001
  %v1243 = vmul.f32 %v1004, %v1004
  %v1244 = vmul.f32 %v1007, %v1007
  %v1245 = vmul.f32 %v1010, %v1010
  %v1246 = vmul.f32 %v1013, %v1013
  %v1247 = vmul.f32 %v1016, %v1016
  %v1248 = vmul.f32 %v1019, %v1019
  %v1249 = vmul.f32 %v1022, %v1022
  %v1250 = vmul.f32 %v1025, %v1025
  %v1251 = vmul.f32 %v1028, %v1028
  %v1252 = vmul.f32 %v1031, %v1031
  %v1253 = vmul.f32 %v1034, %v1034
  %v1254 = vmul.f32 %v1037, %v1037
  %v1255 = vmul.f32 %v1040, %v1040
  %v1256 = vmul.f32 %v1043, %v1043
  %v1257 = vmul.f32 %v1046, %v1046
  %v1258 = vmul.f32 %v1049, %v1049
  %v1259 = vmul.f32 %v1052, %v1052
  %v1260 = vmul.f32 %v1055, %v1055
  %v1261 = vmul.f32 %v1058, %v1058
  %v1262 = vmul.f32 %v1061, %v1061
  %v1263 = vsel %vm1065, %v1199, 0.0
  %v1264 = vsel %vm1065, %v1200, 0.0
  %v1265 = vadd.f32 %v1263, %v1264
  %v1266 = vsel %vm1065, %v1201, 0.0
  %v1267 = vadd.f32 %v1265, %v1266
  %v1268 = vsel %vm1065, %v1202, 0.0
  %v1269 = vadd.f32 %v1267, %v1268
  %v1270 = vsel %vm1065, %v1203, 0.0
  %v1271 = vadd.f32 %v1269, %v1270
  %v1272 = vsel %vm1065, %v1204, 0.0
  %v1273 = vadd.f32 %v1271, %v1272
  %v1274 = vsel %vm1065, %v1205, 0.0
  %v1275 = vadd.f32 %v1273, %v1274
  %v1276 = vsel %vm1065, %v1206, 0.0
  %v1277 = vadd.f32 %v1275, %v1276
  %v1278 = vsel %vm1065, %v1207, 0.0
  %v1279 = vadd.f32 %v1277, %v1278
  %v1280 = vsel %vm1065, %v1208, 0.0
  %v1281 = vadd.f32 %v1279, %v1280
  %v1282 = vsel %vm1065, %v1209, 0.0
  %v1283 = vadd.f32 %v1281, %v1282
  %v1284 = vsel %vm1065, %v1210, 0.0
  %v1285 = vadd.f32 %v1283, %v1284
  %v1286 = vsel %vm1065, %v1211, 0.0
  %v1287 = vadd.f32 %v1285, %v1286
  %v1288 = vsel %vm1065, %v1212, 0.0
  %v1289 = vadd.f32 %v1287, %v1288
  %v1290 = vsel %vm1065, %v1213, 0.0
  %v1291 = vadd.f32 %v1289, %v1290
  %v1292 = vsel %vm1065, %v1214, 0.0
  %v1293 = vadd.f32 %v1291, %v1292
  %v1294 = vsel %vm1065, %v1215, 0.0
  %v1295 = vadd.f32 %v1293, %v1294
  %v1296 = vsel %vm1065, %v1216, 0.0
  %v1297 = vadd.f32 %v1295, %v1296
  %v1298 = vsel %vm1065, %v1217, 0.0
  %v1299 = vadd.f32 %v1297, %v1298
  %v1300 = vsel %vm1065, %v1218, 0.0
  %v1301 = vadd.f32 %v1299, %v1300
  %v1302 = vsel %vm1065, %v1219, 0.0
  %v1303 = vadd.f32 %v1301, %v1302
  %v1304 = vsel %vm1065, %v1220, 0.0
  %v1305 = vadd.f32 %v1303, %v1304
  %v1306 = vsel %vm1065, %v1221, 0.0
  %v1307 = vadd.f32 %v1305, %v1306
  %v1308 = vsel %vm1065, %v1222, 0.0
  %v1309 = vadd.f32 %v1307, %v1308
  %v1310 = vsel %vm1065, %v1223, 0.0
  %v1311 = vadd.f32 %v1309, %v1310
  %v1312 = vsel %vm1065, %v1224, 0.0
  %v1313 = vadd.f32 %v1311, %v1312
  %v1314 = vsel %vm1065, %v1225, 0.0
  %v1315 = vadd.f32 %v1313, %v1314
  %v1316 = vsel %vm1065, %v1226, 0.0
  %v1317 = vadd.f32 %v1315, %v1316
  %v1318 = vsel %vm1065, %v1227, 0.0
  %v1319 = vadd.f32 %v1317, %v1318
  %v1320 = vsel %vm1065, %v1228, 0.0
  %v1321 = vadd.f32 %v1319, %v1320
  %v1322 = vsel %vm1065, %v1229, 0.0
  %v1323 = vadd.f32 %v1321, %v1322
  %v1324 = vsel %vm1065, %v1230, 0.0
  %v1325 = vadd.f32 %v1323, %v1324
  %v1326 = vsel %vm1065, %v1231, 0.0
  %v1327 = vadd.f32 %v1325, %v1326
  %v1328 = vsel %vm1065, %v1232, 0.0
  %v1329 = vadd.f32 %v1327, %v1328
  %v1330 = vsel %vm1065, %v1233, 0.0
  %v1331 = vadd.f32 %v1329, %v1330
  %v1332 = vsel %vm1065, %v1234, 0.0
  %v1333 = vadd.f32 %v1331, %v1332
  %v1334 = vsel %vm1065, %v1235, 0.0
  %v1335 = vadd.f32 %v1333, %v1334
  %v1336 = vsel %vm1065, %v1236, 0.0
  %v1337 = vadd.f32 %v1335, %v1336
  %v1338 = vsel %vm1065, %v1237, 0.0
  %v1339 = vadd.f32 %v1337, %v1338
  %v1340 = vsel %vm1065, %v1238, 0.0
  %v1341 = vadd.f32 %v1339, %v1340
  %v1342 = vsel %vm1065, %v1239, 0.0
  %v1343 = vadd.f32 %v1341, %v1342
  %v1344 = vsel %vm1065, %v1240, 0.0
  %v1345 = vadd.f32 %v1343, %v1344
  %v1346 = vsel %vm1065, %v1241, 0.0
  %v1347 = vadd.f32 %v1345, %v1346
  %v1348 = vsel %vm1065, %v1242, 0.0
  %v1349 = vadd.f32 %v1347, %v1348
  %v1350 = vsel %vm1065, %v1243, 0.0
  %v1351 = vadd.f32 %v1349, %v1350
  %v1352 = vsel %vm1065, %v1244, 0.0
  %v1353 = vadd.f32 %v1351, %v1352
  %v1354 = vsel %vm1065, %v1245, 0.0
  %v1355 = vadd.f32 %v1353, %v1354
  %v1356 = vsel %vm1065, %v1246, 0.0
  %v1357 = vadd.f32 %v1355, %v1356
  %v1358 = vsel %vm1065, %v1247, 0.0
  %v1359 = vadd.f32 %v1357, %v1358
  %v1360 = vsel %vm1065, %v1248, 0.0
  %v1361 = vadd.f32 %v1359, %v1360
  %v1362 = vsel %vm1065, %v1249, 0.0
  %v1363 = vadd.f32 %v1361, %v1362
  %v1364 = vsel %vm1065, %v1250, 0.0
  %v1365 = vadd.f32 %v1363, %v1364
  %v1366 = vsel %vm1065, %v1251, 0.0
  %v1367 = vadd.f32 %v1365, %v1366
  %v1368 = vsel %vm1065, %v1252, 0.0
  %v1369 = vadd.f32 %v1367, %v1368
  %v1370 = vsel %vm1065, %v1253, 0.0
  %v1371 = vadd.f32 %v1369, %v1370
  %v1372 = vsel %vm1065, %v1254, 0.0
  %v1373 = vadd.f32 %v1371, %v1372
  %v1374 = vsel %vm1065, %v1255, 0.0
  %v1375 = vadd.f32 %v1373, %v1374
  %v1376 = vsel %vm1065, %v1256, 0.0
  %v1377 = vadd.f32 %v1375, %v1376
  %v1378 = vsel %vm1065, %v1257, 0.0
  %v1379 = vadd.f32 %v1377, %v1378
  %v1380 = vsel %vm1065, %v1258, 0.0
  %v1381 = vadd.f32 %v1379, %v1380
  %v1382 = vsel %vm1065, %v1259, 0.0
  %v1383 = vadd.f32 %v1381, %v1382
  %v1384 = vsel %vm1065, %v1260, 0.0
  %v1385 = vadd.f32 %v1383, %v1384
  %v1386 = vsel %vm1065, %v1261, 0.0
  %v1387 = vadd.f32 %v1385, %v1386
  %v1388 = vsel %vm1065, %v1262, 0.0
  %v1389 = vadd.f32 %v1387, %v1388
  %v1390 = vrot.slane %v1389, 4
  %v1391 = vadd.f32 %v1389, %v1390
  %v1392 = vrot.slane %v1391, 2
  %v1393 = vadd.f32 %v1391, %v1392
  %v1394 = vrot.slane %v1393, 1
  %v1395 = vadd.f32 %v1393, %v1394
  %v1396 = vmul.f32 %v1198, 0.001953125
  %v1397 = vmul.f32 %v1395, 0.001953125
  %v1398 = vmul.f32 %v1396, %v1396
  %v1399 = vsub.f32 %v1397, %v1398
  %v1400 = vadd.f32 %v1399, 1e-05
  %v1401 = vrsqrt.pop %v1400
  %v1402 = vmul.f32 %v1401, %v1400
  %v1403 = vmul.f32 %v1402, %v1401
  %v1404 = vmul.f32 0.5, %v1403
  %v1405 = vsub.f32 1.5, %v1404
  %v1406 = vmul.f32 %v1401, %v1405
  %vm1407 = vweird.f32 %v1400
  %vm1408 = vweird.f32 %v1401
  %vm1409 = vmor %vm1407, %vm1408
  %v1410 = vsel %vm1409, %v1401, %v1406
  %v1411 = vmul.f32 %v1063, %v1410
  %v1412 = vmul.f32 %v1396, %v1411
  %v1413 = vsub.f32 %v1064, %v1412
  %v1415 = vperm.slane %v1411, 0
  %v1417 = vmul.f32 %v872, %v1415
  %v1418 = vmul.f32 %v875, %v1415
  %v1419 = vmul.f32 %v878, %v1415
  %v1420 = vmul.f32 %v881, %v1415
  %v1421 = vmul.f32 %v884, %v1415
  %v1422 = vmul.f32 %v887, %v1415
  %v1423 = vmul.f32 %v890, %v1415
  %v1424 = vmul.f32 %v893, %v1415
  %v1425 = vmul.f32 %v896, %v1415
  %v1426 = vmul.f32 %v899, %v1415
  %v1427 = vmul.f32 %v902, %v1415
  %v1428 = vmul.f32 %v905, %v1415
  %v1429 = vmul.f32 %v908, %v1415
  %v1430 = vmul.f32 %v911, %v1415
  %v1431 = vmul.f32 %v914, %v1415
  %v1432 = vmul.f32 %v917, %v1415
  %v1433 = vmul.f32 %v920, %v1415
  %v1434 = vmul.f32 %v923, %v1415
  %v1435 = vmul.f32 %v926, %v1415
  %v1436 = vmul.f32 %v929, %v1415
  %v1437 = vmul.f32 %v932, %v1415
  %v1438 = vmul.f32 %v935, %v1415
  %v1439 = vmul.f32 %v938, %v1415
  %v1440 = vmul.f32 %v941, %v1415
  %v1441 = vmul.f32 %v944, %v1415
  %v1442 = vmul.f32 %v947, %v1415
  %v1443 = vmul.f32 %v950, %v1415
  %v1444 = vmul.f32 %v953, %v1415
  %v1445 = vmul.f32 %v956, %v1415
  %v1446 = vmul.f32 %v959, %v1415
  %v1447 = vmul.f32 %v962, %v1415
  %v1448 = vmul.f32 %v965, %v1415
  %v1449 = vmul.f32 %v968, %v1415
  %v1450 = vmul.f32 %v971, %v1415
  %v1451 = vmul.f32 %v974, %v1415
  %v1452 = vmul.f32 %v977, %v1415
  %v1453 = vmul.f32 %v980, %v1415
  %v1454 = vmul.f32 %v983, %v1415
  %v1455 = vmul.f32 %v986, %v1415
  %v1456 = vmul.f32 %v989, %v1415
  %v1457 = vmul.f32 %v992, %v1415
  %v1458 = vmul.f32 %v995, %v1415
  %v1459 = vmul.f32 %v998, %v1415
  %v1460 = vmul.f32 %v1001, %v1415
  %v1461 = vmul.f32 %v1004, %v1415
  %v1462 = vmul.f32 %v1007, %v1415
  %v1463 = vmul.f32 %v1010, %v1415
  %v1464 = vmul.f32 %v1013, %v1415
  %v1465 = vmul.f32 %v1016, %v1415
  %v1466 = vmul.f32 %v1019, %v1415
  %v1467 = vmul.f32 %v1022, %v1415
  %v1468 = vmul.f32 %v1025, %v1415
  %v1469 = vmul.f32 %v1028, %v1415
  %v1470 = vmul.f32 %v1031, %v1415
  %v1471 = vmul.f32 %v1034, %v1415
  %v1472 = vmul.f32 %v1037, %v1415
  %v1473 = vmul.f32 %v1040, %v1415
  %v1474 = vmul.f32 %v1043, %v1415
  %v1475 = vmul.f32 %v1046, %v1415
  %v1476 = vmul.f32 %v1049, %v1415
  %v1477 = vmul.f32 %v1052, %v1415
  %v1478 = vmul.f32 %v1055, %v1415
  %v1479 = vmul.f32 %v1058, %v1415
  %v1480 = vmul.f32 %v1061, %v1415
  %v1482 = vperm.slane %v1413, 0
  %v1484 = vadd.f32 %v1417, %v1482
  %v1485 = vadd.f32 %v1418, %v1482
  %v1486 = vadd.f32 %v1419, %v1482
  %v1487 = vadd.f32 %v1420, %v1482
  %v1488 = vadd.f32 %v1421, %v1482
  %v1489 = vadd.f32 %v1422, %v1482
  %v1490 = vadd.f32 %v1423, %v1482
  %v1491 = vadd.f32 %v1424, %v1482
  %v1492 = vadd.f32 %v1425, %v1482
  %v1493 = vadd.f32 %v1426, %v1482
  %v1494 = vadd.f32 %v1427, %v1482
  %v1495 = vadd.f32 %v1428, %v1482
  %v1496 = vadd.f32 %v1429, %v1482
  %v1497 = vadd.f32 %v1430, %v1482
  %v1498 = vadd.f32 %v1431, %v1482
  %v1499 = vadd.f32 %v1432, %v1482
  %v1500 = vadd.f32 %v1433, %v1482
  %v1501 = vadd.f32 %v1434, %v1482
  %v1502 = vadd.f32 %v1435, %v1482
  %v1503 = vadd.f32 %v1436, %v1482
  %v1504 = vadd.f32 %v1437, %v1482
  %v1505 = vadd.f32 %v1438, %v1482
  %v1506 = vadd.f32 %v1439, %v1482
  %v1507 = vadd.f32 %v1440, %v1482
  %v1508 = vadd.f32 %v1441, %v1482
  %v1509 = vadd.f32 %v1442, %v1482
  %v1510 = vadd.f32 %v1443, %v1482
  %v1511 = vadd.f32 %v1444, %v1482
  %v1512 = vadd.f32 %v1445, %v1482
  %v1513 = vadd.f32 %v1446, %v1482
  %v1514 = vadd.f32 %v1447, %v1482
  %v1515 = vadd.f32 %v1448, %v1482
  %v1516 = vadd.f32 %v1449, %v1482
  %v1517 = vadd.f32 %v1450, %v1482
  %v1518 = vadd.f32 %v1451, %v1482
  %v1519 = vadd.f32 %v1452, %v1482
  %v1520 = vadd.f32 %v1453, %v1482
  %v1521 = vadd.f32 %v1454, %v1482
  %v1522 = vadd.f32 %v1455, %v1482
  %v1523 = vadd.f32 %v1456, %v1482
  %v1524 = vadd.f32 %v1457, %v1482
  %v1525 = vadd.f32 %v1458, %v1482
  %v1526 = vadd.f32 %v1459, %v1482
  %v1527 = vadd.f32 %v1460, %v1482
  %v1528 = vadd.f32 %v1461, %v1482
  %v1529 = vadd.f32 %v1462, %v1482
  %v1530 = vadd.f32 %v1463, %v1482
  %v1531 = vadd.f32 %v1464, %v1482
  %v1532 = vadd.f32 %v1465, %v1482
  %v1533 = vadd.f32 %v1466, %v1482
  %v1534 = vadd.f32 %v1467, %v1482
  %v1535 = vadd.f32 %v1468, %v1482
  %v1536 = vadd.f32 %v1469, %v1482
  %v1537 = vadd.f32 %v1470, %v1482
  %v1538 = vadd.f32 %v1471, %v1482
  %v1539 = vadd.f32 %v1472, %v1482
  %v1540 = vadd.f32 %v1473, %v1482
  %v1541 = vadd.f32 %v1474, %v1482
  %v1542 = vadd.f32 %v1475, %v1482
  %v1543 = vadd.f32 %v1476, %v1482
  %v1544 = vadd.f32 %v1477, %v1482
  %v1545 = vadd.f32 %v1478, %v1482
  %v1546 = vadd.f32 %v1479, %v1482
  %v1547 = vadd.f32 %v1480, %v1482
  %v1548 = vmax.f32 %v1484, 0.0
  %v1549 = vmax.f32 %v1485, 0.0
  %v1550 = vmax.f32 %v1486, 0.0
  %v1551 = vmax.f32 %v1487, 0.0
  %v1552 = vmax.f32 %v1488, 0.0
  %v1553 = vmax.f32 %v1489, 0.0
  %v1554 = vmax.f32 %v1490, 0.0
  %v1555 = vmax.f32 %v1491, 0.0
  %v1556 = vmax.f32 %v1492, 0.0
  %v1557 = vmax.f32 %v1493, 0.0
  %v1558 = vmax.f32 %v1494, 0.0
  %v1559 = vmax.f32 %v1495, 0.0
  %v1560 = vmax.f32 %v1496, 0.0
  %v1561 = vmax.f32 %v1497, 0.0
  %v1562 = vmax.f32 %v1498, 0.0
  %v1563 = vmax.f32 %v1499, 0.0
  %v1564 = vmax.f32 %v1500, 0.0
  %v1565 = vmax.f32 %v1501, 0.0
  %v1566 = vmax.f32 %v1502, 0.0
  %v1567 = vmax.f32 %v1503, 0.0
  %v1568 = vmax.f32 %v1504, 0.0
  %v1569 = vmax.f32 %v1505, 0.0
  %v1570 = vmax.f32 %v1506, 0.0
  %v1571 = vmax.f32 %v1507, 0.0
  %v1572 = vmax.f32 %v1508, 0.0
  %v1573 = vmax.f32 %v1509, 0.0
  %v1574 = vmax.f32 %v1510, 0.0
  %v1575 = vmax.f32 %v1511, 0.0
  %v1576 = vmax.f32 %v1512, 0.0
  %v1577 = vmax.f32 %v1513, 0.0
  %v1578 = vmax.f32 %v1514, 0.0
  %v1579 = vmax.f32 %v1515, 0.0
  %v1580 = vmax.f32 %v1516, 0.0
  %v1581 = vmax.f32 %v1517, 0.0
  %v1582 = vmax.f32 %v1518, 0.0
  %v1583 = vmax.f32 %v1519, 0.0
  %v1584 = vmax.f32 %v1520, 0.0
  %v1585 = vmax.f32 %v1521, 0.0
  %v1586 = vmax.f32 %v1522, 0.0
  %v1587 = vmax.f32 %v1523, 0.0
  %v1588 = vmax.f32 %v1524, 0.0
  %v1589 = vmax.f32 %v1525, 0.0
  %v1590 = vmax.f32 %v1526, 0.0
  %v1591 = vmax.f32 %v1527, 0.0
  %v1592 = vmax.f32 %v1528, 0.0
  %v1593 = vmax.f32 %v1529, 0.0
  %v1594 = vmax.f32 %v1530, 0.0
  %v1595 = vmax.f32 %v1531, 0.0
  %v1596 = vmax.f32 %v1532, 0.0
  %v1597 = vmax.f32 %v1533, 0.0
  %v1598 = vmax.f32 %v1534, 0.0
  %v1599 = vmax.f32 %v1535, 0.0
  %v1600 = vmax.f32 %v1536, 0.0
  %v1601 = vmax.f32 %v1537, 0.0
  %v1602 = vmax.f32 %v1538, 0.0
  %v1603 = vmax.f32 %v1539, 0.0
  %v1604 = vmax.f32 %v1540, 0.0
  %v1605 = vmax.f32 %v1541, 0.0
  %v1606 = vmax.f32 %v1542, 0.0
  %v1607 = vmax.f32 %v1543, 0.0
  %v1608 = vmax.f32 %v1544, 0.0
  %v1609 = vmax.f32 %v1545, 0.0
  %v1610 = vmax.f32 %v1546, 0.0
  %v1611 = vmax.f32 %v1547, 0.0
  %1612 = vst.msk [vmem:[#allocation2] sm:$0xff] %vm1065, %v1548
  %1613 = vst.msk [vmem:[#allocation2 + $0x8] sm:$0xff] %vm1065, %v1549
  %1614 = vst.msk [vmem:[#allocation2 + $0x10] sm:$0xff] %vm1065, %v1550
  %1615 = vst.msk [vmem:[#allocation2 + $0x18] sm:$0xff] %vm1065, %v1551
  %1616 = vst.msk [vmem:[#allocation2 + $0x20] sm:$0xff] %vm1065, %v1552
  %1617 = vst.msk [vmem:[#allocation2 + $0x28] sm:$0xff] %vm1065, %v1553
  %1618 = vst.msk [vmem:[#allocation2 + $0x30] sm:$0xff] %vm1065, %v1554
  %1619 = vst.msk [vmem:[#allocation2 + $0x38] sm:$0xff] %vm1065, %v1555
  %1620 = vst.msk [vmem:[#allocation2 + $0x40] sm:$0xff] %vm1065, %v1556
  %1621 = vst.msk [vmem:[#allocation2 + $0x48] sm:$0xff] %vm1065, %v1557
  %1622 = vst.msk [vmem:[#allocation2 + $0x50] sm:$0xff] %vm1065, %v1558
  %1623 = vst.msk [vmem:[#allocation2 + $0x58] sm:$0xff] %vm1065, %v1559
  %1624 = vst.msk [vmem:[#allocation2 + $0x60] sm:$0xff] %vm1065, %v1560
  %1625 = vst.msk [vmem:[#allocation2 + $0x68] sm:$0xff] %vm1065, %v1561
  %1626 = vst.msk [vmem:[#allocation2 + $0x70] sm:$0xff] %vm1065, %v1562
  %1627 = vst.msk [vmem:[#allocation2 + $0x78] sm:$0xff] %vm1065, %v1563
  %1628 = vst.msk [vmem:[#allocation2 + $0x80] sm:$0xff] %vm1065, %v1564
  %1629 = vst.msk [vmem:[#allocation2 + $0x88] sm:$0xff] %vm1065, %v1565
  %1630 = vst.msk [vmem:[#allocation2 + $0x90] sm:$0xff] %vm1065, %v1566
  %1631 = vst.msk [vmem:[#allocation2 + $0x98] sm:$0xff] %vm1065, %v1567
  %1632 = vst.msk [vmem:[#allocation2 + $0xa0] sm:$0xff] %vm1065, %v1568
  %1633 = vst.msk [vmem:[#allocation2 + $0xa8] sm:$0xff] %vm1065, %v1569
  %1634 = vst.msk [vmem:[#allocation2 + $0xb0] sm:$0xff] %vm1065, %v1570
  %1635 = vst.msk [vmem:[#allocation2 + $0xb8] sm:$0xff] %vm1065, %v1571
  %1636 = vst.msk [vmem:[#allocation2 + $0xc0] sm:$0xff] %vm1065, %v1572
  %1637 = vst.msk [vmem:[#allocation2 + $0xc8] sm:$0xff] %vm1065, %v1573
  %1638 = vst.msk [vmem:[#allocation2 + $0xd0] sm:$0xff] %vm1065, %v1574
  %1639 = vst.msk [vmem:[#allocation2 + $0xd8] sm:$0xff] %vm1065, %v1575
  %1640 = vst.msk [vmem:[#allocation2 + $0xe0] sm:$0xff] %vm1065, %v1576
  %1641 = vst.msk [vmem:[#allocation2 + $0xe8] sm:$0xff] %vm1065, %v1577
  %1642 = vst.msk [vmem:[#allocation2 + $0xf0] sm:$0xff] %vm1065, %v1578
  %1643 = vst.msk [vmem:[#allocation2 + $0xf8] sm:$0xff] %vm1065, %v1579
  %1644 = vst.msk [vmem:[#allocation2 + $0x100] sm:$0xff] %vm1065, %v1580
  %1645 = vst.msk [vmem:[#allocation2 + $0x108] sm:$0xff] %vm1065, %v1581
  %1646 = vst.msk [vmem:[#allocation2 + $0x110] sm:$0xff] %vm1065, %v1582
  %1647 = vst.msk [vmem:[#allocation2 + $0x118] sm:$0xff] %vm1065, %v1583
  %1648 = vst.msk [vmem:[#allocation2 + $0x120] sm:$0xff] %vm1065, %v1584
  %1649 = vst.msk [vmem:[#allocation2 + $0x128] sm:$0xff] %vm1065, %v1585
  %1650 = vst.msk [vmem:[#allocation2 + $0x130] sm:$0xff] %vm1065, %v1586
  %1651 = vst.msk [vmem:[#allocation2 + $0x138] sm:$0xff] %vm1065, %v1587
  %1652 = vst.msk [vmem:[#allocation2 + $0x140] sm:$0xff] %vm1065, %v1588
  %1653 = vst.msk [vmem:[#allocation2 + $0x148] sm:$0xff] %vm1065, %v1589
  %1654 = vst.msk [vmem:[#allocation2 + $0x150] sm:$0xff] %vm1065, %v1590
  %1655 = vst.msk [vmem:[#allocation2 + $0x158] sm:$0xff] %vm1065, %v1591
  %1656 = vst.msk [vmem:[#allocation2 + $0x160] sm:$0xff] %vm1065, %v1592
  %1657 = vst.msk [vmem:[#allocation2 + $0x168] sm:$0xff] %vm1065, %v1593
  %1658 = vst.msk [vmem:[#allocation2 + $0x170] sm:$0xff] %vm1065, %v1594
  %1659 = vst.msk [vmem:[#allocation2 + $0x178] sm:$0xff] %vm1065, %v1595
  %1660 = vst.msk [vmem:[#allocation2 + $0x180] sm:$0xff] %vm1065, %v1596
  %1661 = vst.msk [vmem:[#allocation2 + $0x188] sm:$0xff] %vm1065, %v1597
  %1662 = vst.msk [vmem:[#allocation2 + $0x190] sm:$0xff] %vm1065, %v1598
  %1663 = vst.msk [vmem:[#allocation2 + $0x198] sm:$0xff] %vm1065, %v1599
  %1664 = vst.msk [vmem:[#allocation2 + $0x1a0] sm:$0xff] %vm1065, %v1600
  %1665 = vst.msk [vmem:[#allocation2 + $0x1a8] sm:$0xff] %vm1065, %v1601
  %1666 = vst.msk [vmem:[#allocation2 + $0x1b0] sm:$0xff] %vm1065, %v1602
  %1667 = vst.msk [vmem:[#allocation2 + $0x1b8] sm:$0xff] %vm1065, %v1603
  %1668 = vst.msk [vmem:[#allocation2 + $0x1c0] sm:$0xff] %vm1065, %v1604
  %1669 = vst.msk [vmem:[#allocation2 + $0x1c8] sm:$0xff] %vm1065, %v1605
  %1670 = vst.msk [vmem:[#allocation2 + $0x1d0] sm:$0xff] %vm1065, %v1606
  %1671 = vst.msk [vmem:[#allocation2 + $0x1d8] sm:$0xff] %vm1065, %v1607
  %1672 = vst.msk [vmem:[#allocation2 + $0x1e0] sm:$0xff] %vm1065, %v1608
  %1673 = vst.msk [vmem:[#allocation2 + $0x1e8] sm:$0xff] %vm1065, %v1609
  %1674 = vst.msk [vmem:[#allocation2 + $0x1f0] sm:$0xff] %vm1065, %v1610
  %1675 = vst.msk [vmem:[#allocation2 + $0x1f8] sm:$0xff] %vm1065, %v1611
  %v1676 = vld [vmem:[#allocation2] ss:$2 sm:$0xff]
  %s1677 = scalar_lea.vmem [#allocation2], 16
  %v1678 = vld [vmem:[%s1677] ss:$2 sm:$0xff]
  %s1679 = scalar_lea.vmem [#allocation2], 32
  %v1680 = vld [vmem:[%s1679] ss:$2 sm:$0xff]
  %s1681 = scalar_lea.vmem [#allocation2], 48
  %v1682 = vld [vmem:[%s1681] ss:$2 sm:$0xff]
  %s1683 = scalar_lea.vmem [#allocation2], 64
  %v1684 = vld [vmem:[%s1683] ss:$2 sm:$0xff]
  %s1685 = scalar_lea.vmem [#allocation2], 80
  %v1686 = vld [vmem:[%s1685] ss:$2 sm:$0xff]
  %s1687 = scalar_lea.vmem [#allocation2], 96
  %v1688 = vld [vmem:[%s1687] ss:$2 sm:$0xff]
  %s1689 = scalar_lea.vmem [#allocation2], 112
  %v1690 = vld [vmem:[%s1689] ss:$2 sm:$0xff]
  %s1691 = scalar_lea.vmem [#allocation2], 128
  %v1692 = vld [vmem:[%s1691] ss:$2 sm:$0xff]
  %s1693 = scalar_lea.vmem [#allocation2], 144
  %v1694 = vld [vmem:[%s1693] ss:$2 sm:$0xff]
  %s1695 = scalar_lea.vmem [#allocation2], 160
  %v1696 = vld [vmem:[%s1695] ss:$2 sm:$0xff]
  %s1697 = scalar_lea.vmem [#allocation2], 176
  %v1698 = vld [vmem:[%s1697] ss:$2 sm:$0xff]
  %s1699 = scalar_lea.vmem [#allocation2], 192
  %v1700 = vld [vmem:[%s1699] ss:$2 sm:$0xff]
  %s1701 = scalar_lea.vmem [#allocation2], 208
  %v1702 = vld [vmem:[%s1701] ss:$2 sm:$0xff]
  %s1703 = scalar_lea.vmem [#allocation2], 224
  %v1704 = vld [vmem:[%s1703] ss:$2 sm:$0xff]
  %s1705 = scalar_lea.vmem [#allocation2], 240
  %v1706 = vld [vmem:[%s1705] ss:$2 sm:$0xff]
  %s1707 = scalar_lea.vmem [#allocation2], 256
  %v1708 = vld [vmem:[%s1707] ss:$2 sm:$0xff]
  %s1709 = scalar_lea.vmem [#allocation2], 272
  %v1710 = vld [vmem:[%s1709] ss:$2 sm:$0xff]
  %s1711 = scalar_lea.vmem [#allocation2], 288
  %v1712 = vld [vmem:[%s1711] ss:$2 sm:$0xff]
  %s1713 = scalar_lea.vmem [#allocation2], 304
  %v1714 = vld [vmem:[%s1713] ss:$2 sm:$0xff]
  %s1715 = scalar_lea.vmem [#allocation2], 320
  %v1716 = vld [vmem:[%s1715] ss:$2 sm:$0xff]
  %s1717 = scalar_lea.vmem [#allocation2], 336
  %v1718 = vld [vmem:[%s1717] ss:$2 sm:$0xff]
  %s1719 = scalar_lea.vmem [#allocation2], 352
  %v1720 = vld [vmem:[%s1719] ss:$2 sm:$0xff]
  %s1721 = scalar_lea.vmem [#allocation2], 368
  %v1722 = vld [vmem:[%s1721] ss:$2 sm:$0xff]
  %s1723 = scalar_lea.vmem [#allocation2], 384
  %v1724 = vld [vmem:[%s1723] ss:$2 sm:$0xff]
  %s1725 = scalar_lea.vmem [#allocation2], 400
  %v1726 = vld [vmem:[%s1725] ss:$2 sm:$0xff]
  %s1727 = scalar_lea.vmem [#allocation2], 416
  %v1728 = vld [vmem:[%s1727] ss:$2 sm:$0xff]
  %s1729 = scalar_lea.vmem [#allocation2], 432
  %v1730 = vld [vmem:[%s1729] ss:$2 sm:$0xff]
  %s1731 = scalar_lea.vmem [#allocation2], 448
  %v1732 = vld [vmem:[%s1731] ss:$2 sm:$0xff]
  %s1733 = scalar_lea.vmem [#allocation2], 464
  %v1734 = vld [vmem:[%s1733] ss:$2 sm:$0xff]
  %s1735 = scalar_lea.vmem [#allocation2], 480
  %v1736 = vld [vmem:[%s1735] ss:$2 sm:$0xff]
  %s1737 = scalar_lea.vmem [#allocation2], 496
  %v1738 = vld [vmem:[%s1737] ss:$2 sm:$0xff]
  %s1739 = scalar_lea.vmem [#allocation2], 1
  %v1740 = vld [vmem:[%s1739] ss:$2 sm:$0xff]
  %s1741 = scalar_lea.vmem [#allocation2], 17
  %v1742 = vld [vmem:[%s1741] ss:$2 sm:$0xff]
  %s1743 = scalar_lea.vmem [#allocation2], 33
  %v1744 = vld [vmem:[%s1743] ss:$2 sm:$0xff]
  %s1745 = scalar_lea.vmem [#allocation2], 49
  %v1746 = vld [vmem:[%s1745] ss:$2 sm:$0xff]
  %s1747 = scalar_lea.vmem [#allocation2], 65
  %v1748 = vld [vmem:[%s1747] ss:$2 sm:$0xff]
  %s1749 = scalar_lea.vmem [#allocation2], 81
  %v1750 = vld [vmem:[%s1749] ss:$2 sm:$0xff]
  %s1751 = scalar_lea.vmem [#allocation2], 97
  %v1752 = vld [vmem:[%s1751] ss:$2 sm:$0xff]
  %s1753 = scalar_lea.vmem [#allocation2], 113
  %v1754 = vld [vmem:[%s1753] ss:$2 sm:$0xff]
  %s1755 = scalar_lea.vmem [#allocation2], 129
  %v1756 = vld [vmem:[%s1755] ss:$2 sm:$0xff]
  %s1757 = scalar_lea.vmem [#allocation2], 145
  %v1758 = vld [vmem:[%s1757] ss:$2 sm:$0xff]
  %s1759 = scalar_lea.vmem [#allocation2], 161
  %v1760 = vld [vmem:[%s1759] ss:$2 sm:$0xff]
  %s1761 = scalar_lea.vmem [#allocation2], 177
  %v1762 = vld [vmem:[%s1761] ss:$2 sm:$0xff]
  %s1763 = scalar_lea.vmem [#allocation2], 193
  %v1764 = vld [vmem:[%s1763] ss:$2 sm:$0xff]
  %s1765 = scalar_lea.vmem [#allocation2], 209
  %v1766 = vld [vmem:[%s1765] ss:$2 sm:$0xff]
  %s1767 = scalar_lea.vmem [#allocation2], 225
  %v1768 = vld [vmem:[%s1767] ss:$2 sm:$0xff]
  %s1769 = scalar_lea.vmem [#allocation2], 241
  %v1770 = vld [vmem:[%s1769] ss:$2 sm:$0xff]
  %s1771 = scalar_lea.vmem [#allocation2], 257
  %v1772 = vld [vmem:[%s1771] ss:$2 sm:$0xff]
  %s1773 = scalar_lea.vmem [#allocation2], 273
  %v1774 = vld [vmem:[%s1773] ss:$2 sm:$0xff]
  %s1775 = scalar_lea.vmem [#allocation2], 289
  %v1776 = vld [vmem:[%s1775] ss:$2 sm:$0xff]
  %s1777 = scalar_lea.vmem [#allocation2], 305
  %v1778 = vld [vmem:[%s1777] ss:$2 sm:$0xff]
  %s1779 = scalar_lea.vmem [#allocation2], 321
  %v1780 = vld [vmem:[%s1779] ss:$2 sm:$0xff]
  %s1781 = scalar_lea.vmem [#allocation2], 337
  %v1782 = vld [vmem:[%s1781] ss:$2 sm:$0xff]
  %s1783 = scalar_lea.vmem [#allocation2], 353
  %v1784 = vld [vmem:[%s1783] ss:$2 sm:$0xff]
  %s1785 = scalar_lea.vmem [#allocation2], 369
  %v1786 = vld [vmem:[%s1785] ss:$2 sm:$0xff]
  %s1787 = scalar_lea.vmem [#allocation2], 385
  %v1788 = vld [vmem:[%s1787] ss:$2 sm:$0xff]
  %s1789 = scalar_lea.vmem [#allocation2], 401
  %v1790 = vld [vmem:[%s1789] ss:$2 sm:$0xff]
  %s1791 = scalar_lea.vmem [#allocation2], 417
  %v1792 = vld [vmem:[%s1791] ss:$2 sm:$0xff]
  %s1793 = scalar_lea.vmem [#allocation2], 433
  %v1794 = vld [vmem:[%s1793] ss:$2 sm:$0xff]
  %s1795 = scalar_lea.vmem [#allocation2], 449
  %v1796 = vld [vmem:[%s1795] ss:$2 sm:$0xff]
  %s1797 = scalar_lea.vmem [#allocation2], 465
  %v1798 = vld [vmem:[%s1797] ss:$2 sm:$0xff]
  %s1799 = scalar_lea.vmem [#allocation2], 481
  %v1800 = vld [vmem:[%s1799] ss:$2 sm:$0xff]
  %s1801 = scalar_lea.vmem [#allocation2], 497
  %v1802 = vld [vmem:[%s1801] ss:$2 sm:$0xff]
  %v1835 = vrot.slane %v1740, 7
  %v1836 = vrot.slane %v1742, 7
  %v1837 = vrot.slane %v1744, 7
  %v1838 = vrot.slane %v1746, 7
  %v1839 = vrot.slane %v1748, 7
  %v1840 = vrot.slane %v1750, 7
  %v1841 = vrot.slane %v1752, 7
  %v1842 = vrot.slane %v1754, 7
  %v1843 = vrot.slane %v1756, 7
  %v1844 = vrot.slane %v1758, 7
  %v1845 = vrot.slane %v1760, 7
  %v1846 = vrot.slane %v1762, 7
  %v1847 = vrot.slane %v1764, 7
  %v1848 = vrot.slane %v1766, 7
  %v1849 = vrot.slane %v1768, 7
  %v1850 = vrot.slane %v1770, 7
  %v1851 = vrot.slane %v1772, 7
  %v1852 = vrot.slane %v1774, 7
  %v1853 = vrot.slane %v1776, 7
  %v1854 = vrot.slane %v1778, 7
  %v1855 = vrot.slane %v1780, 7
  %v1856 = vrot.slane %v1782, 7
  %v1857 = vrot.slane %v1784, 7
  %v1858 = vrot.slane %v1786, 7
  %v1859 = vrot.slane %v1788, 7
  %v1860 = vrot.slane %v1790, 7
  %v1861 = vrot.slane %v1792, 7
  %v1862 = vrot.slane %v1794, 7
  %v1863 = vrot.slane %v1796, 7
  %v1864 = vrot.slane %v1798, 7
  %v1865 = vrot.slane %v1800, 7
  %v1866 = vrot.slane %v1802, 7
  %v1899 = vsel %vm850, 0.0, %v1835
  %v1900 = vsel %vm850, 0.0, %v1836
  %v1901 = vsel %vm850, 0.0, %v1837
  %v1902 = vsel %vm850, 0.0, %v1838
  %v1903 = vsel %vm850, 0.0, %v1839
  %v1904 = vsel %vm850, 0.0, %v1840
  %v1905 = vsel %vm850, 0.0, %v1841
  %v1906 = vsel %vm850, 0.0, %v1842
  %v1907 = vsel %vm850, 0.0, %v1843
  %v1908 = vsel %vm850, 0.0, %v1844
  %v1909 = vsel %vm850, 0.0, %v1845
  %v1910 = vsel %vm850, 0.0, %v1846
  %v1911 = vsel %vm850, 0.0, %v1847
  %v1912 = vsel %vm850, 0.0, %v1848
  %v1913 = vsel %vm850, 0.0, %v1849
  %v1914 = vsel %vm850, 0.0, %v1850
  %v1915 = vsel %vm850, 0.0, %v1851
  %v1916 = vsel %vm850, 0.0, %v1852
  %v1917 = vsel %vm850, 0.0, %v1853
  %v1918 = vsel %vm850, 0.0, %v1854
  %v1919 = vsel %vm850, 0.0, %v1855
  %v1920 = vsel %vm850, 0.0, %v1856
  %v1921 = vsel %vm850, 0.0, %v1857
  %v1922 = vsel %vm850, 0.0, %v1858
  %v1923 = vsel %vm850, 0.0, %v1859
  %v1924 = vsel %vm850, 0.0, %v1860
  %v1925 = vsel %vm850, 0.0, %v1861
  %v1926 = vsel %vm850, 0.0, %v1862
  %v1927 = vsel %vm850, 0.0, %v1863
  %v1928 = vsel %vm850, 0.0, %v1864
  %v1929 = vsel %vm850, 0.0, %v1865
  %v1930 = vsel %vm850, 0.0, %v1866
  %v1931 = vadd.f32 %v1676, %v1899
  %v1932 = vadd.f32 %v1678, %v1900
  %v1933 = vadd.f32 %v1680, %v1901
  %v1934 = vadd.f32 %v1682, %v1902
  %v1935 = vadd.f32 %v1684, %v1903
  %v1936 = vadd.f32 %v1686, %v1904
  %v1937 = vadd.f32 %v1688, %v1905
  %v1938 = vadd.f32 %v1690, %v1906
  %v1939 = vadd.f32 %v1692, %v1907
  %v1940 = vadd.f32 %v1694, %v1908
  %v1941 = vadd.f32 %v1696, %v1909
  %v1942 = vadd.f32 %v1698, %v1910
  %v1943 = vadd.f32 %v1700, %v1911
  %v1944 = vadd.f32 %v1702, %v1912
  %v1945 = vadd.f32 %v1704, %v1913
  %v1946 = vadd.f32 %v1706, %v1914
  %v1947 = vadd.f32 %v1708, %v1915
  %v1948 = vadd.f32 %v1710, %v1916
  %v1949 = vadd.f32 %v1712, %v1917
  %v1950 = vadd.f32 %v1714, %v1918
  %v1951 = vadd.f32 %v1716, %v1919
  %v1952 = vadd.f32 %v1718, %v1920
  %v1953 = vadd.f32 %v1720, %v1921
  %v1954 = vadd.f32 %v1722, %v1922
  %v1955 = vadd.f32 %v1724, %v1923
  %v1956 = vadd.f32 %v1726, %v1924
  %v1957 = vadd.f32 %v1728, %v1925
  %v1958 = vadd.f32 %v1730, %v1926
  %v1959 = vadd.f32 %v1732, %v1927
  %v1960 = vadd.f32 %v1734, %v1928
  %v1961 = vadd.f32 %v1736, %v1929
  %v1962 = vadd.f32 %v1738, %v1930
  %v1963 = vadd.f32 %v1676, %v1740
  %v1964 = vadd.f32 %v1678, %v1742
  %v1965 = vadd.f32 %v1680, %v1744
  %v1966 = vadd.f32 %v1682, %v1746
  %v1967 = vadd.f32 %v1684, %v1748
  %v1968 = vadd.f32 %v1686, %v1750
  %v1969 = vadd.f32 %v1688, %v1752
  %v1970 = vadd.f32 %v1690, %v1754
  %v1971 = vadd.f32 %v1692, %v1756
  %v1972 = vadd.f32 %v1694, %v1758
  %v1973 = vadd.f32 %v1696, %v1760
  %v1974 = vadd.f32 %v1698, %v1762
  %v1975 = vadd.f32 %v1700, %v1764
  %v1976 = vadd.f32 %v1702, %v1766
  %v1977 = vadd.f32 %v1704, %v1768
  %v1978 = vadd.f32 %v1706, %v1770
  %v1979 = vadd.f32 %v1708, %v1772
  %v1980 = vadd.f32 %v1710, %v1774
  %v1981 = vadd.f32 %v1712, %v1776
  %v1982 = vadd.f32 %v1714, %v1778
  %v1983 = vadd.f32 %v1716, %v1780
  %v1984 = vadd.f32 %v1718, %v1782
  %v1985 = vadd.f32 %v1720, %v1784
  %v1986 = vadd.f32 %v1722, %v1786
  %v1987 = vadd.f32 %v1724, %v1788
  %v1988 = vadd.f32 %v1726, %v1790
  %v1989 = vadd.f32 %v1728, %v1792
  %v1990 = vadd.f32 %v1730, %v1794
  %v1991 = vadd.f32 %v1732, %v1796
  %v1992 = vadd.f32 %v1734, %v1798
  %v1993 = vadd.f32 %v1736, %v1800
  %v1994 = vadd.f32 %v1738, %v1802
  %v2027 = vrot.slane %v1676, 1
  %v2028 = vrot.slane %v1678, 1
  %v2029 = vrot.slane %v1680, 1
  %v2030 = vrot.slane %v1682, 1
  %v2031 = vrot.slane %v1684, 1
  %v2032 = vrot.slane %v1686, 1
  %v2033 = vrot.slane %v1688, 1
  %v2034 = vrot.slane %v1690, 1
  %v2035 = vrot.slane %v1692, 1
  %v2036 = vrot.slane %v1694, 1
  %v2037 = vrot.slane %v1696, 1
  %v2038 = vrot.slane %v1698, 1
  %v2039 = vrot.slane %v1700, 1
  %v2040 = vrot.slane %v1702, 1
  %v2041 = vrot.slane %v1704, 1
  %v2042 = vrot.slane %v1706, 1
  %v2043 = vrot.slane %v1708, 1
  %v2044 = vrot.slane %v1710, 1
  %v2045 = vrot.slane %v1712, 1
  %v2046 = vrot.slane %v1714, 1
  %v2047 = vrot.slane %v1716, 1
  %v2048 = vrot.slane %v1718, 1
  %v2049 = vrot.slane %v1720, 1
  %v2050 = vrot.slane %v1722, 1
  %v2051 = vrot.slane %v1724, 1
  %v2052 = vrot.slane %v1726, 1
  %v2053 = vrot.slane %v1728, 1
  %v2054 = vrot.slane %v1730, 1
  %v2055 = vrot.slane %v1732, 1
  %v2056 = vrot.slane %v1734, 1
  %v2057 = vrot.slane %v1736, 1
  %v2058 = vrot.slane %v1738, 1
  %vm2091 = vcmask 1046528
  %v2092 = vsel %vm2091, %v2027, 0.0
  %v2093 = vsel %vm2091, %v2028, 0.0
  %v2094 = vsel %vm2091, %v2029, 0.0
  %v2095 = vsel %vm2091, %v2030, 0.0
  %v2096 = vsel %vm2091, %v2031, 0.0
  %v2097 = vsel %vm2091, %v2032, 0.0
  %v2098 = vsel %vm2091, %v2033, 0.0
  %v2099 = vsel %vm2091, %v2034, 0.0
  %v2100 = vsel %vm2091, %v2035, 0.0
  %v2101 = vsel %vm2091, %v2036, 0.0
  %v2102 = vsel %vm2091, %v2037, 0.0
  %v2103 = vsel %vm2091, %v2038, 0.0
  %v2104 = vsel %vm2091, %v2039, 0.0
  %v2105 = vsel %vm2091, %v2040, 0.0
  %v2106 = vsel %vm2091, %v2041, 0.0
  %v2107 = vsel %vm2091, %v2042, 0.0
  %v2108 = vsel %vm2091, %v2043, 0.0
  %v2109 = vsel %vm2091, %v2044, 0.0
  %v2110 = vsel %vm2091, %v2045, 0.0
  %v2111 = vsel %vm2091, %v2046, 0.0
  %v2112 = vsel %vm2091, %v2047, 0.0
  %v2113 = vsel %vm2091, %v2048, 0.0
  %v2114 = vsel %vm2091, %v2049, 0.0
  %v2115 = vsel %vm2091, %v2050, 0.0
  %v2116 = vsel %vm2091, %v2051, 0.0
  %v2117 = vsel %vm2091, %v2052, 0.0
  %v2118 = vsel %vm2091, %v2053, 0.0
  %v2119 = vsel %vm2091, %v2054, 0.0
  %v2120 = vsel %vm2091, %v2055, 0.0
  %v2121 = vsel %vm2091, %v2056, 0.0
  %v2122 = vsel %vm2091, %v2057, 0.0
  %v2123 = vsel %vm2091, %v2058, 0.0
  %v2124 = vadd.f32 %v1740, %v2092
  %v2125 = vadd.f32 %v1742, %v2093
  %v2126 = vadd.f32 %v1744, %v2094
  %v2127 = vadd.f32 %v1746, %v2095
  %v2128 = vadd.f32 %v1748, %v2096
  %v2129 = vadd.f32 %v1750, %v2097
  %v2130 = vadd.f32 %v1752, %v2098
  %v2131 = vadd.f32 %v1754, %v2099
  %v2132 = vadd.f32 %v1756, %v2100
  %v2133 = vadd.f32 %v1758, %v2101
  %v2134 = vadd.f32 %v1760, %v2102
  %v2135 = vadd.f32 %v1762, %v2103
  %v2136 = vadd.f32 %v1764, %v2104
  %v2137 = vadd.f32 %v1766, %v2105
  %v2138 = vadd.f32 %v1768, %v2106
  %v2139 = vadd.f32 %v1770, %v2107
  %v2140 = vadd.f32 %v1772, %v2108
  %v2141 = vadd.f32 %v1774, %v2109
  %v2142 = vadd.f32 %v1776, %v2110
  %v2143 = vadd.f32 %v1778, %v2111
  %v2144 = vadd.f32 %v1780, %v2112
  %v2145 = vadd.f32 %v1782, %v2113
  %v2146 = vadd.f32 %v1784, %v2114
  %v2147 = vadd.f32 %v1786, %v2115
  %v2148 = vadd.f32 %v1788, %v2116
  %v2149 = vadd.f32 %v1790, %v2117
  %v2150 = vadd.f32 %v1792, %v2118
  %v2151 = vadd.f32 %v1794, %v2119
  %v2152 = vadd.f32 %v1796, %v2120
  %v2153 = vadd.f32 %v1798, %v2121
  %v2154 = vadd.f32 %v1800, %v2122
  %v2155 = vadd.f32 %v1802, %v2123
  %2188 = vrot.lane.b32.xlu0 %v1963, 26
  %v2189 = vpop.permute.xlu0 %2188
  %2190 = vrot.lane.b32.xlu0 %v1964, 26
  %v2191 = vpop.permute.xlu0 %2190
  %2192 = vrot.lane.b32.xlu0 %v1965, 26
  %v2193 = vpop.permute.xlu0 %2192
  %2194 = vrot.lane.b32.xlu0 %v1966, 26
  %v2195 = vpop.permute.xlu0 %2194
  %2196 = vrot.lane.b32.xlu0 %v1967, 26
  %v2197 = vpop.permute.xlu0 %2196
  %2198 = vrot.lane.b32.xlu0 %v1968, 26
  %v2199 = vpop.permute.xlu0 %2198
  %2200 = vrot.lane.b32.xlu0 %v1969, 26
  %v2201 = vpop.permute.xlu0 %2200
  %2202 = vrot.lane.b32.xlu0 %v1970, 26
  %v2203 = vpop.permute.xlu0 %2202
  %2204 = vrot.lane.b32.xlu0 %v1971, 26
  %v2205 = vpop.permute.xlu0 %2204
  %2206 = vrot.lane.b32.xlu0 %v1972, 26
  %v2207 = vpop.permute.xlu0 %2206
  %2208 = vrot.lane.b32.xlu0 %v1973, 26
  %v2209 = vpop.permute.xlu0 %2208
  %2210 = vrot.lane.b32.xlu0 %v1974, 26
  %v2211 = vpop.permute.xlu0 %2210
  %2212 = vrot.lane.b32.xlu0 %v1975, 26
  %v2213 = vpop.permute.xlu0 %2212
  %2214 = vrot.lane.b32.xlu0 %v1976, 26
  %v2215 = vpop.permute.xlu0 %2214
  %2216 = vrot.lane.b32.xlu0 %v1977, 26
  %v2217 = vpop.permute.xlu0 %2216
  %2218 = vrot.lane.b32.xlu0 %v1978, 26
  %v2219 = vpop.permute.xlu0 %2218
  %2220 = vrot.lane.b32.xlu0 %v1979, 26
  %v2221 = vpop.permute.xlu0 %2220
  %2222 = vrot.lane.b32.xlu0 %v1980, 26
  %v2223 = vpop.permute.xlu0 %2222
  %2224 = vrot.lane.b32.xlu0 %v1981, 26
  %v2225 = vpop.permute.xlu0 %2224
  %2226 = vrot.lane.b32.xlu0 %v1982, 26
  %v2227 = vpop.permute.xlu0 %2226
  %2228 = vrot.lane.b32.xlu0 %v1983, 26
  %v2229 = vpop.permute.xlu0 %2228
  %2230 = vrot.lane.b32.xlu0 %v1984, 26
  %v2231 = vpop.permute.xlu0 %2230
  %2232 = vrot.lane.b32.xlu0 %v1985, 26
  %v2233 = vpop.permute.xlu0 %2232
  %2234 = vrot.lane.b32.xlu0 %v1986, 26
  %v2235 = vpop.permute.xlu0 %2234
  %2236 = vrot.lane.b32.xlu0 %v1987, 26
  %v2237 = vpop.permute.xlu0 %2236
  %2238 = vrot.lane.b32.xlu0 %v1988, 26
  %v2239 = vpop.permute.xlu0 %2238
  %2240 = vrot.lane.b32.xlu0 %v1989, 26
  %v2241 = vpop.permute.xlu0 %2240
  %2242 = vrot.lane.b32.xlu0 %v1990, 26
  %v2243 = vpop.permute.xlu0 %2242
  %2244 = vrot.lane.b32.xlu0 %v1991, 26
  %v2245 = vpop.permute.xlu0 %2244
  %2246 = vrot.lane.b32.xlu0 %v1992, 26
  %v2247 = vpop.permute.xlu0 %2246
  %2248 = vrot.lane.b32.xlu0 %v1993, 26
  %v2249 = vpop.permute.xlu0 %2248
  %2250 = vrot.lane.b32.xlu0 %v1994, 26
  %v2251 = vpop.permute.xlu0 %2250
  %2316 = vrot.lane.b32.xlu0 %v2124, 52
  %v2317 = vpop.permute.xlu0 %2316
  %2318 = vrot.lane.b32.xlu0 %v2125, 52
  %v2319 = vpop.permute.xlu0 %2318
  %2320 = vrot.lane.b32.xlu0 %v2126, 52
  %v2321 = vpop.permute.xlu0 %2320
  %2322 = vrot.lane.b32.xlu0 %v2127, 52
  %v2323 = vpop.permute.xlu0 %2322
  %2324 = vrot.lane.b32.xlu0 %v2128, 52
  %v2325 = vpop.permute.xlu0 %2324
  %2326 = vrot.lane.b32.xlu0 %v2129, 52
  %v2327 = vpop.permute.xlu0 %2326
  %2328 = vrot.lane.b32.xlu0 %v2130, 52
  %v2329 = vpop.permute.xlu0 %2328
  %2330 = vrot.lane.b32.xlu0 %v2131, 52
  %v2331 = vpop.permute.xlu0 %2330
  %2332 = vrot.lane.b32.xlu0 %v2132, 52
  %v2333 = vpop.permute.xlu0 %2332
  %2334 = vrot.lane.b32.xlu0 %v2133, 52
  %v2335 = vpop.permute.xlu0 %2334
  %2336 = vrot.lane.b32.xlu0 %v2134, 52
  %v2337 = vpop.permute.xlu0 %2336
  %2338 = vrot.lane.b32.xlu0 %v2135, 52
  %v2339 = vpop.permute.xlu0 %2338
  %2340 = vrot.lane.b32.xlu0 %v2136, 52
  %v2341 = vpop.permute.xlu0 %2340
  %2342 = vrot.lane.b32.xlu0 %v2137, 52
  %v2343 = vpop.permute.xlu0 %2342
  %2344 = vrot.lane.b32.xlu0 %v2138, 52
  %v2345 = vpop.permute.xlu0 %2344
  %2346 = vrot.lane.b32.xlu0 %v2139, 52
  %v2347 = vpop.permute.xlu0 %2346
  %2348 = vrot.lane.b32.xlu0 %v2140, 52
  %v2349 = vpop.permute.xlu0 %2348
  %2350 = vrot.lane.b32.xlu0 %v2141, 52
  %v2351 = vpop.permute.xlu0 %2350
  %2352 = vrot.lane.b32.xlu0 %v2142, 52
  %v2353 = vpop.permute.xlu0 %2352
  %2354 = vrot.lane.b32.xlu0 %v2143, 52
  %v2355 = vpop.permute.xlu0 %2354
  %2356 = vrot.lane.b32.xlu0 %v2144, 52
  %v2357 = vpop.permute.xlu0 %2356
  %2358 = vrot.lane.b32.xlu0 %v2145, 52
  %v2359 = vpop.permute.xlu0 %2358
  %2360 = vrot.lane.b32.xlu0 %v2146, 52
  %v2361 = vpop.permute.xlu0 %2360
  %2362 = vrot.lane.b32.xlu0 %v2147, 52
  %v2363 = vpop.permute.xlu0 %2362
  %2364 = vrot.lane.b32.xlu0 %v2148, 52
  %v2365 = vpop.permute.xlu0 %2364
  %2366 = vrot.lane.b32.xlu0 %v2149, 52
  %v2367 = vpop.permute.xlu0 %2366
  %2368 = vrot.lane.b32.xlu0 %v2150, 52
  %v2369 = vpop.permute.xlu0 %2368
  %2370 = vrot.lane.b32.xlu0 %v2151, 52
  %v2371 = vpop.permute.xlu0 %2370
  %2372 = vrot.lane.b32.xlu0 %v2152, 52
  %v2373 = vpop.permute.xlu0 %2372
  %2374 = vrot.lane.b32.xlu0 %v2153, 52
  %v2375 = vpop.permute.xlu0 %2374
  %2376 = vrot.lane.b32.xlu0 %v2154, 52
  %v2377 = vpop.permute.xlu0 %2376
  %2378 = vrot.lane.b32.xlu0 %v2155, 52
  %v2379 = vpop.permute.xlu0 %2378
  %v2412 = vsel %vm1065, %v1931, %v2189
  %v2413 = vsel %vm1065, %v1932, %v2191
  %v2414 = vsel %vm1065, %v1933, %v2193
  %v2415 = vsel %vm1065, %v1934, %v2195
  %v2416 = vsel %vm1065, %v1935, %v2197
  %v2417 = vsel %vm1065, %v1936, %v2199
  %v2418 = vsel %vm1065, %v1937, %v2201
  %v2419 = vsel %vm1065, %v1938, %v2203
  %v2420 = vsel %vm1065, %v1939, %v2205
  %v2421 = vsel %vm1065, %v1940, %v2207
  %v2422 = vsel %vm1065, %v1941, %v2209
  %v2423 = vsel %vm1065, %v1942, %v2211
  %v2424 = vsel %vm1065, %v1943, %v2213
  %v2425 = vsel %vm1065, %v1944, %v2215
  %v2426 = vsel %vm1065, %v1945, %v2217
  %v2427 = vsel %vm1065, %v1946, %v2219
  %v2428 = vsel %vm1065, %v1947, %v2221
  %v2429 = vsel %vm1065, %v1948, %v2223
  %v2430 = vsel %vm1065, %v1949, %v2225
  %v2431 = vsel %vm1065, %v1950, %v2227
  %v2432 = vsel %vm1065, %v1951, %v2229
  %v2433 = vsel %vm1065, %v1952, %v2231
  %v2434 = vsel %vm1065, %v1953, %v2233
  %v2435 = vsel %vm1065, %v1954, %v2235
  %v2436 = vsel %vm1065, %v1955, %v2237
  %v2437 = vsel %vm1065, %v1956, %v2239
  %v2438 = vsel %vm1065, %v1957, %v2241
  %v2439 = vsel %vm1065, %v1958, %v2243
  %v2440 = vsel %vm1065, %v1959, %v2245
  %v2441 = vsel %vm1065, %v1960, %v2247
  %v2442 = vsel %vm1065, %v1961, %v2249
  %v2443 = vsel %vm1065, %v1962, %v2251
  %vm2444 = vcmask 424960
  %v2445 = vsel %vm2444, %v2412, %v2317
  %v2446 = vsel %vm2444, %v2413, %v2319
  %v2447 = vsel %vm2444, %v2414, %v2321
  %v2448 = vsel %vm2444, %v2415, %v2323
  %v2449 = vsel %vm2444, %v2416, %v2325
  %v2450 = vsel %vm2444, %v2417, %v2327
  %v2451 = vsel %vm2444, %v2418, %v2329
  %v2452 = vsel %vm2444, %v2419, %v2331
  %v2453 = vsel %vm2444, %v2420, %v2333
  %v2454 = vsel %vm2444, %v2421, %v2335
  %v2455 = vsel %vm2444, %v2422, %v2337
  %v2456 = vsel %vm2444, %v2423, %v2339
  %v2457 = vsel %vm2444, %v2424, %v2341
  %v2458 = vsel %vm2444, %v2425, %v2343
  %v2459 = vsel %vm2444, %v2426, %v2345
  %v2460 = vsel %vm2444, %v2427, %v2347
  %v2461 = vsel %vm2444, %v2428, %v2349
  %v2462 = vsel %vm2444, %v2429, %v2351
  %v2463 = vsel %vm2444, %v2430, %v2353
  %v2464 = vsel %vm2444, %v2431, %v2355
  %v2465 = vsel %vm2444, %v2432, %v2357
  %v2466 = vsel %vm2444, %v2433, %v2359
  %v2467 = vsel %vm2444, %v2434, %v2361
  %v2468 = vsel %vm2444, %v2435, %v2363
  %v2469 = vsel %vm2444, %v2436, %v2365
  %v2470 = vsel %vm2444, %v2437, %v2367
  %v2471 = vsel %vm2444, %v2438, %v2369
  %v2472 = vsel %vm2444, %v2439, %v2371
  %v2473 = vsel %vm2444, %v2440, %v2373
  %v2474 = vsel %vm2444, %v2441, %v2375
  %v2475 = vsel %vm2444, %v2442, %v2377
  %v2476 = vsel %vm2444, %v2443, %v2379
  %vm2477 = vcmask 637952
  %v2478 = vsel %vm2477, %v2445, 0.0
  %v2479 = vsel %vm2477, %v2446, 0.0
  %v2480 = vsel %vm2477, %v2447, 0.0
  %v2481 = vsel %vm2477, %v2448, 0.0
  %v2482 = vsel %vm2477, %v2449, 0.0
  %v2483 = vsel %vm2477, %v2450, 0.0
  %v2484 = vsel %vm2477, %v2451, 0.0
  %v2485 = vsel %vm2477, %v2452, 0.0
  %v2486 = vsel %vm2477, %v2453, 0.0
  %v2487 = vsel %vm2477, %v2454, 0.0
  %v2488 = vsel %vm2477, %v2455, 0.0
  %v2489 = vsel %vm2477, %v2456, 0.0
  %v2490 = vsel %vm2477, %v2457, 0.0
  %v2491 = vsel %vm2477, %v2458, 0.0
  %v2492 = vsel %vm2477, %v2459, 0.0
  %v2493 = vsel %vm2477, %v2460, 0.0
  %v2494 = vsel %vm2477, %v2461, 0.0
  %v2495 = vsel %vm2477, %v2462, 0.0
  %v2496 = vsel %vm2477, %v2463, 0.0
  %v2497 = vsel %vm2477, %v2464, 0.0
  %v2498 = vsel %vm2477, %v2465, 0.0
  %v2499 = vsel %vm2477, %v2466, 0.0
  %v2500 = vsel %vm2477, %v2467, 0.0
  %v2501 = vsel %vm2477, %v2468, 0.0
  %v2502 = vsel %vm2477, %v2469, 0.0
  %v2503 = vsel %vm2477, %v2470, 0.0
  %v2504 = vsel %vm2477, %v2471, 0.0
  %v2505 = vsel %vm2477, %v2472, 0.0
  %v2506 = vsel %vm2477, %v2473, 0.0
  %v2507 = vsel %vm2477, %v2474, 0.0
  %v2508 = vsel %vm2477, %v2475, 0.0
  %v2509 = vsel %vm2477, %v2476, 0.0
  %2510 = vst [vmem:[#allocation3] sm:$0xff] %v2478
  %2511 = vst [vmem:[#allocation3 + $0x8] sm:$0xff] %v2479
  %2512 = vst [vmem:[#allocation3 + $0x10] sm:$0xff] %v2480
  %2513 = vst [vmem:[#allocation3 + $0x18] sm:$0xff] %v2481
  %2514 = vst [vmem:[#allocation3 + $0x20] sm:$0xff] %v2482
  %2515 = vst [vmem:[#allocation3 + $0x28] sm:$0xff] %v2483
  %2516 = vst [vmem:[#allocation3 + $0x30] sm:$0xff] %v2484
  %2517 = vst [vmem:[#allocation3 + $0x38] sm:$0xff] %v2485
  %2518 = vst [vmem:[#allocation3 + $0x40] sm:$0xff] %v2486
  %2519 = vst [vmem:[#allocation3 + $0x48] sm:$0xff] %v2487
  %2520 = vst [vmem:[#allocation3 + $0x50] sm:$0xff] %v2488
  %2521 = vst [vmem:[#allocation3 + $0x58] sm:$0xff] %v2489
  %2522 = vst [vmem:[#allocation3 + $0x60] sm:$0xff] %v2490
  %2523 = vst [vmem:[#allocation3 + $0x68] sm:$0xff] %v2491
  %2524 = vst [vmem:[#allocation3 + $0x70] sm:$0xff] %v2492
  %2525 = vst [vmem:[#allocation3 + $0x78] sm:$0xff] %v2493
  %2526 = vst [vmem:[#allocation3 + $0x80] sm:$0xff] %v2494
  %2527 = vst [vmem:[#allocation3 + $0x88] sm:$0xff] %v2495
  %2528 = vst [vmem:[#allocation3 + $0x90] sm:$0xff] %v2496
  %2529 = vst [vmem:[#allocation3 + $0x98] sm:$0xff] %v2497
  %2530 = vst [vmem:[#allocation3 + $0xa0] sm:$0xff] %v2498
  %2531 = vst [vmem:[#allocation3 + $0xa8] sm:$0xff] %v2499
  %2532 = vst [vmem:[#allocation3 + $0xb0] sm:$0xff] %v2500
  %2533 = vst [vmem:[#allocation3 + $0xb8] sm:$0xff] %v2501
  %2534 = vst [vmem:[#allocation3 + $0xc0] sm:$0xff] %v2502
  %2535 = vst [vmem:[#allocation3 + $0xc8] sm:$0xff] %v2503
  %2536 = vst [vmem:[#allocation3 + $0xd0] sm:$0xff] %v2504
  %2537 = vst [vmem:[#allocation3 + $0xd8] sm:$0xff] %v2505
  %2538 = vst [vmem:[#allocation3 + $0xe0] sm:$0xff] %v2506
  %2539 = vst [vmem:[#allocation3 + $0xe8] sm:$0xff] %v2507
  %2540 = vst [vmem:[#allocation3 + $0xf0] sm:$0xff] %v2508
  %2541 = vst [vmem:[#allocation3 + $0xf8] sm:$0xff] %v2509
  %v2542 = vld [vmem:[#allocation3] sm:$0xff]
  %v2543 = vld [vmem:[#allocation3 + $0x10] sm:$0xff]
  %v2544 = vld [vmem:[#allocation3 + $0x20] sm:$0xff]
  %v2545 = vld [vmem:[#allocation3 + $0x30] sm:$0xff]
  %v2546 = vld [vmem:[#allocation3 + $0x40] sm:$0xff]
  %v2547 = vld [vmem:[#allocation3 + $0x50] sm:$0xff]
  %v2548 = vld [vmem:[#allocation3 + $0x60] sm:$0xff]
  %v2549 = vld [vmem:[#allocation3 + $0x70] sm:$0xff]
  %v2550 = vld [vmem:[#allocation3 + $0x80] sm:$0xff]
  %v2551 = vld [vmem:[#allocation3 + $0x90] sm:$0xff]
  %v2552 = vld [vmem:[#allocation3 + $0xa0] sm:$0xff]
  %v2553 = vld [vmem:[#allocation3 + $0xb0] sm:$0xff]
  %v2554 = vld [vmem:[#allocation3 + $0xc0] sm:$0xff]
  %v2555 = vld [vmem:[#allocation3 + $0xd0] sm:$0xff]
  %v2556 = vld [vmem:[#allocation3 + $0xe0] sm:$0xff]
  %v2557 = vld [vmem:[#allocation3 + $0xf0] sm:$0xff]
  %s2558 = scalar_lea.vmem [#allocation3], 8
  %v2559 = vld [vmem:[%s2558] sm:$0xff]
  %v2560 = vld [vmem:[%s2558 + $0x10] sm:$0xff]
  %v2561 = vld [vmem:[%s2558 + $0x20] sm:$0xff]
  %v2562 = vld [vmem:[%s2558 + $0x30] sm:$0xff]
  %v2563 = vld [vmem:[%s2558 + $0x40] sm:$0xff]
  %v2564 = vld [vmem:[%s2558 + $0x50] sm:$0xff]
  %v2565 = vld [vmem:[%s2558 + $0x60] sm:$0xff]
  %v2566 = vld [vmem:[%s2558 + $0x70] sm:$0xff]
  %v2567 = vld [vmem:[%s2558 + $0x80] sm:$0xff]
  %v2568 = vld [vmem:[%s2558 + $0x90] sm:$0xff]
  %v2569 = vld [vmem:[%s2558 + $0xa0] sm:$0xff]
  %v2570 = vld [vmem:[%s2558 + $0xb0] sm:$0xff]
  %v2571 = vld [vmem:[%s2558 + $0xc0] sm:$0xff]
  %v2572 = vld [vmem:[%s2558 + $0xd0] sm:$0xff]
  %v2573 = vld [vmem:[%s2558 + $0xe0] sm:$0xff]
  %v2574 = vld [vmem:[%s2558 + $0xf0] sm:$0xff]
  %v2575 = vadd.f32 %v2542, 0.0
  %v2576 = vadd.f32 %v2543, %v2559
  %v2577 = vadd.f32 %v2544, %v2560
  %v2578 = vadd.f32 %v2545, %v2561
  %v2579 = vadd.f32 %v2546, %v2562
  %v2580 = vadd.f32 %v2547, %v2563
  %v2581 = vadd.f32 %v2548, %v2564
  %v2582 = vadd.f32 %v2549, %v2565
  %v2583 = vadd.f32 %v2550, 0.0
  %v2584 = vadd.f32 %v2551, %v2567
  %v2585 = vadd.f32 %v2552, %v2568
  %v2586 = vadd.f32 %v2553, %v2569
  %v2587 = vadd.f32 %v2554, %v2570
  %v2588 = vadd.f32 %v2555, %v2571
  %v2589 = vadd.f32 %v2556, %v2572
  %v2590 = vadd.f32 %v2557, %v2573
  %v2591 = vadd.f32 %v2542, %v2559
  %v2592 = vadd.f32 %v2543, %v2560
  %v2593 = vadd.f32 %v2544, %v2561
  %v2594 = vadd.f32 %v2545, %v2562
  %v2595 = vadd.f32 %v2546, %v2563
  %v2596 = vadd.f32 %v2547, %v2564
  %v2597 = vadd.f32 %v2548, %v2565
  %v2598 = vadd.f32 %v2549, %v2566
  %v2599 = vadd.f32 %v2550, %v2567
  %v2600 = vadd.f32 %v2551, %v2568
  %v2601 = vadd.f32 %v2552, %v2569
  %v2602 = vadd.f32 %v2553, %v2570
  %v2603 = vadd.f32 %v2554, %v2571
  %v2604 = vadd.f32 %v2555, %v2572
  %v2605 = vadd.f32 %v2556, %v2573
  %v2606 = vadd.f32 %v2557, %v2574
  %v2607 = vadd.f32 %v2566, 0.0
  %v2608 = vadd.f32 %v2574, 0.0
  %v2609 = vld [vmem:[%s7] sm:$0xff]
  %v2610 = vld [vmem:[%s7 + $0x8] sm:$0xff]
  %v2611 = vld [vmem:[%s7 + $0x10] sm:$0xff]
  %v2612 = vld [vmem:[%s7 + $0x18] sm:$0xff]
  %v2613 = vld [vmem:[%s7 + $0x20] sm:$0xff]
  %v2614 = vld [vmem:[%s7 + $0x28] sm:$0xff]
  %v2615 = vld [vmem:[%s7 + $0x30] sm:$0xff]
  %v2616 = vld [vmem:[%s7 + $0x38] sm:$0xff]
  %v2617 = vld [vmem:[%s7 + $0x40] sm:$0xff]
  %v2618 = vld [vmem:[%s7 + $0x48] sm:$0xff]
  %v2619 = vld [vmem:[%s7 + $0x50] sm:$0xff]
  %v2620 = vld [vmem:[%s7 + $0x58] sm:$0xff]
  %v2621 = vld [vmem:[%s7 + $0x60] sm:$0xff]
  %v2622 = vld [vmem:[%s7 + $0x68] sm:$0xff]
  %v2623 = vld [vmem:[%s7 + $0x70] sm:$0xff]
  %v2624 = vld [vmem:[%s7 + $0x78] sm:$0xff]
  %v2625 = vld [vmem:[%s7 + $0x80] sm:$0xff]
  %v2626 = vld [vmem:[%s7 + $0x88] sm:$0xff]
  %v2627 = vld [vmem:[%s7 + $0x90] sm:$0xff]
  %v2628 = vld [vmem:[%s7 + $0x98] sm:$0xff]
  %v2629 = vld [vmem:[%s7 + $0xa0] sm:$0xff]
  %v2630 = vld [vmem:[%s7 + $0xa8] sm:$0xff]
  %v2631 = vld [vmem:[%s7 + $0xb0] sm:$0xff]
  %v2632 = vld [vmem:[%s7 + $0xb8] sm:$0xff]
  %v2633 = vld [vmem:[%s7 + $0xc0] sm:$0xff]
  %v2634 = vld [vmem:[%s7 + $0xc8] sm:$0xff]
  %v2635 = vld [vmem:[%s7 + $0xd0] sm:$0xff]
  %v2636 = vld [vmem:[%s7 + $0xd8] sm:$0xff]
  %v2637 = vld [vmem:[%s7 + $0xe0] sm:$0xff]
  %v2638 = vld [vmem:[%s7 + $0xe8] sm:$0xff]
  %v2639 = vld [vmem:[%s7 + $0xf0] sm:$0xff]
  %v2640 = vld [vmem:[%s7 + $0xf8] sm:$0xff]
  %v2641 = vld [vmem:[%s7 + $0x100] sm:$0xff]
  %v2642 = vld [vmem:[%s7 + $0x108] sm:$0xff]
  %v2643 = vld [vmem:[%s7 + $0x110] sm:$0xff]
  %v2644 = vld [vmem:[%s7 + $0x118] sm:$0xff]
  %v2645 = vld [vmem:[%s7 + $0x120] sm:$0xff]
  %v2646 = vld [vmem:[%s7 + $0x128] sm:$0xff]
  %v2647 = vld [vmem:[%s7 + $0x130] sm:$0xff]
  %v2648 = vld [vmem:[%s7 + $0x138] sm:$0xff]
  %v2649 = vld [vmem:[%s7 + $0x140] sm:$0xff]
  %v2650 = vld [vmem:[%s7 + $0x148] sm:$0xff]
  %v2651 = vld [vmem:[%s7 + $0x150] sm:$0xff]
  %v2652 = vld [vmem:[%s7 + $0x158] sm:$0xff]
  %v2653 = vld [vmem:[%s7 + $0x160] sm:$0xff]
  %v2654 = vld [vmem:[%s7 + $0x168] sm:$0xff]
  %v2655 = vld [vmem:[%s7 + $0x170] sm:$0xff]
  %v2656 = vld [vmem:[%s7 + $0x178] sm:$0xff]
  %2657 = vmatpush.msra.mxu0 %v2624
  %2658 = vmatpush.msra.mxu0 %v2623
  %2659 = vmatpush.msra.mxu0 %v2622
  %2660 = vmatpush.msra.mxu0 %v2621
  %2661 = vmatpush.msra.mxu0 %v2620
  %2662 = vmatpush.msra.mxu0 %v2619
  %2663 = vmatpush.msra.mxu0 %v2618
  %2664 = vmatpush.msra.mxu0 %v2617
  %2665 = vmatpush.msra.mxu0 %v2616
  %2666 = vmatpush.msra.mxu0 %v2615
  %2667 = vmatpush.msra.mxu0 %v2614
  %2668 = vmatpush.msra.mxu0 %v2613
  %2669 = vmatpush.msra.mxu0 %v2612
  %2670 = vmatpush.msra.mxu0 %v2611
  %2671 = vmatpush.msra.mxu0 %v2610
  %2672 = vmatpush.msra.mxu0 %v2609
  %2673 = vmatmul.f32.gmra.mxu0 %v2575
  %v2674 = vpop.f32.mrf.mxu0
  %v2675 = vadd.f32 0.0, %v2674
  %2676 = vmatmul.f32.gmra.mxu0 %v2576
  %v2677 = vpop.f32.mrf.mxu0
  %v2678 = vadd.f32 0.0, %v2677
  %2679 = vmatmul.f32.gmra.mxu0 %v2577
  %v2680 = vpop.f32.mrf.mxu0
  %v2681 = vadd.f32 0.0, %v2680
  %2682 = vmatmul.f32.gmra.mxu0 %v2578
  %v2683 = vpop.f32.mrf.mxu0
  %v2684 = vadd.f32 0.0, %v2683
  %2685 = vmatmul.f32.gmra.mxu0 %v2579
  %v2686 = vpop.f32.mrf.mxu0
  %v2687 = vadd.f32 0.0, %v2686
  %2688 = vmatmul.f32.gmra.mxu0 %v2580
  %v2689 = vpop.f32.mrf.mxu0
  %v2690 = vadd.f32 0.0, %v2689
  %2691 = vmatmul.f32.gmra.mxu0 %v2581
  %v2692 = vpop.f32.mrf.mxu0
  %v2693 = vadd.f32 0.0, %v2692
  %2694 = vmatmul.f32.gmra.mxu0 %v2582
  %v2695 = vpop.f32.mrf.mxu0
  %v2696 = vadd.f32 0.0, %v2695
  %2697 = vmatmul.f32.gmra.mxu0 %v2583
  %v2698 = vpop.f32.mrf.mxu0
  %v2699 = vadd.f32 0.0, %v2698
  %2700 = vmatmul.f32.gmra.mxu0 %v2584
  %v2701 = vpop.f32.mrf.mxu0
  %v2702 = vadd.f32 0.0, %v2701
  %2703 = vmatmul.f32.gmra.mxu0 %v2585
  %v2704 = vpop.f32.mrf.mxu0
  %v2705 = vadd.f32 0.0, %v2704
  %2706 = vmatmul.f32.gmra.mxu0 %v2586
  %v2707 = vpop.f32.mrf.mxu0
  %v2708 = vadd.f32 0.0, %v2707
  %2709 = vmatmul.f32.gmra.mxu0 %v2587
  %v2710 = vpop.f32.mrf.mxu0
  %v2711 = vadd.f32 0.0, %v2710
  %2712 = vmatmul.f32.gmra.mxu0 %v2588
  %v2713 = vpop.f32.mrf.mxu0
  %v2714 = vadd.f32 0.0, %v2713
  %2715 = vmatmul.f32.gmra.mxu0 %v2589
  %v2716 = vpop.f32.mrf.mxu0
  %v2717 = vadd.f32 0.0, %v2716
  %2718 = vmatmul.f32.gmra.mxu0 %v2590
  %v2719 = vpop.f32.mrf.mxu0
  %v2720 = vadd.f32 0.0, %v2719
  %2721 = vdwg.mxu0
  %2722 = vmatpush.msra.mxu0 %v2640
  %2723 = vmatpush.msra.mxu0 %v2639
  %2724 = vmatpush.msra.mxu0 %v2638
  %2725 = vmatpush.msra.mxu0 %v2637
  %2726 = vmatpush.msra.mxu0 %v2636
  %2727 = vmatpush.msra.mxu0 %v2635
  %2728 = vmatpush.msra.mxu0 %v2634
  %2729 = vmatpush.msra.mxu0 %v2633
  %2730 = vmatpush.msra.mxu0 %v2632
  %2731 = vmatpush.msra.mxu0 %v2631
  %2732 = vmatpush.msra.mxu0 %v2630
  %2733 = vmatpush.msra.mxu0 %v2629
  %2734 = vmatpush.msra.mxu0 %v2628
  %2735 = vmatpush.msra.mxu0 %v2627
  %2736 = vmatpush.msra.mxu0 %v2626
  %2737 = vmatpush.msra.mxu0 %v2625
  %2738 = vmatmul.f32.gmra.mxu0 %v2591
  %v2739 = vpop.f32.mrf.mxu0
  %v2740 = vadd.f32 %v2675, %v2739
  %2741 = vmatmul.f32.gmra.mxu0 %v2592
  %v2742 = vpop.f32.mrf.mxu0
  %v2743 = vadd.f32 %v2678, %v2742
  %2744 = vmatmul.f32.gmra.mxu0 %v2593
  %v2745 = vpop.f32.mrf.mxu0
  %v2746 = vadd.f32 %v2681, %v2745
  %2747 = vmatmul.f32.gmra.mxu0 %v2594
  %v2748 = vpop.f32.mrf.mxu0
  %v2749 = vadd.f32 %v2684, %v2748
  %2750 = vmatmul.f32.gmra.mxu0 %v2595
  %v2751 = vpop.f32.mrf.mxu0
  %v2752 = vadd.f32 %v2687, %v2751
  %2753 = vmatmul.f32.gmra.mxu0 %v2596
  %v2754 = vpop.f32.mrf.mxu0
  %v2755 = vadd.f32 %v2690, %v2754
  %2756 = vmatmul.f32.gmra.mxu0 %v2597
  %v2757 = vpop.f32.mrf.mxu0
  %v2758 = vadd.f32 %v2693, %v2757
  %2759 = vmatmul.f32.gmra.mxu0 %v2598
  %v2760 = vpop.f32.mrf.mxu0
  %v2761 = vadd.f32 %v2696, %v2760
  %2762 = vmatmul.f32.gmra.mxu0 %v2599
  %v2763 = vpop.f32.mrf.mxu0
  %v2764 = vadd.f32 %v2699, %v2763
  %2765 = vmatmul.f32.gmra.mxu0 %v2600
  %v2766 = vpop.f32.mrf.mxu0
  %v2767 = vadd.f32 %v2702, %v2766
  %2768 = vmatmul.f32.gmra.mxu0 %v2601
  %v2769 = vpop.f32.mrf.mxu0
  %v2770 = vadd.f32 %v2705, %v2769
  %2771 = vmatmul.f32.gmra.mxu0 %v2602
  %v2772 = vpop.f32.mrf.mxu0
  %v2773 = vadd.f32 %v2708, %v2772
  %2774 = vmatmul.f32.gmra.mxu0 %v2603
  %v2775 = vpop.f32.mrf.mxu0
  %v2776 = vadd.f32 %v2711, %v2775
  %2777 = vmatmul.f32.gmra.mxu0 %v2604
  %v2778 = vpop.f32.mrf.mxu0
  %v2779 = vadd.f32 %v2714, %v2778
  %2780 = vmatmul.f32.gmra.mxu0 %v2605
  %v2781 = vpop.f32.mrf.mxu0
  %v2782 = vadd.f32 %v2717, %v2781
  %2783 = vmatmul.f32.gmra.mxu0 %v2606
  %v2784 = vpop.f32.mrf.mxu0
  %v2785 = vadd.f32 %v2720, %v2784
  %2786 = vdwg.mxu0
  %2787 = vmatpush.msra.mxu0 %v2656
  %2788 = vmatpush.msra.mxu0 %v2655
  %2789 = vmatpush.msra.mxu0 %v2654
  %2790 = vmatpush.msra.mxu0 %v2653
  %2791 = vmatpush.msra.mxu0 %v2652
  %2792 = vmatpush.msra.mxu0 %v2651
  %2793 = vmatpush.msra.mxu0 %v2650
  %2794 = vmatpush.msra.mxu0 %v2649
  %2795 = vmatpush.msra.mxu0 %v2648
  %2796 = vmatpush.msra.mxu0 %v2647
  %2797 = vmatpush.msra.mxu0 %v2646
  %2798 = vmatpush.msra.mxu0 %v2645
  %2799 = vmatpush.msra.mxu0 %v2644
  %2800 = vmatpush.msra.mxu0 %v2643
  %2801 = vmatpush.msra.mxu0 %v2642
  %2802 = vmatpush.msra.mxu0 %v2641
  %2803 = vmatmul.f32.gmra.mxu0 %v2576
  %v2804 = vpop.f32.mrf.mxu0
  %v2805 = vadd.f32 %v2740, %v2804
  %2806 = vmatmul.f32.gmra.mxu0 %v2577
  %v2807 = vpop.f32.mrf.mxu0
  %v2808 = vadd.f32 %v2743, %v2807
  %2809 = vmatmul.f32.gmra.mxu0 %v2578
  %v2810 = vpop.f32.mrf.mxu0
  %v2811 = vadd.f32 %v2746, %v2810
  %2812 = vmatmul.f32.gmra.mxu0 %v2579
  %v2813 = vpop.f32.mrf.mxu0
  %v2814 = vadd.f32 %v2749, %v2813
  %2815 = vmatmul.f32.gmra.mxu0 %v2580
  %v2816 = vpop.f32.mrf.mxu0
  %v2817 = vadd.f32 %v2752, %v2816
  %2818 = vmatmul.f32.gmra.mxu0 %v2581
  %v2819 = vpop.f32.mrf.mxu0
  %v2820 = vadd.f32 %v2755, %v2819
  %2821 = vmatmul.f32.gmra.mxu0 %v2582
  %v2822 = vpop.f32.mrf.mxu0
  %v2823 = vadd.f32 %v2758, %v2822
  %2824 = vmatmul.f32.gmra.mxu0 %v2607
  %v2825 = vpop.f32.mrf.mxu0
  %v2826 = vadd.f32 %v2761, %v2825
  %2827 = vmatmul.f32.gmra.mxu0 %v2584
  %v2828 = vpop.f32.mrf.mxu0
  %v2829 = vadd.f32 %v2764, %v2828
  %2830 = vmatmul.f32.gmra.mxu0 %v2585
  %v2831 = vpop.f32.mrf.mxu0
  %v2832 = vadd.f32 %v2767, %v2831
  %2833 = vmatmul.f32.gmra.mxu0 %v2586
  %v2834 = vpop.f32.mrf.mxu0
  %v2835 = vadd.f32 %v2770, %v2834
  %2836 = vmatmul.f32.gmra.mxu0 %v2587
  %v2837 = vpop.f32.mrf.mxu0
  %v2838 = vadd.f32 %v2773, %v2837
  %2839 = vmatmul.f32.gmra.mxu0 %v2588
  %v2840 = vpop.f32.mrf.mxu0
  %v2841 = vadd.f32 %v2776, %v2840
  %2842 = vmatmul.f32.gmra.mxu0 %v2589
  %v2843 = vpop.f32.mrf.mxu0
  %v2844 = vadd.f32 %v2779, %v2843
  %2845 = vmatmul.f32.gmra.mxu0 %v2590
  %v2846 = vpop.f32.mrf.mxu0
  %v2847 = vadd.f32 %v2782, %v2846
  %2848 = vmatmul.f32.gmra.mxu0 %v2608
  %v2849 = vpop.f32.mrf.mxu0
  %v2850 = vadd.f32 %v2785, %v2849
  %2851 = vdwg.mxu0
  %v2852 = vmul.f32 %v2805, 0.25
  %v2853 = vmul.f32 %v2808, 0.25
  %v2854 = vmul.f32 %v2811, 0.25
  %v2855 = vmul.f32 %v2814, 0.25
  %v2856 = vmul.f32 %v2817, 0.25
  %v2857 = vmul.f32 %v2820, 0.25
  %v2858 = vmul.f32 %v2823, 0.25
  %v2859 = vmul.f32 %v2826, 0.25
  %v2860 = vmul.f32 %v2829, 0.25
  %v2861 = vmul.f32 %v2832, 0.25
  %v2862 = vmul.f32 %v2835, 0.25
  %v2863 = vmul.f32 %v2838, 0.25
  %v2864 = vmul.f32 %v2841, 0.25
  %v2865 = vmul.f32 %v2844, 0.25
  %v2866 = vmul.f32 %v2847, 0.25
  %v2867 = vmul.f32 %v2850, 0.25
  %v2868 = vld [vmem:[%s8] sm:$0x1]
  %v2870 = vperm.slane %v2868, 0
  %v2872 = vadd.f32 %v2852, %v2870
  %v2873 = vadd.f32 %v2853, %v2870
  %v2874 = vadd.f32 %v2854, %v2870
  %v2875 = vadd.f32 %v2855, %v2870
  %v2876 = vadd.f32 %v2856, %v2870
  %v2877 = vadd.f32 %v2857, %v2870
  %v2878 = vadd.f32 %v2858, %v2870
  %v2879 = vadd.f32 %v2859, %v2870
  %v2880 = vadd.f32 %v2860, %v2870
  %v2881 = vadd.f32 %v2861, %v2870
  %v2882 = vadd.f32 %v2862, %v2870
  %v2883 = vadd.f32 %v2863, %v2870
  %v2884 = vadd.f32 %v2864, %v2870
  %v2885 = vadd.f32 %v2865, %v2870
  %v2886 = vadd.f32 %v2866, %v2870
  %v2887 = vadd.f32 %v2867, %v2870
  %v2888 = vld [vmem:[%s0] ss:$2 sm:$0xff]
  %s2889 = scalar_lea.vmem %s0, 32
  %v2890 = vld [vmem:[%s2889] ss:$2 sm:$0xff]
  %s2891 = scalar_lea.vmem %s0, 64
  %v2892 = vld [vmem:[%s2891] ss:$2 sm:$0xff]
  %s2893 = scalar_lea.vmem %s0, 96
  %v2894 = vld [vmem:[%s2893] ss:$2 sm:$0xff]
  %s2895 = scalar_lea.vmem %s0, 128
  %v2896 = vld [vmem:[%s2895] ss:$2 sm:$0xff]
  %s2897 = scalar_lea.vmem %s0, 160
  %v2898 = vld [vmem:[%s2897] ss:$2 sm:$0xff]
  %s2899 = scalar_lea.vmem %s0, 192
  %v2900 = vld [vmem:[%s2899] ss:$2 sm:$0xff]
  %s2901 = scalar_lea.vmem %s0, 224
  %v2902 = vld [vmem:[%s2901] ss:$2 sm:$0xff]
  %s2903 = scalar_lea.vmem %s0, 256
  %v2904 = vld [vmem:[%s2903] ss:$2 sm:$0xff]
  %s2905 = scalar_lea.vmem %s0, 288
  %v2906 = vld [vmem:[%s2905] ss:$2 sm:$0xff]
  %s2907 = scalar_lea.vmem %s0, 320
  %v2908 = vld [vmem:[%s2907] ss:$2 sm:$0xff]
  %s2909 = scalar_lea.vmem %s0, 352
  %v2910 = vld [vmem:[%s2909] ss:$2 sm:$0xff]
  %s2911 = scalar_lea.vmem %s0, 384
  %v2912 = vld [vmem:[%s2911] ss:$2 sm:$0xff]
  %s2913 = scalar_lea.vmem %s0, 416
  %v2914 = vld [vmem:[%s2913] ss:$2 sm:$0xff]
  %s2915 = scalar_lea.vmem %s0, 448
  %v2916 = vld [vmem:[%s2915] ss:$2 sm:$0xff]
  %s2917 = scalar_lea.vmem %s0, 480
  %v2918 = vld [vmem:[%s2917] ss:$2 sm:$0xff]
  %s2919 = scalar_lea.vmem %s0, 1
  %v2920 = vld [vmem:[%s2919] ss:$2 sm:$0xff]
  %s2921 = scalar_lea.vmem %s0, 33
  %v2922 = vld [vmem:[%s2921] ss:$2 sm:$0xff]
  %s2923 = scalar_lea.vmem %s0, 65
  %v2924 = vld [vmem:[%s2923] ss:$2 sm:$0xff]
  %s2925 = scalar_lea.vmem %s0, 97
  %v2926 = vld [vmem:[%s2925] ss:$2 sm:$0xff]
  %s2927 = scalar_lea.vmem %s0, 129
  %v2928 = vld [vmem:[%s2927] ss:$2 sm:$0xff]
  %s2929 = scalar_lea.vmem %s0, 161
  %v2930 = vld [vmem:[%s2929] ss:$2 sm:$0xff]
  %s2931 = scalar_lea.vmem %s0, 193
  %v2932 = vld [vmem:[%s2931] ss:$2 sm:$0xff]
  %s2933 = scalar_lea.vmem %s0, 225
  %v2934 = vld [vmem:[%s2933] ss:$2 sm:$0xff]
  %s2935 = scalar_lea.vmem %s0, 257
  %v2936 = vld [vmem:[%s2935] ss:$2 sm:$0xff]
  %s2937 = scalar_lea.vmem %s0, 289
  %v2938 = vld [vmem:[%s2937] ss:$2 sm:$0xff]
  %s2939 = scalar_lea.vmem %s0, 321
  %v2940 = vld [vmem:[%s2939] ss:$2 sm:$0xff]
  %s2941 = scalar_lea.vmem %s0, 353
  %v2942 = vld [vmem:[%s2941] ss:$2 sm:$0xff]
  %s2943 = scalar_lea.vmem %s0, 385
  %v2944 = vld [vmem:[%s2943] ss:$2 sm:$0xff]
  %s2945 = scalar_lea.vmem %s0, 417
  %v2946 = vld [vmem:[%s2945] ss:$2 sm:$0xff]
  %s2947 = scalar_lea.vmem %s0, 449
  %v2948 = vld [vmem:[%s2947] ss:$2 sm:$0xff]
  %s2949 = scalar_lea.vmem %s0, 481
  %v2950 = vld [vmem:[%s2949] ss:$2 sm:$0xff]
  %v2951 = vadd.f32 %v2888, %v2920
  %v2952 = vadd.f32 %v2890, %v2922
  %v2953 = vadd.f32 %v2892, %v2924
  %v2954 = vadd.f32 %v2894, %v2926
  %v2955 = vadd.f32 %v2896, %v2928
  %v2956 = vadd.f32 %v2898, %v2930
  %v2957 = vadd.f32 %v2900, %v2932
  %v2958 = vadd.f32 %v2902, %v2934
  %v2959 = vadd.f32 %v2904, %v2936
  %v2960 = vadd.f32 %v2906, %v2938
  %v2961 = vadd.f32 %v2908, %v2940
  %v2962 = vadd.f32 %v2910, %v2942
  %v2963 = vadd.f32 %v2912, %v2944
  %v2964 = vadd.f32 %v2914, %v2946
  %v2965 = vadd.f32 %v2916, %v2948
  %v2966 = vadd.f32 %v2918, %v2950
  %s2967 = scalar_lea.vmem %s0, 16
  %v2968 = vld [vmem:[%s2967] ss:$2 sm:$0xff]
  %s2969 = scalar_lea.vmem %s2967, 32
  %v2970 = vld [vmem:[%s2969] ss:$2 sm:$0xff]
  %s2971 = scalar_lea.vmem %s2967, 64
  %v2972 = vld [vmem:[%s2971] ss:$2 sm:$0xff]
  %s2973 = scalar_lea.vmem %s2967, 96
  %v2974 = vld [vmem:[%s2973] ss:$2 sm:$0xff]
  %s2975 = scalar_lea.vmem %s2967, 128
  %v2976 = vld [vmem:[%s2975] ss:$2 sm:$0xff]
  %s2977 = scalar_lea.vmem %s2967, 160
  %v2978 = vld [vmem:[%s2977] ss:$2 sm:$0xff]
  %s2979 = scalar_lea.vmem %s2967, 192
  %v2980 = vld [vmem:[%s2979] ss:$2 sm:$0xff]
  %s2981 = scalar_lea.vmem %s2967, 224
  %v2982 = vld [vmem:[%s2981] ss:$2 sm:$0xff]
  %s2983 = scalar_lea.vmem %s2967, 256
  %v2984 = vld [vmem:[%s2983] ss:$2 sm:$0xff]
  %s2985 = scalar_lea.vmem %s2967, 288
  %v2986 = vld [vmem:[%s2985] ss:$2 sm:$0xff]
  %s2987 = scalar_lea.vmem %s2967, 320
  %v2988 = vld [vmem:[%s2987] ss:$2 sm:$0xff]
  %s2989 = scalar_lea.vmem %s2967, 352
  %v2990 = vld [vmem:[%s2989] ss:$2 sm:$0xff]
  %s2991 = scalar_lea.vmem %s2967, 384
  %v2992 = vld [vmem:[%s2991] ss:$2 sm:$0xff]
  %s2993 = scalar_lea.vmem %s2967, 416
  %v2994 = vld [vmem:[%s2993] ss:$2 sm:$0xff]
  %s2995 = scalar_lea.vmem %s2967, 448
  %v2996 = vld [vmem:[%s2995] ss:$2 sm:$0xff]
  %s2997 = scalar_lea.vmem %s2967, 480
  %v2998 = vld [vmem:[%s2997] ss:$2 sm:$0xff]
  %v2999 = vadd.f32 %v2951, %v2968
  %v3000 = vadd.f32 %v2952, %v2970
  %v3001 = vadd.f32 %v2953, %v2972
  %v3002 = vadd.f32 %v2954, %v2974
  %v3003 = vadd.f32 %v2955, %v2976
  %v3004 = vadd.f32 %v2956, %v2978
  %v3005 = vadd.f32 %v2957, %v2980
  %v3006 = vadd.f32 %v2958, %v2982
  %v3007 = vadd.f32 %v2959, %v2984
  %v3008 = vadd.f32 %v2960, %v2986
  %v3009 = vadd.f32 %v2961, %v2988
  %v3010 = vadd.f32 %v2962, %v2990
  %v3011 = vadd.f32 %v2963, %v2992
  %v3012 = vadd.f32 %v2964, %v2994
  %v3013 = vadd.f32 %v2965, %v2996
  %v3014 = vadd.f32 %v2966, %v2998
  %s3015 = scalar_lea.vmem %s2967, 1
  %v3016 = vld [vmem:[%s3015] ss:$2 sm:$0xff]
  %s3017 = scalar_lea.vmem %s2967, 33
  %v3018 = vld [vmem:[%s3017] ss:$2 sm:$0xff]
  %s3019 = scalar_lea.vmem %s2967, 65
  %v3020 = vld [vmem:[%s3019] ss:$2 sm:$0xff]
  %s3021 = scalar_lea.vmem %s2967, 97
  %v3022 = vld [vmem:[%s3021] ss:$2 sm:$0xff]
  %s3023 = scalar_lea.vmem %s2967, 129
  %v3024 = vld [vmem:[%s3023] ss:$2 sm:$0xff]
  %s3025 = scalar_lea.vmem %s2967, 161
  %v3026 = vld [vmem:[%s3025] ss:$2 sm:$0xff]
  %s3027 = scalar_lea.vmem %s2967, 193
  %v3028 = vld [vmem:[%s3027] ss:$2 sm:$0xff]
  %s3029 = scalar_lea.vmem %s2967, 225
  %v3030 = vld [vmem:[%s3029] ss:$2 sm:$0xff]
  %s3031 = scalar_lea.vmem %s2967, 257
  %v3032 = vld [vmem:[%s3031] ss:$2 sm:$0xff]
  %s3033 = scalar_lea.vmem %s2967, 289
  %v3034 = vld [vmem:[%s3033] ss:$2 sm:$0xff]
  %s3035 = scalar_lea.vmem %s2967, 321
  %v3036 = vld [vmem:[%s3035] ss:$2 sm:$0xff]
  %s3037 = scalar_lea.vmem %s2967, 353
  %v3038 = vld [vmem:[%s3037] ss:$2 sm:$0xff]
  %s3039 = scalar_lea.vmem %s2967, 385
  %v3040 = vld [vmem:[%s3039] ss:$2 sm:$0xff]
  %s3041 = scalar_lea.vmem %s2967, 417
  %v3042 = vld [vmem:[%s3041] ss:$2 sm:$0xff]
  %s3043 = scalar_lea.vmem %s2967, 449
  %v3044 = vld [vmem:[%s3043] ss:$2 sm:$0xff]
  %s3045 = scalar_lea.vmem %s2967, 481
  %v3046 = vld [vmem:[%s3045] ss:$2 sm:$0xff]
  %v3047 = vadd.f32 %v2999, %v3016
  %v3048 = vadd.f32 %v3000, %v3018
  %v3049 = vadd.f32 %v3001, %v3020
  %v3050 = vadd.f32 %v3002, %v3022
  %v3051 = vadd.f32 %v3003, %v3024
  %v3052 = vadd.f32 %v3004, %v3026
  %v3053 = vadd.f32 %v3005, %v3028
  %v3054 = vadd.f32 %v3006, %v3030
  %v3055 = vadd.f32 %v3007, %v3032
  %v3056 = vadd.f32 %v3008, %v3034
  %v3057 = vadd.f32 %v3009, %v3036
  %v3058 = vadd.f32 %v3010, %v3038
  %v3059 = vadd.f32 %v3011, %v3040
  %v3060 = vadd.f32 %v3012, %v3042
  %v3061 = vadd.f32 %v3013, %v3044
  %v3062 = vadd.f32 %v3014, %v3046
  %v3063 = vmul.f32 %v3047, 0.25
  %v3064 = vmul.f32 %v3048, 0.25
  %v3065 = vmul.f32 %v3049, 0.25
  %v3066 = vmul.f32 %v3050, 0.25
  %v3067 = vmul.f32 %v3051, 0.25
  %v3068 = vmul.f32 %v3052, 0.25
  %v3069 = vmul.f32 %v3053, 0.25
  %v3070 = vmul.f32 %v3054, 0.25
  %v3071 = vmul.f32 %v3055, 0.25
  %v3072 = vmul.f32 %v3056, 0.25
  %v3073 = vmul.f32 %v3057, 0.25
  %v3074 = vmul.f32 %v3058, 0.25
  %v3075 = vmul.f32 %v3059, 0.25
  %v3076 = vmul.f32 %v3060, 0.25
  %v3077 = vmul.f32 %v3061, 0.25
  %v3078 = vmul.f32 %v3062, 0.25
  %3095 = vrot.lane.b32.xlu0 %v3063, 39
  %v3096 = vpop.permute.xlu0 %3095
  %3097 = vrot.lane.b32.xlu0 %v3064, 39
  %v3098 = vpop.permute.xlu0 %3097
  %3099 = vrot.lane.b32.xlu0 %v3065, 39
  %v3100 = vpop.permute.xlu0 %3099
  %3101 = vrot.lane.b32.xlu0 %v3066, 39
  %v3102 = vpop.permute.xlu0 %3101
  %3103 = vrot.lane.b32.xlu0 %v3067, 39
  %v3104 = vpop.permute.xlu0 %3103
  %3105 = vrot.lane.b32.xlu0 %v3068, 39
  %v3106 = vpop.permute.xlu0 %3105
  %3107 = vrot.lane.b32.xlu0 %v3069, 39
  %v3108 = vpop.permute.xlu0 %3107
  %3109 = vrot.lane.b32.xlu0 %v3070, 39
  %v3110 = vpop.permute.xlu0 %3109
  %3111 = vrot.lane.b32.xlu0 %v3071, 39
  %v3112 = vpop.permute.xlu0 %3111
  %3113 = vrot.lane.b32.xlu0 %v3072, 39
  %v3114 = vpop.permute.xlu0 %3113
  %3115 = vrot.lane.b32.xlu0 %v3073, 39
  %v3116 = vpop.permute.xlu0 %3115
  %3117 = vrot.lane.b32.xlu0 %v3074, 39
  %v3118 = vpop.permute.xlu0 %3117
  %3119 = vrot.lane.b32.xlu0 %v3075, 39
  %v3120 = vpop.permute.xlu0 %3119
  %3121 = vrot.lane.b32.xlu0 %v3076, 39
  %v3122 = vpop.permute.xlu0 %3121
  %3123 = vrot.lane.b32.xlu0 %v3077, 39
  %v3124 = vpop.permute.xlu0 %3123
  %3125 = vrot.lane.b32.xlu0 %v3078, 39
  %v3126 = vpop.permute.xlu0 %3125
  %vm3143 = vcmask 318464
  %v3144 = vsel %vm3143, %v2872, %v3096
  %v3145 = vsel %vm3143, %v2873, %v3098
  %v3146 = vsel %vm3143, %v2874, %v3100
  %v3147 = vsel %vm3143, %v2875, %v3102
  %v3148 = vsel %vm3143, %v2876, %v3104
  %v3149 = vsel %vm3143, %v2877, %v3106
  %v3150 = vsel %vm3143, %v2878, %v3108
  %v3151 = vsel %vm3143, %v2879, %v3110
  %v3152 = vsel %vm3143, %v2880, %v3112
  %v3153 = vsel %vm3143, %v2881, %v3114
  %v3154 = vsel %vm3143, %v2882, %v3116
  %v3155 = vsel %vm3143, %v2883, %v3118
  %v3156 = vsel %vm3143, %v2884, %v3120
  %v3157 = vsel %vm3143, %v2885, %v3122
  %v3158 = vsel %vm3143, %v2886, %v3124
  %v3159 = vsel %vm3143, %v2887, %v3126
  %vm3160 = vcmask 850944
  %v3161 = vsel %vm3160, %v3144, 0.0
  %v3162 = vsel %vm3160, %v3145, 0.0
  %v3163 = vsel %vm3160, %v3146, 0.0
  %v3164 = vsel %vm3160, %v3147, 0.0
  %v3165 = vsel %vm3160, %v3148, 0.0
  %v3166 = vsel %vm3160, %v3149, 0.0
  %v3167 = vsel %vm3160, %v3150, 0.0
  %v3168 = vsel %vm3160, %v3151, 0.0
  %v3169 = vsel %vm3160, %v3152, 0.0
  %v3170 = vsel %vm3160, %v3153, 0.0
  %v3171 = vsel %vm3160, %v3154, 0.0
  %v3172 = vsel %vm3160, %v3155, 0.0
  %v3173 = vsel %vm3160, %v3156, 0.0
  %v3174 = vsel %vm3160, %v3157, 0.0
  %v3175 = vsel %vm3160, %v3158, 0.0
  %v3176 = vsel %vm3160, %v3159, 0.0
  %3177 = vst [vmem:[%s9] sm:$0xff] %v3161
  %3178 = vst [vmem:[%s9 + $0x8] sm:$0xff] %v3162
  %3179 = vst [vmem:[%s9 + $0x10] sm:$0xff] %v3163
  %3180 = vst [vmem:[%s9 + $0x18] sm:$0xff] %v3164
  %3181 = vst [vmem:[%s9 + $0x20] sm:$0xff] %v3165
  %3182 = vst [vmem:[%s9 + $0x28] sm:$0xff] %v3166
  %3183 = vst [vmem:[%s9 + $0x30] sm:$0xff] %v3167
  %3184 = vst [vmem:[%s9 + $0x38] sm:$0xff] %v3168
  %3185 = vst [vmem:[%s9 + $0x40] sm:$0xff] %v3169
  %3186 = vst [vmem:[%s9 + $0x48] sm:$0xff] %v3170
  %3187 = vst [vmem:[%s9 + $0x50] sm:$0xff] %v3171
  %3188 = vst [vmem:[%s9 + $0x58] sm:$0xff] %v3172
  %3189 = vst [vmem:[%s9 + $0x60] sm:$0xff] %v3173
  %3190 = vst [vmem:[%s9 + $0x68] sm:$0xff] %v3174
  %3191 = vst [vmem:[%s9 + $0x70] sm:$0xff] %v3175
  %3192 = vst [vmem:[%s9 + $0x78] sm:$0xff] %v3176
  // Predicated region
  $region38: #{dense_block_forward.1} parent=0 // pred_check
    _
  $region39: #{dense_block_forward.1} parent=0 // pred_check_branch
    %3194 = sbr.rel (0) target = $region41
  $region40: #{dense_block_forward.1} parent=0 // pred_region
    _
  $region41: #{dense_block_forward.1} parent=0 // pred_fallthru
    _
  // Predicated region
  $region42: #{dense_block_forward.1} parent=0 // pred_check
    _
  $region43: #{dense_block_forward.1} parent=0 // pred_check_branch
    %3196 = sbr.rel (0) target = $region45
  $region44: #{dense_block_forward.1} parent=0 // pred_region
    _
  $region45: #{dense_block_forward.1} parent=0 // pred_fallthru
    _

</llo_original>
